<compile_context>
chip_gen: v5e
topology: v5e:2x2
jax: 0.10.0
libtpu: 0.0.40
codegen_flags: <defaults>
</compile_context>

<pallas_src>
import functools

import jax
import jax.numpy as jnp
from jax.experimental import pallas as pl
from jax.experimental.pallas import tpu as pltpu

# ---- model hyperparameters (small, consistent with the module) -------------
D_MODEL = 32
N_HEADS = 4
HEAD_DIM = D_MODEL // N_HEADS
FFN_DIM = 64
N_LAYERS = 2
SEQ_LEN = 8
LN_EPS = 1e-5
N_ITEMS = 50
N_INTER = 6

# finite sentinel for masked scores (-inf gives NaN on fully-masked rows)
NEG_BIAS = -1e30

# rows of the packed per-layer (6, D) bias / LayerNorm table
(_VEC_BO, _VEC_LN1G, _VEC_LN1B, _VEC_B2, _VEC_LN2G, _VEC_LN2B) = range(6)


# ---------------------------------------------------------------------------
# Fused Pallas kernel: (item + interaction) add and N_LAYERS post-norm
# encoder layers over BB flattened sequences per grid step.
# ---------------------------------------------------------------------------
def fused_encoder_kernel(pad_ref, a_ref, b_ref,
                         wqkv_ref, wo_ref, w1_ref, w2_ref,
                         bqkv_ref, b1_ref, vecd_ref,
                         src_ref, trn_ref, *, seq_len):
    M, D = a_ref.shape                       # M = BB * seq_len flattened rows
    S = seq_len

    # ---- fused elementwise add (this IS the returned src_embd) ------------
    h = a_ref[...] + b_ref[...]              # (M, D) f32
    src_ref[...] = h

    # ---- block-diagonal causal + key-padding mask, built once per step ----
    # key c visible to query r iff same sequence AND c <= r.
    r = jax.lax.broadcasted_iota(jnp.int32, (M, M), 0)
    c = jax.lax.broadcasted_iota(jnp.int32, (M, M), 1)
    if S & (S - 1) == 0:                     # power-of-two S: shift, not div
        shift = (S - 1).bit_length()
        r_seq = jax.lax.shift_right_logical(r, shift)
        c_seq = jax.lax.shift_right_logical(c, shift)
    else:
        r_seq = r // S
        c_seq = c // S
    visible = jnp.logical_and(c <= r, r_seq == c_seq)
    amask = jnp.where(visible, 0.0, NEG_BIAS).astype(jnp.float32)
    amask = amask + pad_ref[0]               # (M, M) + per-key bias (1, M)

    scale = 1.0 / (HEAD_DIM ** 0.5)

    for l in range(N_LAYERS):                # static unroll
        w_qkv = wqkv_ref[l]                  # (D, 3D)
        w_o = wo_ref[l]                      # (D, D)
        w_1 = w1_ref[l]                      # (D, FFN)
        w_2 = w2_ref[l]                      # (FFN, D)
        b_qkv = bqkv_ref[l]                  # (1, 3D)
        b_1 = b1_ref[l]                      # (1, FFN)
        vec = vecd_ref[l]                    # (6, D)
        bo = vec[_VEC_BO:_VEC_BO + 1, :]
        ln1g = vec[_VEC_LN1G:_VEC_LN1G + 1, :]
        ln1b = vec[_VEC_LN1B:_VEC_LN1B + 1, :]
        b_2 = vec[_VEC_B2:_VEC_B2 + 1, :]
        ln2g = vec[_VEC_LN2G:_VEC_LN2G + 1, :]
        ln2b = vec[_VEC_LN2B:_VEC_LN2B + 1, :]

        # ---- fused QKV projection over all BB*S rows (one MXU pass) -------
        qkv = jnp.dot(h, w_qkv, preferred_element_type=jnp.float32) + b_qkv

        # ---- per-head attention on the (M, M) block-diagonal scores; Wo is
        # folded in as a per-head accumulation (no lane concat of contexts).
        attn = jnp.zeros((M, D), jnp.float32)
        for hh in range(N_HEADS):
            lo = hh * HEAD_DIM
            q = qkv[:, lo:lo + HEAD_DIM] * scale
            k = qkv[:, D + lo:D + lo + HEAD_DIM]
            v = qkv[:, 2 * D + lo:2 * D + lo + HEAD_DIM]
            s = jax.lax.dot_general(q, k, (((1,), (1,)), ((), ())),
                                    preferred_element_type=jnp.float32)
            s = s + amask
            m = jnp.max(s, axis=-1, keepdims=True)
            p = jnp.exp(s - m)
            denom = jnp.sum(p, axis=-1, keepdims=True)
            p = p * pl.reciprocal(denom, approx=True)          # EUP divide
            ctx = jnp.dot(p, v, preferred_element_type=jnp.float32)  # (M, hd)
            attn = attn + jnp.dot(ctx, w_o[lo:lo + HEAD_DIM, :],
                                  preferred_element_type=jnp.float32)
        attn = attn + bo

        # ---- residual + LayerNorm 1 (post-norm) ---------------------------
        y = h + attn
        mu = jnp.mean(y, axis=-1, keepdims=True)
        var = jnp.mean((y - mu) ** 2, axis=-1, keepdims=True)
        y = (y - mu) * jax.lax.rsqrt(var + LN_EPS) * ln1g + ln1b

        # ---- FFN (ReLU) + residual + LayerNorm 2 --------------------------
        f = jnp.maximum(
            jnp.dot(y, w_1, preferred_element_type=jnp.float32) + b_1, 0.0)
        f = jnp.dot(f, w_2, preferred_element_type=jnp.float32) + b_2
        z = y + f
        mu2 = jnp.mean(z, axis=-1, keepdims=True)
        var2 = jnp.mean((z - mu2) ** 2, axis=-1, keepdims=True)
        h = (z - mu2) * jax.lax.rsqrt(var2 + LN_EPS) * ln2g + ln2b

    trn_ref[...] = h


def add_kernel(a_ref, b_ref, o_ref):
    # gated path: the PyTorch forward discards the transformer output, so the
    # returned src_embd only needs the fused add.
    o_ref[...] = a_ref[...] + b_ref[...]


def _pick_block_batch(batch):
    # ~128 flattened rows (BB*S) per grid step (full MXU M pass), but keep at
    # least 2 grid steps when possible so both v7x TensorCores get work.
    if batch <= 1:
        return 1
    target = max(1, 128 // SEQ_LEN)
    return int(min(target, pl.cdiv(batch, 2)))


def fused_encoder(item_embd, inter_embd, key_padding_mask, params,
                  compute_transformer_out=True):
    B, S, D = item_embd.shape
    BB = _pick_block_batch(B)
    G = int(pl.cdiv(B, BB))          # grid steps; last block may be partial
    M = BB * S                       # flattened (batch*seq) rows per step

    a = item_embd.reshape(B * S, D).astype(jnp.float32)
    b = inter_embd.reshape(B * S, D).astype(jnp.float32)
    row_spec = pl.BlockSpec((M, D), lambda i: (i, 0))

    if not compute_transformer_out:
        src = pl.pallas_call(
            add_kernel,
            out_shape=jax.ShapeDtypeStruct((B * S, D), jnp.float32),
            grid=(G,),
            in_specs=[row_spec, row_spec],
            out_specs=row_spec,
            compiler_params=pltpu.CompilerParams(
                dimension_semantics=("parallel",)),
        )(a, b)
        return src.reshape(B, S, D), None

    # additive key-padding bias, one lane-dense (1, M) row per grid step
    pad = jnp.where(key_padding_mask, NEG_BIAS, 0.0).astype(jnp.float32)
    pad = pad.reshape(B * S)
    pad = jnp.pad(pad, (0, G * M - B * S))
    pad = pad.reshape(G, 1, M)

    def const_spec(arr):
        nd = arr.ndim
        return pl.BlockSpec(arr.shape, lambda i, nd=nd: (0,) * nd)

    kernel = functools.partial(fused_encoder_kernel, seq_len=S)
    # TODO(synk): when scaling B/S, set vmem_limit_bytes and cap BB so
    # 2 buffers x (2 in + 2 out) x M x D x 4B + weights stays under v7x's
    # 32 MiB scoped VMEM.
    src, trn = pl.pallas_call(
        kernel,
        out_shape=(jax.ShapeDtypeStruct((B * S, D), jnp.float32),
                   jax.ShapeDtypeStruct((B * S, D), jnp.float32)),
        grid=(G,),
        in_specs=[pl.BlockSpec((1, 1, M), lambda i: (i, 0, 0)),   # pad bias
                  row_spec, row_spec,                             # item, inter
                  const_spec(params["w_qkv"]), const_spec(params["w_o"]),
                  const_spec(params["w_1"]), const_spec(params["w_2"]),
                  const_spec(params["b_qkv"]), const_spec(params["b_1"]),
                  const_spec(params["vec_d"])],
        out_specs=(row_spec, row_spec),
        compiler_params=pltpu.CompilerParams(
            dimension_semantics=("parallel",)),      # both TCs on v7x
    )(pad, a, b,
      params["w_qkv"], params["w_o"], params["w_1"], params["w_2"],
      params["b_qkv"], params["b_1"], params["vec_d"])
    return src.reshape(B, S, D), trn.reshape(B, S, D)


# ---------------------------------------------------------------------------
# Parameters (deterministic, synthetic; layer-stacked)
# ---------------------------------------------------------------------------
def init_params(key):
    ks = iter(jax.random.split(key, 8))

    def nrm(shape, scale=0.05):
        return (scale * jax.random.normal(next(ks), shape)).astype(jnp.float32)

    vec = jnp.zeros((N_LAYERS, 6, D_MODEL), jnp.float32)
    vec = vec.at[:, _VEC_LN1G].set(1.0)     # LayerNorm gains = 1
    vec = vec.at[:, _VEC_LN2G].set(1.0)     # (all biases zero)

    return {
        "src_item_emb": nrm((N_ITEMS, D_MODEL), 0.02),
        "tgt_item_emb": nrm((N_ITEMS, D_MODEL), 0.02),
        "inter_emb": nrm((N_INTER, D_MODEL), 0.02),
        "w_qkv": nrm((N_LAYERS, D_MODEL, 3 * D_MODEL)),   # [Q|K|V] columns
        "w_o": nrm((N_LAYERS, D_MODEL, D_MODEL)),
        "w_1": nrm((N_LAYERS, D_MODEL, FFN_DIM)),
        "w_2": nrm((N_LAYERS, FFN_DIM, D_MODEL)),
        "b_qkv": jnp.zeros((N_LAYERS, 1, 3 * D_MODEL), jnp.float32),
        "b_1": jnp.zeros((N_LAYERS, 1, FFN_DIM), jnp.float32),
        "vec_d": vec,                                     # bo/LN1/b2/LN2 rows
    }


# ---------------------------------------------------------------------------
# Model forward (mirrors TransformerModel.forward)
# ---------------------------------------------------------------------------
def transformer_model_forward(params, src_interactions, src_items, tgt_items,
                              neg_items, mask, run_transformer=True):
    # item / interaction encoders == embedding lookups (plain-JAX glue)
    src_item_embd = params["src_item_emb"][src_items["item_ids"]]
    inter_embd = params["inter_emb"][src_interactions["interaction_ids"]]

    # Fused Pallas call: src+interaction add and (optionally) both encoder
    # layers.  Exactly like the PyTorch forward, the transformer output is
    # NOT part of the returned (src, tgt, neg) tuple; run_transformer=False
    # skips it entirely since it is discarded anyway.
    src_embd, transformer_out = fused_encoder(
        src_item_embd, inter_embd, mask, params,
        compute_transformer_out=run_transformer)

    tgt_embd = params["tgt_item_emb"][tgt_items["item_ids"]]
    neg_embd = params["tgt_item_emb"][neg_items["item_ids"]]
    return (src_embd, tgt_embd, neg_embd), transformer_out


# ---------------------------------------------------------------------------
# Pure-JAX reference (for numerical cross-check only)
# ---------------------------------------------------------------------------
def _layer_norm(x, g, b):
    mu = jnp.mean(x, axis=-1, keepdims=True)
    var = jnp.mean((x - mu) ** 2, axis=-1, keepdims=True)
    return (x - mu) * jax.lax.rsqrt(var + LN_EPS) * g + b


def reference_forward(params, item_embd, inter_embd, mask):
    high = jax.lax.Precision.HIGHEST
    B, S, D = item_embd.shape
    x = item_embd + inter_embd
    col = jax.lax.broadcasted_iota(jnp.int32, (S, S), 1)
    row = jax.lax.broadcasted_iota(jnp.int32, (S, S), 0)
    causal = jnp.where(col > row, NEG_BIAS, 0.0).astype(jnp.float32)
    pad = jnp.where(mask, NEG_BIAS, 0.0).astype(jnp.float32)[:, None, None, :]
    h = x
    for l in range(N_LAYERS):
        vec = params["vec_d"][l]
        bo, g1, be1, b2, g2, be2 = (vec[i] for i in range(6))
        qkv = (jnp.dot(h, params["w_qkv"][l], precision=high)
               + params["b_qkv"][l][0])
        q, k, v = jnp.split(qkv, 3, axis=-1)
        q = q.reshape(B, S, N_HEADS, HEAD_DIM)
        k = k.reshape(B, S, N_HEADS, HEAD_DIM)
        v = v.reshape(B, S, N_HEADS, HEAD_DIM)
        s = jnp.einsum("bqhd,bkhd->bhqk", q, k,
                       precision=high) / (HEAD_DIM ** 0.5)
        s = s + causal[None, None] + pad
        p = jax.nn.softmax(s, axis=-1)
        ctx = jnp.einsum("bhqk,bkhd->bqhd", p, v,
                         precision=high).reshape(B, S, D)
        attn = jnp.dot(ctx, params["w_o"][l], precision=high) + bo
        y = _layer_norm(h + attn, g1, be1)
        f = jnp.maximum(jnp.dot(y, params["w_1"][l], precision=high)
                        + params["b_1"][l][0], 0.0)
        f = jnp.dot(f, params["w_2"][l], precision=high) + b2
        h = _layer_norm(y + f, g2, be2)
    return x, h


# ---------------------------------------------------------------------------
if __name__ == "__main__":
    key = jax.random.PRNGKey(0)
    k_par, k_in = jax.random.split(key)
    params = init_params(k_par)

    B, S = 16, SEQ_LEN
    ks = jax.random.split(k_in, 4)
    src_items = {"item_ids": jax.random.randint(ks[0], (B, S), 0, N_ITEMS)}
    tgt_items = {"item_ids": jax.random.randint(ks[1], (B, S), 0, N_ITEMS)}
    neg_items = {"item_ids": jax.random.randint(ks[2], (B, S), 0, N_ITEMS)}
    src_interactions = {
        "interaction_ids": jax.random.randint(ks[3], (B, S), 0, N_INTER)}
    # key padding mask: True == padded (ignored keys)
    mask = jnp.zeros((B, S), dtype=bool)
    mask = mask.at[1, -2:].set(True)
    mask = mask.at[5, -3:].set(True)

    (src_embd, tgt_embd, neg_embd), trn_out = transformer_model_forward(
        params, src_interactions, src_items, tgt_items, neg_items, mask,
        run_transformer=True)
    jax.block_until_ready((src_embd, tgt_embd, neg_embd, trn_out))

    assert src_embd.shape == (B, S, D_MODEL)
    assert tgt_embd.shape == (B, S, D_MODEL)
    assert neg_embd.shape == (B, S, D_MODEL)
    assert trn_out.shape == (B, S, D_MODEL)
    assert bool(jnp.all(jnp.isfinite(src_embd)))
    assert bool(jnp.all(jnp.isfinite(trn_out)))

    # numerical cross-check against a pure-JAX reference of the same forward
    item_e = params["src_item_emb"][src_items["item_ids"]]
    inter_e = params["inter_emb"][src_interactions["interaction_ids"]]
    src_ref_, trn_ref_ = reference_forward(params, item_e, inter_e, mask)
    assert bool(jnp.allclose(src_embd, src_ref_, atol=1e-5, rtol=1e-5))
    assert bool(jnp.allclose(trn_out, trn_ref_, atol=5e-2, rtol=5e-2))

    # gated path: transformer output discarded (as in the PyTorch return)
    (src2, _, _), none_out = transformer_model_forward(
        params, src_interactions, src_items, tgt_items, neg_items, mask,
        run_transformer=False)
    jax.block_until_ready(src2)
    assert none_out is None
    assert bool(jnp.allclose(src2, src_embd, atol=1e-6, rtol=1e-6))

    print("KERNEL_OK")
</pallas_src>

<mosaic_0001>
module attributes {stable_mosaic.version = 11 : i64} {
  func.func @fused_encoder_kernel(%arg0: i32, %arg1: memref<1x1x64xf32, #tpu.memory_space<vmem>>, %arg2: memref<64x32xf32, #tpu.memory_space<vmem>>, %arg3: memref<64x32xf32, #tpu.memory_space<vmem>>, %arg4: memref<2x32x96xf32, #tpu.memory_space<vmem>>, %arg5: memref<2x32x32xf32, #tpu.memory_space<vmem>>, %arg6: memref<2x32x64xf32, #tpu.memory_space<vmem>>, %arg7: memref<2x64x32xf32, #tpu.memory_space<vmem>>, %arg8: memref<2x1x96xf32, #tpu.memory_space<vmem>>, %arg9: memref<2x1x64xf32, #tpu.memory_space<vmem>>, %arg10: memref<2x6x32xf32, #tpu.memory_space<vmem>>, %arg11: memref<64x32xf32, #tpu.memory_space<vmem>>, %arg12: memref<64x32xf32, #tpu.memory_space<vmem>>) attributes {dimension_semantics = [#tpu.dimension_semantics<parallel>], iteration_bounds = array<i64: 2>, scalar_prefetch = 0 : i64, scratch_operands = 0 : i64, tpu.core_type = #tpu.core_type<tc>, window_params = [{transform_indices = @transform_0, window_bounds = array<i64: 1, 1, 64>}, {transform_indices = @transform_1, window_bounds = array<i64: 64, 32>}, {transform_indices = @transform_2, window_bounds = array<i64: 64, 32>}, {pipeline_mode = #tpu.pipeline_mode<synchronous>, transform_indices = @transform_3, window_bounds = array<i64: 2, 32, 96>}, {pipeline_mode = #tpu.pipeline_mode<synchronous>, transform_indices = @transform_4, window_bounds = array<i64: 2, 32, 32>}, {pipeline_mode = #tpu.pipeline_mode<synchronous>, transform_indices = @transform_5, window_bounds = array<i64: 2, 32, 64>}, {pipeline_mode = #tpu.pipeline_mode<synchronous>, transform_indices = @transform_6, window_bounds = array<i64: 2, 64, 32>}, {pipeline_mode = #tpu.pipeline_mode<synchronous>, transform_indices = @transform_7, window_bounds = array<i64: 2, 1, 96>}, {pipeline_mode = #tpu.pipeline_mode<synchronous>, transform_indices = @transform_8, window_bounds = array<i64: 2, 1, 64>}, {pipeline_mode = #tpu.pipeline_mode<synchronous>, transform_indices = @transform_9, window_bounds = array<i64: 2, 6, 32>}, {transform_indices = @transform_10, window_bounds = array<i64: 64, 32>}, {transform_indices = @transform_11, window_bounds = array<i64: 64, 32>}]} {
    %c0 = arith.constant 0 : index
    %c0_0 = arith.constant 0 : index
    %0 = vector.load %arg2[%c0, %c0_0] : memref<64x32xf32, #tpu.memory_space<vmem>>, vector<64x32xf32>
    %c0_1 = arith.constant 0 : index
    %c0_2 = arith.constant 0 : index
    %1 = vector.load %arg3[%c0_1, %c0_2] : memref<64x32xf32, #tpu.memory_space<vmem>>, vector<64x32xf32>
    %2 = arith.addf %0, %1 : vector<64x32xf32>
    %c0_3 = arith.constant 0 : index
    %c0_4 = arith.constant 0 : index
    %3 = vector.load %arg11[%c0_3, %c0_4] : memref<64x32xf32, #tpu.memory_space<vmem>>, vector<64x32xf32>
    tpu.vector_store %arg11[%c0_3, %c0_4], %2 {strides = array<i32>} : memref<64x32xf32, #tpu.memory_space<vmem>>, vector<64x32xf32>,
    %4 = tpu.iota {dimensions = array<i32: 0>} : vector<64x64xi32>
    %5 = tpu.iota {dimensions = array<i32: 1>} : vector<64x64xi32>
    %c3_i32 = arith.constant 3 : i32
    %6 = vector.broadcast %c3_i32 : i32 to vector<64x64xi32>
    %7 = arith.shrui %4, %6 : vector<64x64xi32>
    %c3_i32_5 = arith.constant 3 : i32
    %8 = vector.broadcast %c3_i32_5 : i32 to vector<64x64xi32>
    %9 = arith.shrui %5, %8 : vector<64x64xi32>
    %10 = arith.cmpi sle, %5, %4 : vector<64x64xi32>
    %11 = arith.cmpi eq, %7, %9 : vector<64x64xi32>
    %12 = arith.andi %10, %11 : vector<64x64xi1>
    %cst = arith.constant 0.000000e+00 : f32
    %cst_6 = arith.constant -1.000000e+30 : f32
    %13 = vector.broadcast %cst : f32 to vector<64x64xf32>
    %14 = vector.broadcast %cst_6 : f32 to vector<64x64xf32>
    %15 = arith.select %12, %13, %14 : vector<64x64xi1>, vector<64x64xf32>
    %c0_7 = arith.constant 0 : index
    %c0_8 = arith.constant 0 : index
    %c0_9 = arith.constant 0 : index
    %16 = vector.load %arg1[%c0_7, %c0_8, %c0_9] : memref<1x1x64xf32, #tpu.memory_space<vmem>>, vector<1x1x64xf32>
    %17 = vector.shape_cast %16 : vector<1x1x64xf32> to vector<1x64xf32>
    %18 = vector.broadcast %17 : vector<1x64xf32> to vector<64x64xf32>
    %19 = arith.addf %15, %18 : vector<64x64xf32>
    %c0_10 = arith.constant 0 : index
    %c0_11 = arith.constant 0 : index
    %c0_12 = arith.constant 0 : index
    %20 = vector.load %arg4[%c0_10, %c0_11, %c0_12] : memref<2x32x96xf32, #tpu.memory_space<vmem>>, vector<1x32x96xf32>
    %21 = vector.shape_cast %20 : vector<1x32x96xf32> to vector<32x96xf32>
    %c0_13 = arith.constant 0 : index
    %c0_14 = arith.constant 0 : index
    %c0_15 = arith.constant 0 : index
    %22 = vector.load %arg5[%c0_13, %c0_14, %c0_15] : memref<2x32x32xf32, #tpu.memory_space<vmem>>, vector<1x32x32xf32>
    %23 = vector.shape_cast %22 : vector<1x32x32xf32> to vector<32x32xf32>
    %c0_16 = arith.constant 0 : index
    %c0_17 = arith.constant 0 : index
    %c0_18 = arith.constant 0 : index
    %24 = vector.load %arg6[%c0_16, %c0_17, %c0_18] : memref<2x32x64xf32, #tpu.memory_space<vmem>>, vector<1x32x64xf32>
    %25 = vector.shape_cast %24 : vector<1x32x64xf32> to vector<32x64xf32>
    %c0_19 = arith.constant 0 : index
    %c0_20 = arith.constant 0 : index
    %c0_21 = arith.constant 0 : index
    %26 = vector.load %arg7[%c0_19, %c0_20, %c0_21] : memref<2x64x32xf32, #tpu.memory_space<vmem>>, vector<1x64x32xf32>
    %27 = vector.shape_cast %26 : vector<1x64x32xf32> to vector<64x32xf32>
    %c0_22 = arith.constant 0 : index
    %c0_23 = arith.constant 0 : index
    %c0_24 = arith.constant 0 : index
    %28 = vector.load %arg8[%c0_22, %c0_23, %c0_24] : memref<2x1x96xf32, #tpu.memory_space<vmem>>, vector<1x1x96xf32>
    %29 = vector.shape_cast %28 : vector<1x1x96xf32> to vector<1x96xf32>
    %c0_25 = arith.constant 0 : index
    %c0_26 = arith.constant 0 : index
    %c0_27 = arith.constant 0 : index
    %30 = vector.load %arg9[%c0_25, %c0_26, %c0_27] : memref<2x1x64xf32, #tpu.memory_space<vmem>>, vector<1x1x64xf32>
    %31 = vector.shape_cast %30 : vector<1x1x64xf32> to vector<1x64xf32>
    %c0_28 = arith.constant 0 : index
    %c0_29 = arith.constant 0 : index
    %c0_30 = arith.constant 0 : index
    %32 = vector.load %arg10[%c0_28, %c0_29, %c0_30] : memref<2x6x32xf32, #tpu.memory_space<vmem>>, vector<1x6x32xf32>
    %33 = vector.shape_cast %32 : vector<1x6x32xf32> to vector<6x32xf32>
    %34 = vector.extract_strided_slice %33 {offsets = [0, 0], sizes = [1, 32], strides = [1, 1]} : vector<6x32xf32> to vector<1x32xf32>
    %35 = vector.extract_strided_slice %33 {offsets = [1, 0], sizes = [1, 32], strides = [1, 1]} : vector<6x32xf32> to vector<1x32xf32>
    %36 = vector.extract_strided_slice %33 {offsets = [2, 0], sizes = [1, 32], strides = [1, 1]} : vector<6x32xf32> to vector<1x32xf32>
    %37 = vector.extract_strided_slice %33 {offsets = [3, 0], sizes = [1, 32], strides = [1, 1]} : vector<6x32xf32> to vector<1x32xf32>
    %38 = vector.extract_strided_slice %33 {offsets = [4, 0], sizes = [1, 32], strides = [1, 1]} : vector<6x32xf32> to vector<1x32xf32>
    %39 = vector.extract_strided_slice %33 {offsets = [5, 0], sizes = [1, 32], strides = [1, 1]} : vector<6x32xf32> to vector<1x32xf32>
    %cst_31 = arith.constant dense<0.000000e+00> : vector<64x96xf32>
    %40 = tpu.matmul %2, %21, %cst_31 {dimension_numbers = #tpu.dot_dimension_numbers<[1], [0], [0], [1], [0, 0, 1, 1], [], []>} : vector<64x32xf32>, vector<32x96xf32>, vector<64x96xf32> -> vector<64x96xf32>
    %41 = vector.broadcast %29 : vector<1x96xf32> to vector<64x96xf32>
    %42 = arith.addf %40, %41 : vector<64x96xf32>
    %cst_32 = arith.constant 0.000000e+00 : f32
    %43 = vector.broadcast %cst_32 : f32 to vector<64x32xf32>
    %44 = vector.extract_strided_slice %42 {offsets = [0, 0], sizes = [64, 8], strides = [1, 1]} : vector<64x96xf32> to vector<64x8xf32>
    %cst_33 = arith.constant 0.353553385 : f32
    %45 = vector.broadcast %cst_33 : f32 to vector<64x8xf32>
    %46 = arith.mulf %44, %45 : vector<64x8xf32>
    %47 = vector.extract_strided_slice %42 {offsets = [0, 32], sizes = [64, 8], strides = [1, 1]} : vector<64x96xf32> to vector<64x8xf32>
    %48 = vector.extract_strided_slice %42 {offsets = [0, 64], sizes = [64, 8], strides = [1, 1]} : vector<64x96xf32> to vector<64x8xf32>
    %cst_34 = arith.constant dense<0.000000e+00> : vector<64x64xf32>
    %49 = tpu.matmul %46, %47, %cst_34 {dimension_numbers = #tpu.dot_dimension_numbers<[1], [1], [0], [0], [0, 0, 1, 0], [], []>} : vector<64x8xf32>, vector<64x8xf32>, vector<64x64xf32> -> vector<64x64xf32>
    %50 = arith.addf %49, %19 : vector<64x64xf32>
    %cst_35 = arith.constant dense<0xFF800000> : vector<64xf32>
    %51 = vector.multi_reduction <maximumf>, %50, %cst_35 [1] : vector<64x64xf32> to vector<64xf32>
    %52 = vector.shape_cast %51 : vector<64xf32> to vector<64x1xf32>
    %53 = vector.broadcast %52 : vector<64x1xf32> to vector<64x64xf32>
    %54 = arith.subf %50, %53 : vector<64x64xf32>
    %55 = math.exp %54 : vector<64x64xf32>
    %cst_36 = arith.constant dense<0.000000e+00> : vector<64xf32>
    %56 = vector.multi_reduction <add>, %55, %cst_36 [1] : vector<64x64xf32> to vector<64xf32>
    %57 = vector.shape_cast %56 : vector<64xf32> to vector<64x1xf32>
    %58 = tpu.reciprocal %57 {approx = true} : vector<64x1xf32> -> vector<64x1xf32>
    %59 = vector.broadcast %58 : vector<64x1xf32> to vector<64x64xf32>
    %60 = arith.mulf %55, %59 : vector<64x64xf32>
    %cst_37 = arith.constant dense<0.000000e+00> : vector<64x8xf32>
    %61 = tpu.matmul %60, %48, %cst_37 {dimension_numbers = #tpu.dot_dimension_numbers<[1], [0], [0], [1], [0, 0, 1, 1], [], []>} : vector<64x64xf32>, vector<64x8xf32>, vector<64x8xf32> -> vector<64x8xf32>
    %62 = vector.extract_strided_slice %23 {offsets = [0, 0], sizes = [8, 32], strides = [1, 1]} : vector<32x32xf32> to vector<8x32xf32>
    %cst_38 = arith.constant dense<0.000000e+00> : vector<64x32xf32>
    %63 = tpu.matmul %61, %62, %cst_38 {dimension_numbers = #tpu.dot_dimension_numbers<[1], [0], [0], [1], [0, 0, 1, 1], [], []>} : vector<64x8xf32>, vector<8x32xf32>, vector<64x32xf32> -> vector<64x32xf32>
    %64 = arith.addf %43, %63 : vector<64x32xf32>
    %65 = vector.extract_strided_slice %42 {offsets = [0, 8], sizes = [64, 8], strides = [1, 1]} : vector<64x96xf32> to vector<64x8xf32>
    %cst_39 = arith.constant 0.353553385 : f32
    %66 = vector.broadcast %cst_39 : f32 to vector<64x8xf32>
    %67 = arith.mulf %65, %66 : vector<64x8xf32>
    %68 = vector.extract_strided_slice %42 {offsets = [0, 40], sizes = [64, 8], strides = [1, 1]} : vector<64x96xf32> to vector<64x8xf32>
    %69 = vector.extract_strided_slice %42 {offsets = [0, 72], sizes = [64, 8], strides = [1, 1]} : vector<64x96xf32> to vector<64x8xf32>
    %cst_40 = arith.constant dense<0.000000e+00> : vector<64x64xf32>
    %70 = tpu.matmul %67, %68, %cst_40 {dimension_numbers = #tpu.dot_dimension_numbers<[1], [1], [0], [0], [0, 0, 1, 0], [], []>} : vector<64x8xf32>, vector<64x8xf32>, vector<64x64xf32> -> vector<64x64xf32>
    %71 = arith.addf %70, %19 : vector<64x64xf32>
    %cst_41 = arith.constant dense<0xFF800000> : vector<64xf32>
    %72 = vector.multi_reduction <maximumf>, %71, %cst_41 [1] : vector<64x64xf32> to vector<64xf32>
    %73 = vector.shape_cast %72 : vector<64xf32> to vector<64x1xf32>
    %74 = vector.broadcast %73 : vector<64x1xf32> to vector<64x64xf32>
    %75 = arith.subf %71, %74 : vector<64x64xf32>
    %76 = math.exp %75 : vector<64x64xf32>
    %cst_42 = arith.constant dense<0.000000e+00> : vector<64xf32>
    %77 = vector.multi_reduction <add>, %76, %cst_42 [1] : vector<64x64xf32> to vector<64xf32>
    %78 = vector.shape_cast %77 : vector<64xf32> to vector<64x1xf32>
    %79 = tpu.reciprocal %78 {approx = true} : vector<64x1xf32> -> vector<64x1xf32>
    %80 = vector.broadcast %79 : vector<64x1xf32> to vector<64x64xf32>
    %81 = arith.mulf %76, %80 : vector<64x64xf32>
    %cst_43 = arith.constant dense<0.000000e+00> : vector<64x8xf32>
    %82 = tpu.matmul %81, %69, %cst_43 {dimension_numbers = #tpu.dot_dimension_numbers<[1], [0], [0], [1], [0, 0, 1, 1], [], []>} : vector<64x64xf32>, vector<64x8xf32>, vector<64x8xf32> -> vector<64x8xf32>
    %83 = vector.extract_strided_slice %23 {offsets = [8, 0], sizes = [8, 32], strides = [1, 1]} : vector<32x32xf32> to vector<8x32xf32>
    %cst_44 = arith.constant dense<0.000000e+00> : vector<64x32xf32>
    %84 = tpu.matmul %82, %83, %cst_44 {dimension_numbers = #tpu.dot_dimension_numbers<[1], [0], [0], [1], [0, 0, 1, 1], [], []>} : vector<64x8xf32>, vector<8x32xf32>, vector<64x32xf32> -> vector<64x32xf32>
    %85 = arith.addf %64, %84 : vector<64x32xf32>
    %86 = vector.extract_strided_slice %42 {offsets = [0, 16], sizes = [64, 8], strides = [1, 1]} : vector<64x96xf32> to vector<64x8xf32>
    %cst_45 = arith.constant 0.353553385 : f32
    %87 = vector.broadcast %cst_45 : f32 to vector<64x8xf32>
    %88 = arith.mulf %86, %87 : vector<64x8xf32>
    %89 = vector.extract_strided_slice %42 {offsets = [0, 48], sizes = [64, 8], strides = [1, 1]} : vector<64x96xf32> to vector<64x8xf32>
    %90 = vector.extract_strided_slice %42 {offsets = [0, 80], sizes = [64, 8], strides = [1, 1]} : vector<64x96xf32> to vector<64x8xf32>
    %cst_46 = arith.constant dense<0.000000e+00> : vector<64x64xf32>
    %91 = tpu.matmul %88, %89, %cst_46 {dimension_numbers = #tpu.dot_dimension_numbers<[1], [1], [0], [0], [0, 0, 1, 0], [], []>} : vector<64x8xf32>, vector<64x8xf32>, vector<64x64xf32> -> vector<64x64xf32>
    %92 = arith.addf %91, %19 : vector<64x64xf32>
    %cst_47 = arith.constant dense<0xFF800000> : vector<64xf32>
    %93 = vector.multi_reduction <maximumf>, %92, %cst_47 [1] : vector<64x64xf32> to vector<64xf32>
    %94 = vector.shape_cast %93 : vector<64xf32> to vector<64x1xf32>
    %95 = vector.broadcast %94 : vector<64x1xf32> to vector<64x64xf32>
    %96 = arith.subf %92, %95 : vector<64x64xf32>
    %97 = math.exp %96 : vector<64x64xf32>
    %cst_48 = arith.constant dense<0.000000e+00> : vector<64xf32>
    %98 = vector.multi_reduction <add>, %97, %cst_48 [1] : vector<64x64xf32> to vector<64xf32>
    %99 = vector.shape_cast %98 : vector<64xf32> to vector<64x1xf32>
    %100 = tpu.reciprocal %99 {approx = true} : vector<64x1xf32> -> vector<64x1xf32>
    %101 = vector.broadcast %100 : vector<64x1xf32> to vector<64x64xf32>
    %102 = arith.mulf %97, %101 : vector<64x64xf32>
    %cst_49 = arith.constant dense<0.000000e+00> : vector<64x8xf32>
    %103 = tpu.matmul %102, %90, %cst_49 {dimension_numbers = #tpu.dot_dimension_numbers<[1], [0], [0], [1], [0, 0, 1, 1], [], []>} : vector<64x64xf32>, vector<64x8xf32>, vector<64x8xf32> -> vector<64x8xf32>
    %104 = vector.extract_strided_slice %23 {offsets = [16, 0], sizes = [8, 32], strides = [1, 1]} : vector<32x32xf32> to vector<8x32xf32>
    %cst_50 = arith.constant dense<0.000000e+00> : vector<64x32xf32>
    %105 = tpu.matmul %103, %104, %cst_50 {dimension_numbers = #tpu.dot_dimension_numbers<[1], [0], [0], [1], [0, 0, 1, 1], [], []>} : vector<64x8xf32>, vector<8x32xf32>, vector<64x32xf32> -> vector<64x32xf32>
    %106 = arith.addf %85, %105 : vector<64x32xf32>
    %107 = vector.extract_strided_slice %42 {offsets = [0, 24], sizes = [64, 8], strides = [1, 1]} : vector<64x96xf32> to vector<64x8xf32>
    %cst_51 = arith.constant 0.353553385 : f32
    %108 = vector.broadcast %cst_51 : f32 to vector<64x8xf32>
    %109 = arith.mulf %107, %108 : vector<64x8xf32>
    %110 = vector.extract_strided_slice %42 {offsets = [0, 56], sizes = [64, 8], strides = [1, 1]} : vector<64x96xf32> to vector<64x8xf32>
    %111 = vector.extract_strided_slice %42 {offsets = [0, 88], sizes = [64, 8], strides = [1, 1]} : vector<64x96xf32> to vector<64x8xf32>
    %cst_52 = arith.constant dense<0.000000e+00> : vector<64x64xf32>
    %112 = tpu.matmul %109, %110, %cst_52 {dimension_numbers = #tpu.dot_dimension_numbers<[1], [1], [0], [0], [0, 0, 1, 0], [], []>} : vector<64x8xf32>, vector<64x8xf32>, vector<64x64xf32> -> vector<64x64xf32>
    %113 = arith.addf %112, %19 : vector<64x64xf32>
    %cst_53 = arith.constant dense<0xFF800000> : vector<64xf32>
    %114 = vector.multi_reduction <maximumf>, %113, %cst_53 [1] : vector<64x64xf32> to vector<64xf32>
    %115 = vector.shape_cast %114 : vector<64xf32> to vector<64x1xf32>
    %116 = vector.broadcast %115 : vector<64x1xf32> to vector<64x64xf32>
    %117 = arith.subf %113, %116 : vector<64x64xf32>
    %118 = math.exp %117 : vector<64x64xf32>
    %cst_54 = arith.constant dense<0.000000e+00> : vector<64xf32>
    %119 = vector.multi_reduction <add>, %118, %cst_54 [1] : vector<64x64xf32> to vector<64xf32>
    %120 = vector.shape_cast %119 : vector<64xf32> to vector<64x1xf32>
    %121 = tpu.reciprocal %120 {approx = true} : vector<64x1xf32> -> vector<64x1xf32>
    %122 = vector.broadcast %121 : vector<64x1xf32> to vector<64x64xf32>
    %123 = arith.mulf %118, %122 : vector<64x64xf32>
    %cst_55 = arith.constant dense<0.000000e+00> : vector<64x8xf32>
    %124 = tpu.matmul %123, %111, %cst_55 {dimension_numbers = #tpu.dot_dimension_numbers<[1], [0], [0], [1], [0, 0, 1, 1], [], []>} : vector<64x64xf32>, vector<64x8xf32>, vector<64x8xf32> -> vector<64x8xf32>
    %125 = vector.extract_strided_slice %23 {offsets = [24, 0], sizes = [8, 32], strides = [1, 1]} : vector<32x32xf32> to vector<8x32xf32>
    %cst_56 = arith.constant dense<0.000000e+00> : vector<64x32xf32>
    %126 = tpu.matmul %124, %125, %cst_56 {dimension_numbers = #tpu.dot_dimension_numbers<[1], [0], [0], [1], [0, 0, 1, 1], [], []>} : vector<64x8xf32>, vector<8x32xf32>, vector<64x32xf32> -> vector<64x32xf32>
    %127 = arith.addf %106, %126 : vector<64x32xf32>
    %128 = vector.broadcast %34 : vector<1x32xf32> to vector<64x32xf32>
    %129 = arith.addf %127, %128 : vector<64x32xf32>
    %130 = arith.addf %2, %129 : vector<64x32xf32>
    %cst_57 = arith.constant dense<0.000000e+00> : vector<64xf32>
    %131 = vector.multi_reduction <add>, %130, %cst_57 [1] : vector<64x32xf32> to vector<64xf32>
    %132 = vector.shape_cast %131 : vector<64xf32> to vector<64x1xf32>
    %cst_58 = arith.constant 3.200000e+01 : f32
    %133 = vector.broadcast %cst_58 : f32 to vector<64x1xf32>
    %134 = arith.divf %132, %133 : vector<64x1xf32>
    %135 = vector.broadcast %134 : vector<64x1xf32> to vector<64x32xf32>
    %136 = arith.subf %130, %135 : vector<64x32xf32>
    %137 = arith.mulf %136, %136 : vector<64x32xf32>
    %cst_59 = arith.constant dense<0.000000e+00> : vector<64xf32>
    %138 = vector.multi_reduction <add>, %137, %cst_59 [1] : vector<64x32xf32> to vector<64xf32>
    %139 = vector.shape_cast %138 : vector<64xf32> to vector<64x1xf32>
    %cst_60 = arith.constant 3.200000e+01 : f32
    %140 = vector.broadcast %cst_60 : f32 to vector<64x1xf32>
    %141 = arith.divf %139, %140 : vector<64x1xf32>
    %142 = vector.broadcast %134 : vector<64x1xf32> to vector<64x32xf32>
    %143 = arith.subf %130, %142 : vector<64x32xf32>
    %cst_61 = arith.constant 9.99999974E-6 : f32
    %144 = vector.broadcast %cst_61 : f32 to vector<64x1xf32>
    %145 = arith.addf %141, %144 : vector<64x1xf32>
    %146 = math.rsqrt %145 : vector<64x1xf32>
    %147 = vector.broadcast %146 : vector<64x1xf32> to vector<64x32xf32>
    %148 = arith.mulf %143, %147 : vector<64x32xf32>
    %149 = vector.broadcast %35 : vector<1x32xf32> to vector<64x32xf32>
    %150 = arith.mulf %148, %149 : vector<64x32xf32>
    %151 = vector.broadcast %36 : vector<1x32xf32> to vector<64x32xf32>
    %152 = arith.addf %150, %151 : vector<64x32xf32>
    %cst_62 = arith.constant dense<0.000000e+00> : vector<64x64xf32>
    %153 = tpu.matmul %152, %25, %cst_62 {dimension_numbers = #tpu.dot_dimension_numbers<[1], [0], [0], [1], [0, 0, 1, 1], [], []>} : vector<64x32xf32>, vector<32x64xf32>, vector<64x64xf32> -> vector<64x64xf32>
    %154 = vector.broadcast %31 : vector<1x64xf32> to vector<64x64xf32>
    %155 = arith.addf %153, %154 : vector<64x64xf32>
    %cst_63 = arith.constant 0.000000e+00 : f32
    %156 = vector.broadcast %cst_63 : f32 to vector<64x64xf32>
    %157 = arith.maximumf %155, %156 : vector<64x64xf32>
    %cst_64 = arith.constant dense<0.000000e+00> : vector<64x32xf32>
    %158 = tpu.matmul %157, %27, %cst_64 {dimension_numbers = #tpu.dot_dimension_numbers<[1], [0], [0], [1], [0, 0, 1, 1], [], []>} : vector<64x64xf32>, vector<64x32xf32>, vector<64x32xf32> -> vector<64x32xf32>
    %159 = vector.broadcast %37 : vector<1x32xf32> to vector<64x32xf32>
    %160 = arith.addf %158, %159 : vector<64x32xf32>
    %161 = arith.addf %152, %160 : vector<64x32xf32>
    %cst_65 = arith.constant dense<0.000000e+00> : vector<64xf32>
    %162 = vector.multi_reduction <add>, %161, %cst_65 [1] : vector<64x32xf32> to vector<64xf32>
    %163 = vector.shape_cast %162 : vector<64xf32> to vector<64x1xf32>
    %cst_66 = arith.constant 3.200000e+01 : f32
    %164 = vector.broadcast %cst_66 : f32 to vector<64x1xf32>
    %165 = arith.divf %163, %164 : vector<64x1xf32>
    %166 = vector.broadcast %165 : vector<64x1xf32> to vector<64x32xf32>
    %167 = arith.subf %161, %166 : vector<64x32xf32>
    %168 = arith.mulf %167, %167 : vector<64x32xf32>
    %cst_67 = arith.constant dense<0.000000e+00> : vector<64xf32>
    %169 = vector.multi_reduction <add>, %168, %cst_67 [1] : vector<64x32xf32> to vector<64xf32>
    %170 = vector.shape_cast %169 : vector<64xf32> to vector<64x1xf32>
    %cst_68 = arith.constant 3.200000e+01 : f32
    %171 = vector.broadcast %cst_68 : f32 to vector<64x1xf32>
    %172 = arith.divf %170, %171 : vector<64x1xf32>
    %173 = vector.broadcast %165 : vector<64x1xf32> to vector<64x32xf32>
    %174 = arith.subf %161, %173 : vector<64x32xf32>
    %cst_69 = arith.constant 9.99999974E-6 : f32
    %175 = vector.broadcast %cst_69 : f32 to vector<64x1xf32>
    %176 = arith.addf %172, %175 : vector<64x1xf32>
    %177 = math.rsqrt %176 : vector<64x1xf32>
    %178 = vector.broadcast %177 : vector<64x1xf32> to vector<64x32xf32>
    %179 = arith.mulf %174, %178 : vector<64x32xf32>
    %180 = vector.broadcast %38 : vector<1x32xf32> to vector<64x32xf32>
    %181 = arith.mulf %179, %180 : vector<64x32xf32>
    %182 = vector.broadcast %39 : vector<1x32xf32> to vector<64x32xf32>
    %183 = arith.addf %181, %182 : vector<64x32xf32>
    %c1 = arith.constant 1 : index
    %c0_70 = arith.constant 0 : index
    %c0_71 = arith.constant 0 : index
    %184 = vector.load %arg4[%c1, %c0_70, %c0_71] : memref<2x32x96xf32, #tpu.memory_space<vmem>>, vector<1x32x96xf32>
    %185 = vector.shape_cast %184 : vector<1x32x96xf32> to vector<32x96xf32>
    %c1_72 = arith.constant 1 : index
    %c0_73 = arith.constant 0 : index
    %c0_74 = arith.constant 0 : index
    %186 = vector.load %arg5[%c1_72, %c0_73, %c0_74] : memref<2x32x32xf32, #tpu.memory_space<vmem>>, vector<1x32x32xf32>
    %187 = vector.shape_cast %186 : vector<1x32x32xf32> to vector<32x32xf32>
    %c1_75 = arith.constant 1 : index
    %c0_76 = arith.constant 0 : index
    %c0_77 = arith.constant 0 : index
    %188 = vector.load %arg6[%c1_75, %c0_76, %c0_77] : memref<2x32x64xf32, #tpu.memory_space<vmem>>, vector<1x32x64xf32>
    %189 = vector.shape_cast %188 : vector<1x32x64xf32> to vector<32x64xf32>
    %c1_78 = arith.constant 1 : index
    %c0_79 = arith.constant 0 : index
    %c0_80 = arith.constant 0 : index
    %190 = vector.load %arg7[%c1_78, %c0_79, %c0_80] : memref<2x64x32xf32, #tpu.memory_space<vmem>>, vector<1x64x32xf32>
    %191 = vector.shape_cast %190 : vector<1x64x32xf32> to vector<64x32xf32>
    %c1_81 = arith.constant 1 : index
    %c0_82 = arith.constant 0 : index
    %c0_83 = arith.constant 0 : index
    %192 = vector.load %arg8[%c1_81, %c0_82, %c0_83] : memref<2x1x96xf32, #tpu.memory_space<vmem>>, vector<1x1x96xf32>
    %193 = vector.shape_cast %192 : vector<1x1x96xf32> to vector<1x96xf32>
    %c1_84 = arith.constant 1 : index
    %c0_85 = arith.constant 0 : index
    %c0_86 = arith.constant 0 : index
    %194 = vector.load %arg9[%c1_84, %c0_85, %c0_86] : memref<2x1x64xf32, #tpu.memory_space<vmem>>, vector<1x1x64xf32>
    %195 = vector.shape_cast %194 : vector<1x1x64xf32> to vector<1x64xf32>
    %c1_87 = arith.constant 1 : index
    %c0_88 = arith.constant 0 : index
    %c0_89 = arith.constant 0 : index
    %196 = vector.load %arg10[%c1_87, %c0_88, %c0_89] : memref<2x6x32xf32, #tpu.memory_space<vmem>>, vector<1x6x32xf32>
    %197 = vector.shape_cast %196 : vector<1x6x32xf32> to vector<6x32xf32>
    %198 = vector.extract_strided_slice %197 {offsets = [0, 0], sizes = [1, 32], strides = [1, 1]} : vector<6x32xf32> to vector<1x32xf32>
    %199 = vector.extract_strided_slice %197 {offsets = [1, 0], sizes = [1, 32], strides = [1, 1]} : vector<6x32xf32> to vector<1x32xf32>
    %200 = vector.extract_strided_slice %197 {offsets = [2, 0], sizes = [1, 32], strides = [1, 1]} : vector<6x32xf32> to vector<1x32xf32>
    %201 = vector.extract_strided_slice %197 {offsets = [3, 0], sizes = [1, 32], strides = [1, 1]} : vector<6x32xf32> to vector<1x32xf32>
    %202 = vector.extract_strided_slice %197 {offsets = [4, 0], sizes = [1, 32], strides = [1, 1]} : vector<6x32xf32> to vector<1x32xf32>
    %203 = vector.extract_strided_slice %197 {offsets = [5, 0], sizes = [1, 32], strides = [1, 1]} : vector<6x32xf32> to vector<1x32xf32>
    %cst_90 = arith.constant dense<0.000000e+00> : vector<64x96xf32>
    %204 = tpu.matmul %183, %185, %cst_90 {dimension_numbers = #tpu.dot_dimension_numbers<[1], [0], [0], [1], [0, 0, 1, 1], [], []>} : vector<64x32xf32>, vector<32x96xf32>, vector<64x96xf32> -> vector<64x96xf32>
    %205 = vector.broadcast %193 : vector<1x96xf32> to vector<64x96xf32>
    %206 = arith.addf %204, %205 : vector<64x96xf32>
    %cst_91 = arith.constant 0.000000e+00 : f32
    %207 = vector.broadcast %cst_91 : f32 to vector<64x32xf32>
    %208 = vector.extract_strided_slice %206 {offsets = [0, 0], sizes = [64, 8], strides = [1, 1]} : vector<64x96xf32> to vector<64x8xf32>
    %cst_92 = arith.constant 0.353553385 : f32
    %209 = vector.broadcast %cst_92 : f32 to vector<64x8xf32>
    %210 = arith.mulf %208, %209 : vector<64x8xf32>
    %211 = vector.extract_strided_slice %206 {offsets = [0, 32], sizes = [64, 8], strides = [1, 1]} : vector<64x96xf32> to vector<64x8xf32>
    %212 = vector.extract_strided_slice %206 {offsets = [0, 64], sizes = [64, 8], strides = [1, 1]} : vector<64x96xf32> to vector<64x8xf32>
    %cst_93 = arith.constant dense<0.000000e+00> : vector<64x64xf32>
    %213 = tpu.matmul %210, %211, %cst_93 {dimension_numbers = #tpu.dot_dimension_numbers<[1], [1], [0], [0], [0, 0, 1, 0], [], []>} : vector<64x8xf32>, vector<64x8xf32>, vector<64x64xf32> -> vector<64x64xf32>
    %214 = arith.addf %213, %19 : vector<64x64xf32>
    %cst_94 = arith.constant dense<0xFF800000> : vector<64xf32>
    %215 = vector.multi_reduction <maximumf>, %214, %cst_94 [1] : vector<64x64xf32> to vector<64xf32>
    %216 = vector.shape_cast %215 : vector<64xf32> to vector<64x1xf32>
    %217 = vector.broadcast %216 : vector<64x1xf32> to vector<64x64xf32>
    %218 = arith.subf %214, %217 : vector<64x64xf32>
    %219 = math.exp %218 : vector<64x64xf32>
    %cst_95 = arith.constant dense<0.000000e+00> : vector<64xf32>
    %220 = vector.multi_reduction <add>, %219, %cst_95 [1] : vector<64x64xf32> to vector<64xf32>
    %221 = vector.shape_cast %220 : vector<64xf32> to vector<64x1xf32>
    %222 = tpu.reciprocal %221 {approx = true} : vector<64x1xf32> -> vector<64x1xf32>
    %223 = vector.broadcast %222 : vector<64x1xf32> to vector<64x64xf32>
    %224 = arith.mulf %219, %223 : vector<64x64xf32>
    %cst_96 = arith.constant dense<0.000000e+00> : vector<64x8xf32>
    %225 = tpu.matmul %224, %212, %cst_96 {dimension_numbers = #tpu.dot_dimension_numbers<[1], [0], [0], [1], [0, 0, 1, 1], [], []>} : vector<64x64xf32>, vector<64x8xf32>, vector<64x8xf32> -> vector<64x8xf32>
    %226 = vector.extract_strided_slice %187 {offsets = [0, 0], sizes = [8, 32], strides = [1, 1]} : vector<32x32xf32> to vector<8x32xf32>
    %cst_97 = arith.constant dense<0.000000e+00> : vector<64x32xf32>
    %227 = tpu.matmul %225, %226, %cst_97 {dimension_numbers = #tpu.dot_dimension_numbers<[1], [0], [0], [1], [0, 0, 1, 1], [], []>} : vector<64x8xf32>, vector<8x32xf32>, vector<64x32xf32> -> vector<64x32xf32>
    %228 = arith.addf %207, %227 : vector<64x32xf32>
    %229 = vector.extract_strided_slice %206 {offsets = [0, 8], sizes = [64, 8], strides = [1, 1]} : vector<64x96xf32> to vector<64x8xf32>
    %cst_98 = arith.constant 0.353553385 : f32
    %230 = vector.broadcast %cst_98 : f32 to vector<64x8xf32>
    %231 = arith.mulf %229, %230 : vector<64x8xf32>
    %232 = vector.extract_strided_slice %206 {offsets = [0, 40], sizes = [64, 8], strides = [1, 1]} : vector<64x96xf32> to vector<64x8xf32>
    %233 = vector.extract_strided_slice %206 {offsets = [0, 72], sizes = [64, 8], strides = [1, 1]} : vector<64x96xf32> to vector<64x8xf32>
    %cst_99 = arith.constant dense<0.000000e+00> : vector<64x64xf32>
    %234 = tpu.matmul %231, %232, %cst_99 {dimension_numbers = #tpu.dot_dimension_numbers<[1], [1], [0], [0], [0, 0, 1, 0], [], []>} : vector<64x8xf32>, vector<64x8xf32>, vector<64x64xf32> -> vector<64x64xf32>
    %235 = arith.addf %234, %19 : vector<64x64xf32>
    %cst_100 = arith.constant dense<0xFF800000> : vector<64xf32>
    %236 = vector.multi_reduction <maximumf>, %235, %cst_100 [1] : vector<64x64xf32> to vector<64xf32>
    %237 = vector.shape_cast %236 : vector<64xf32> to vector<64x1xf32>
    %238 = vector.broadcast %237 : vector<64x1xf32> to vector<64x64xf32>
    %239 = arith.subf %235, %238 : vector<64x64xf32>
    %240 = math.exp %239 : vector<64x64xf32>
    %cst_101 = arith.constant dense<0.000000e+00> : vector<64xf32>
    %241 = vector.multi_reduction <add>, %240, %cst_101 [1] : vector<64x64xf32> to vector<64xf32>
    %242 = vector.shape_cast %241 : vector<64xf32> to vector<64x1xf32>
    %243 = tpu.reciprocal %242 {approx = true} : vector<64x1xf32> -> vector<64x1xf32>
    %244 = vector.broadcast %243 : vector<64x1xf32> to vector<64x64xf32>
    %245 = arith.mulf %240, %244 : vector<64x64xf32>
    %cst_102 = arith.constant dense<0.000000e+00> : vector<64x8xf32>
    %246 = tpu.matmul %245, %233, %cst_102 {dimension_numbers = #tpu.dot_dimension_numbers<[1], [0], [0], [1], [0, 0, 1, 1], [], []>} : vector<64x64xf32>, vector<64x8xf32>, vector<64x8xf32> -> vector<64x8xf32>
    %247 = vector.extract_strided_slice %187 {offsets = [8, 0], sizes = [8, 32], strides = [1, 1]} : vector<32x32xf32> to vector<8x32xf32>
    %cst_103 = arith.constant dense<0.000000e+00> : vector<64x32xf32>
    %248 = tpu.matmul %246, %247, %cst_103 {dimension_numbers = #tpu.dot_dimension_numbers<[1], [0], [0], [1], [0, 0, 1, 1], [], []>} : vector<64x8xf32>, vector<8x32xf32>, vector<64x32xf32> -> vector<64x32xf32>
    %249 = arith.addf %228, %248 : vector<64x32xf32>
    %250 = vector.extract_strided_slice %206 {offsets = [0, 16], sizes = [64, 8], strides = [1, 1]} : vector<64x96xf32> to vector<64x8xf32>
    %cst_104 = arith.constant 0.353553385 : f32
    %251 = vector.broadcast %cst_104 : f32 to vector<64x8xf32>
    %252 = arith.mulf %250, %251 : vector<64x8xf32>
    %253 = vector.extract_strided_slice %206 {offsets = [0, 48], sizes = [64, 8], strides = [1, 1]} : vector<64x96xf32> to vector<64x8xf32>
    %254 = vector.extract_strided_slice %206 {offsets = [0, 80], sizes = [64, 8], strides = [1, 1]} : vector<64x96xf32> to vector<64x8xf32>
    %cst_105 = arith.constant dense<0.000000e+00> : vector<64x64xf32>
    %255 = tpu.matmul %252, %253, %cst_105 {dimension_numbers = #tpu.dot_dimension_numbers<[1], [1], [0], [0], [0, 0, 1, 0], [], []>} : vector<64x8xf32>, vector<64x8xf32>, vector<64x64xf32> -> vector<64x64xf32>
    %256 = arith.addf %255, %19 : vector<64x64xf32>
    %cst_106 = arith.constant dense<0xFF800000> : vector<64xf32>
    %257 = vector.multi_reduction <maximumf>, %256, %cst_106 [1] : vector<64x64xf32> to vector<64xf32>
    %258 = vector.shape_cast %257 : vector<64xf32> to vector<64x1xf32>
    %259 = vector.broadcast %258 : vector<64x1xf32> to vector<64x64xf32>
    %260 = arith.subf %256, %259 : vector<64x64xf32>
    %261 = math.exp %260 : vector<64x64xf32>
    %cst_107 = arith.constant dense<0.000000e+00> : vector<64xf32>
    %262 = vector.multi_reduction <add>, %261, %cst_107 [1] : vector<64x64xf32> to vector<64xf32>
    %263 = vector.shape_cast %262 : vector<64xf32> to vector<64x1xf32>
    %264 = tpu.reciprocal %263 {approx = true} : vector<64x1xf32> -> vector<64x1xf32>
    %265 = vector.broadcast %264 : vector<64x1xf32> to vector<64x64xf32>
    %266 = arith.mulf %261, %265 : vector<64x64xf32>
    %cst_108 = arith.constant dense<0.000000e+00> : vector<64x8xf32>
    %267 = tpu.matmul %266, %254, %cst_108 {dimension_numbers = #tpu.dot_dimension_numbers<[1], [0], [0], [1], [0, 0, 1, 1], [], []>} : vector<64x64xf32>, vector<64x8xf32>, vector<64x8xf32> -> vector<64x8xf32>
    %268 = vector.extract_strided_slice %187 {offsets = [16, 0], sizes = [8, 32], strides = [1, 1]} : vector<32x32xf32> to vector<8x32xf32>
    %cst_109 = arith.constant dense<0.000000e+00> : vector<64x32xf32>
    %269 = tpu.matmul %267, %268, %cst_109 {dimension_numbers = #tpu.dot_dimension_numbers<[1], [0], [0], [1], [0, 0, 1, 1], [], []>} : vector<64x8xf32>, vector<8x32xf32>, vector<64x32xf32> -> vector<64x32xf32>
    %270 = arith.addf %249, %269 : vector<64x32xf32>
    %271 = vector.extract_strided_slice %206 {offsets = [0, 24], sizes = [64, 8], strides = [1, 1]} : vector<64x96xf32> to vector<64x8xf32>
    %cst_110 = arith.constant 0.353553385 : f32
    %272 = vector.broadcast %cst_110 : f32 to vector<64x8xf32>
    %273 = arith.mulf %271, %272 : vector<64x8xf32>
    %274 = vector.extract_strided_slice %206 {offsets = [0, 56], sizes = [64, 8], strides = [1, 1]} : vector<64x96xf32> to vector<64x8xf32>
    %275 = vector.extract_strided_slice %206 {offsets = [0, 88], sizes = [64, 8], strides = [1, 1]} : vector<64x96xf32> to vector<64x8xf32>
    %cst_111 = arith.constant dense<0.000000e+00> : vector<64x64xf32>
    %276 = tpu.matmul %273, %274, %cst_111 {dimension_numbers = #tpu.dot_dimension_numbers<[1], [1], [0], [0], [0, 0, 1, 0], [], []>} : vector<64x8xf32>, vector<64x8xf32>, vector<64x64xf32> -> vector<64x64xf32>
    %277 = arith.addf %276, %19 : vector<64x64xf32>
    %cst_112 = arith.constant dense<0xFF800000> : vector<64xf32>
    %278 = vector.multi_reduction <maximumf>, %277, %cst_112 [1] : vector<64x64xf32> to vector<64xf32>
    %279 = vector.shape_cast %278 : vector<64xf32> to vector<64x1xf32>
    %280 = vector.broadcast %279 : vector<64x1xf32> to vector<64x64xf32>
    %281 = arith.subf %277, %280 : vector<64x64xf32>
    %282 = math.exp %281 : vector<64x64xf32>
    %cst_113 = arith.constant dense<0.000000e+00> : vector<64xf32>
    %283 = vector.multi_reduction <add>, %282, %cst_113 [1] : vector<64x64xf32> to vector<64xf32>
    %284 = vector.shape_cast %283 : vector<64xf32> to vector<64x1xf32>
    %285 = tpu.reciprocal %284 {approx = true} : vector<64x1xf32> -> vector<64x1xf32>
    %286 = vector.broadcast %285 : vector<64x1xf32> to vector<64x64xf32>
    %287 = arith.mulf %282, %286 : vector<64x64xf32>
    %cst_114 = arith.constant dense<0.000000e+00> : vector<64x8xf32>
    %288 = tpu.matmul %287, %275, %cst_114 {dimension_numbers = #tpu.dot_dimension_numbers<[1], [0], [0], [1], [0, 0, 1, 1], [], []>} : vector<64x64xf32>, vector<64x8xf32>, vector<64x8xf32> -> vector<64x8xf32>
    %289 = vector.extract_strided_slice %187 {offsets = [24, 0], sizes = [8, 32], strides = [1, 1]} : vector<32x32xf32> to vector<8x32xf32>
    %cst_115 = arith.constant dense<0.000000e+00> : vector<64x32xf32>
    %290 = tpu.matmul %288, %289, %cst_115 {dimension_numbers = #tpu.dot_dimension_numbers<[1], [0], [0], [1], [0, 0, 1, 1], [], []>} : vector<64x8xf32>, vector<8x32xf32>, vector<64x32xf32> -> vector<64x32xf32>
    %291 = arith.addf %270, %290 : vector<64x32xf32>
    %292 = vector.broadcast %198 : vector<1x32xf32> to vector<64x32xf32>
    %293 = arith.addf %291, %292 : vector<64x32xf32>
    %294 = arith.addf %183, %293 : vector<64x32xf32>
    %cst_116 = arith.constant dense<0.000000e+00> : vector<64xf32>
    %295 = vector.multi_reduction <add>, %294, %cst_116 [1] : vector<64x32xf32> to vector<64xf32>
    %296 = vector.shape_cast %295 : vector<64xf32> to vector<64x1xf32>
    %cst_117 = arith.constant 3.200000e+01 : f32
    %297 = vector.broadcast %cst_117 : f32 to vector<64x1xf32>
    %298 = arith.divf %296, %297 : vector<64x1xf32>
    %299 = vector.broadcast %298 : vector<64x1xf32> to vector<64x32xf32>
    %300 = arith.subf %294, %299 : vector<64x32xf32>
    %301 = arith.mulf %300, %300 : vector<64x32xf32>
    %cst_118 = arith.constant dense<0.000000e+00> : vector<64xf32>
    %302 = vector.multi_reduction <add>, %301, %cst_118 [1] : vector<64x32xf32> to vector<64xf32>
    %303 = vector.shape_cast %302 : vector<64xf32> to vector<64x1xf32>
    %cst_119 = arith.constant 3.200000e+01 : f32
    %304 = vector.broadcast %cst_119 : f32 to vector<64x1xf32>
    %305 = arith.divf %303, %304 : vector<64x1xf32>
    %306 = vector.broadcast %298 : vector<64x1xf32> to vector<64x32xf32>
    %307 = arith.subf %294, %306 : vector<64x32xf32>
    %cst_120 = arith.constant 9.99999974E-6 : f32
    %308 = vector.broadcast %cst_120 : f32 to vector<64x1xf32>
    %309 = arith.addf %305, %308 : vector<64x1xf32>
    %310 = math.rsqrt %309 : vector<64x1xf32>
    %311 = vector.broadcast %310 : vector<64x1xf32> to vector<64x32xf32>
    %312 = arith.mulf %307, %311 : vector<64x32xf32>
    %313 = vector.broadcast %199 : vector<1x32xf32> to vector<64x32xf32>
    %314 = arith.mulf %312, %313 : vector<64x32xf32>
    %315 = vector.broadcast %200 : vector<1x32xf32> to vector<64x32xf32>
    %316 = arith.addf %314, %315 : vector<64x32xf32>
    %cst_121 = arith.constant dense<0.000000e+00> : vector<64x64xf32>
    %317 = tpu.matmul %316, %189, %cst_121 {dimension_numbers = #tpu.dot_dimension_numbers<[1], [0], [0], [1], [0, 0, 1, 1], [], []>} : vector<64x32xf32>, vector<32x64xf32>, vector<64x64xf32> -> vector<64x64xf32>
    %318 = vector.broadcast %195 : vector<1x64xf32> to vector<64x64xf32>
    %319 = arith.addf %317, %318 : vector<64x64xf32>
    %cst_122 = arith.constant 0.000000e+00 : f32
    %320 = vector.broadcast %cst_122 : f32 to vector<64x64xf32>
    %321 = arith.maximumf %319, %320 : vector<64x64xf32>
    %cst_123 = arith.constant dense<0.000000e+00> : vector<64x32xf32>
    %322 = tpu.matmul %321, %191, %cst_123 {dimension_numbers = #tpu.dot_dimension_numbers<[1], [0], [0], [1], [0, 0, 1, 1], [], []>} : vector<64x64xf32>, vector<64x32xf32>, vector<64x32xf32> -> vector<64x32xf32>
    %323 = vector.broadcast %201 : vector<1x32xf32> to vector<64x32xf32>
    %324 = arith.addf %322, %323 : vector<64x32xf32>
    %325 = arith.addf %316, %324 : vector<64x32xf32>
    %cst_124 = arith.constant dense<0.000000e+00> : vector<64xf32>
    %326 = vector.multi_reduction <add>, %325, %cst_124 [1] : vector<64x32xf32> to vector<64xf32>
    %327 = vector.shape_cast %326 : vector<64xf32> to vector<64x1xf32>
    %cst_125 = arith.constant 3.200000e+01 : f32
    %328 = vector.broadcast %cst_125 : f32 to vector<64x1xf32>
    %329 = arith.divf %327, %328 : vector<64x1xf32>
    %330 = vector.broadcast %329 : vector<64x1xf32> to vector<64x32xf32>
    %331 = arith.subf %325, %330 : vector<64x32xf32>
    %332 = arith.mulf %331, %331 : vector<64x32xf32>
    %cst_126 = arith.constant dense<0.000000e+00> : vector<64xf32>
    %333 = vector.multi_reduction <add>, %332, %cst_126 [1] : vector<64x32xf32> to vector<64xf32>
    %334 = vector.shape_cast %333 : vector<64xf32> to vector<64x1xf32>
    %cst_127 = arith.constant 3.200000e+01 : f32
    %335 = vector.broadcast %cst_127 : f32 to vector<64x1xf32>
    %336 = arith.divf %334, %335 : vector<64x1xf32>
    %337 = vector.broadcast %329 : vector<64x1xf32> to vector<64x32xf32>
    %338 = arith.subf %325, %337 : vector<64x32xf32>
    %cst_128 = arith.constant 9.99999974E-6 : f32
    %339 = vector.broadcast %cst_128 : f32 to vector<64x1xf32>
    %340 = arith.addf %336, %339 : vector<64x1xf32>
    %341 = math.rsqrt %340 : vector<64x1xf32>
    %342 = vector.broadcast %341 : vector<64x1xf32> to vector<64x32xf32>
    %343 = arith.mulf %338, %342 : vector<64x32xf32>
    %344 = vector.broadcast %202 : vector<1x32xf32> to vector<64x32xf32>
    %345 = arith.mulf %343, %344 : vector<64x32xf32>
    %346 = vector.broadcast %203 : vector<1x32xf32> to vector<64x32xf32>
    %347 = arith.addf %345, %346 : vector<64x32xf32>
    %c0_129 = arith.constant 0 : index
    %c0_130 = arith.constant 0 : index
    %348 = vector.load %arg12[%c0_129, %c0_130] : memref<64x32xf32, #tpu.memory_space<vmem>>, vector<64x32xf32>
    tpu.vector_store %arg12[%c0_129, %c0_130], %347 {strides = array<i32>} : memref<64x32xf32, #tpu.memory_space<vmem>>, vector<64x32xf32>,
    return
  }
  func.func @transform_0(%arg0: i32) -> (i32, i32, i32) {
    %c0_i32 = arith.constant 0 : i32
    %c0_i32_0 = arith.constant 0 : i32
    %c0_i32_1 = arith.constant 0 : i32
    return %arg0, %c0_i32, %c0_i32_0 : i32, i32, i32
  }
  func.func @transform_1(%arg0: i32) -> (i32, i32) {
    %c0_i32 = arith.constant 0 : i32
    %c0_i32_0 = arith.constant 0 : i32
    return %arg0, %c0_i32 : i32, i32
  }
  func.func @transform_2(%arg0: i32) -> (i32, i32) {
    %c0_i32 = arith.constant 0 : i32
    %c0_i32_0 = arith.constant 0 : i32
    return %arg0, %c0_i32 : i32, i32
  }
  func.func @transform_3(%arg0: i32) -> (i32, i32, i32) {
    %c0_i32 = arith.constant 0 : i32
    %c0_i32_0 = arith.constant 0 : i32
    %c0_i32_1 = arith.constant 0 : i32
    %c0_i32_2 = arith.constant 0 : i32
    return %c0_i32, %c0_i32_0, %c0_i32_1 : i32, i32, i32
  }
  func.func @transform_4(%arg0: i32) -> (i32, i32, i32) {
    %c0_i32 = arith.constant 0 : i32
    %c0_i32_0 = arith.constant 0 : i32
    %c0_i32_1 = arith.constant 0 : i32
    %c0_i32_2 = arith.constant 0 : i32
    return %c0_i32, %c0_i32_0, %c0_i32_1 : i32, i32, i32
  }
  func.func @transform_5(%arg0: i32) -> (i32, i32, i32) {
    %c0_i32 = arith.constant 0 : i32
    %c0_i32_0 = arith.constant 0 : i32
    %c0_i32_1 = arith.constant 0 : i32
    %c0_i32_2 = arith.constant 0 : i32
    return %c0_i32, %c0_i32_0, %c0_i32_1 : i32, i32, i32
  }
  func.func @transform_6(%arg0: i32) -> (i32, i32, i32) {
    %c0_i32 = arith.constant 0 : i32
    %c0_i32_0 = arith.constant 0 : i32
    %c0_i32_1 = arith.constant 0 : i32
    %c0_i32_2 = arith.constant 0 : i32
    return %c0_i32, %c0_i32_0, %c0_i32_1 : i32, i32, i32
  }
  func.func @transform_7(%arg0: i32) -> (i32, i32, i32) {
    %c0_i32 = arith.constant 0 : i32
    %c0_i32_0 = arith.constant 0 : i32
    %c0_i32_1 = arith.constant 0 : i32
    %c0_i32_2 = arith.constant 0 : i32
    return %c0_i32, %c0_i32_0, %c0_i32_1 : i32, i32, i32
  }
  func.func @transform_8(%arg0: i32) -> (i32, i32, i32) {
    %c0_i32 = arith.constant 0 : i32
    %c0_i32_0 = arith.constant 0 : i32
    %c0_i32_1 = arith.constant 0 : i32
    %c0_i32_2 = arith.constant 0 : i32
    return %c0_i32, %c0_i32_0, %c0_i32_1 : i32, i32, i32
  }
  func.func @transform_9(%arg0: i32) -> (i32, i32, i32) {
    %c0_i32 = arith.constant 0 : i32
    %c0_i32_0 = arith.constant 0 : i32
    %c0_i32_1 = arith.constant 0 : i32
    %c0_i32_2 = arith.constant 0 : i32
    return %c0_i32, %c0_i32_0, %c0_i32_1 : i32, i32, i32
  }
  func.func @transform_10(%arg0: i32) -> (i32, i32) {
    %c0_i32 = arith.constant 0 : i32
    %c0_i32_0 = arith.constant 0 : i32
    return %arg0, %c0_i32 : i32, i32
  }
  func.func @transform_11(%arg0: i32) -> (i32, i32) {
    %c0_i32 = arith.constant 0 : i32
    %c0_i32_0 = arith.constant 0 : i32
    return %arg0, %c0_i32 : i32, i32
  }
}

</mosaic_0001>

<llo_original>
// kernel: tpu_custom_call.1
$region0: #{tpu_custom_call.1}
  #allocation0 [shape = 'u32[]', space=smem, size = 0x4, offset = 0x4, fixed_abs, tag = 'smem constant byte address 0x4 - core index']
  #allocation1 [shape = 'u32[72,128]{1,0:T(1,128)}', space=vmem, size = 0x9000, scoped, tag = 'internal scratch']
  %s0 = inlined_call_operand.vmem [shape: f32[2,1,64], index: 0, kind: input, shape index: {}]
  %s1 = inlined_call_operand.vmem [shape: f32[128,32], index: 1, kind: input, shape index: {}]
  %s2 = inlined_call_operand.vmem [shape: f32[128,32], index: 2, kind: input, shape index: {}]
  %s3 = inlined_call_operand.vmem [shape: f32[2,32,96], index: 3, kind: input, shape index: {}]
  %s4 = inlined_call_operand.vmem [shape: f32[2,32,32], index: 4, kind: input, shape index: {}]
  %s5 = inlined_call_operand.vmem [shape: f32[2,32,64], index: 5, kind: input, shape index: {}]
  %s6 = inlined_call_operand.vmem [shape: f32[2,64,32], index: 6, kind: input, shape index: {}]
  %s7 = inlined_call_operand.vmem [shape: f32[2,1,96], index: 7, kind: input, shape index: {}]
  %s8 = inlined_call_operand.vmem [shape: f32[2,1,64], index: 8, kind: input, shape index: {}]
  %s9 = inlined_call_operand.vmem [shape: f32[2,6,32], index: 9, kind: input, shape index: {}]
  %s10 = inlined_call_operand.vmem [shape: f32[128,32], index: 10, kind: output, shape index: {0}]
  %s11 = inlined_call_operand.vmem [shape: f32[128,32], index: 11, kind: output, shape index: {1}]
  %12 = xla_tuple %s10, %s11
  %s13 = sld [smem:[#allocation0]]
  $region81: #{tpu_custom_call.1} parent=0
    _
  %s15 = ssub.s32 1, %s13
  %s16 = scalar_select 0, %s15, %s13
  loop: start=0, step=1, limit=4
  $region2: #{tpu_custom_call.1} parent=0 // loop_pre_header
    _
  $region3: #{tpu_custom_call.1} parent=0 // loop_header
    %s18 = sphi 0, %s22
    %p19 = scmp.ge.s32.totalorder %s18, 4
    %s28 = sphi 0, %s30
    %s31 = sphi 0, %s28
    %s32 = sphi 0, %s31
    %s48 = sphi 0, %s32
    %s54 = sphi 0, %s56
    %s57 = sphi 0, %s54
    %s58 = sphi 0, %s57
    %s74 = sphi 0, %s58
    %s80 = sphi 0, %s82
    %s83 = sphi 0, %s80
    %s84 = sphi 0, %s83
    %s100 = sphi 0, %s84
    %s104 = sphi 0, %s104
    %s106 = sphi 0, %s104
    %s107 = sphi 0, %s106
    %s121 = sphi 0, %s107
    %s125 = sphi 0, %s125
    %s127 = sphi 0, %s125
    %s128 = sphi 0, %s127
    %s142 = sphi 0, %s128
    %s146 = sphi 0, %s146
    %s148 = sphi 0, %s146
    %s149 = sphi 0, %s148
    %s163 = sphi 0, %s149
    %s167 = sphi 0, %s167
    %s169 = sphi 0, %s167
    %s170 = sphi 0, %s169
    %s184 = sphi 0, %s170
    %s188 = sphi 0, %s188
    %s190 = sphi 0, %s188
    %s191 = sphi 0, %s190
    %s205 = sphi 0, %s191
    %s209 = sphi 0, %s209
    %s211 = sphi 0, %s209
    %s212 = sphi 0, %s211
    %s226 = sphi 0, %s212
    %s230 = sphi 0, %s230
    %s232 = sphi 0, %s230
    %s233 = sphi 0, %s232
    %s247 = sphi 0, %s233
    %s253 = sphi 0, %s255
    %s256 = sphi 0, %s253
    %s257 = sphi 0, %s256
    %s273 = sphi 0, %s257
    %s279 = sphi 0, %s281
    %s282 = sphi 0, %s279
    %s283 = sphi 0, %s282
    %s299 = sphi 0, %s283
  $region4: #{tpu_custom_call.1} parent=0 // loop_header_branch
    %21 = sbr.rel (%p19) target = $region8
  $region5: #{tpu_custom_call.1} parent=0 // loop_body
    %s23 = ssub.s32 %s18, 1
    %s24 = ssub.s32 %s18, 2
    %s25 = sadd.s32 %s18, 1
    %s26 = ssub.s32 %s18, %s25
    %p27 = scmp.eq.s32.totalorder %s26, 0
    %s29 = sadd.s32 %s28, 1
    %s30 = scalar_select %p27, %s28, %s29
    %p33 = pneg %p27
    %p34 = scmp.eq.s32.totalorder %s18, 1
    %p35 = por %p33, %p34
    %p36 = scmp.ne.s32.totalorder %s28, %s31
    %p37 = scmp.eq.s32.totalorder %s18, 0
    %p38 = por %p36, %p37
    %p39 = scmp.ne.s32.totalorder %s28, %s31
    %p40 = scmp.eq.s32.totalorder %s23, 1
    %p41 = por %p39, %p40
    %p42 = scmp.ne.s32.totalorder %s31, %s32
    %p43 = scmp.eq.s32.totalorder %s23, 0
    %p44 = por %p42, %p43
    %p45 = scmp.ne.s32.totalorder %s31, %s32
    %p46 = scmp.eq.s32.totalorder %s24, 1
    %p47 = por %p45, %p46
    %p49 = scmp.ne.s32.totalorder %s32, %s48
    %p50 = scmp.eq.s32.totalorder %s24, 0
    %p51 = por %p49, %p50
    %s52 = ssub.s32 %s18, %s25
    %p53 = scmp.eq.s32.totalorder %s52, 0
    %s55 = sadd.s32 %s54, 1
    %s56 = scalar_select %p53, %s54, %s55
    %p59 = pneg %p53
    %p60 = scmp.eq.s32.totalorder %s18, 1
    %p61 = por %p59, %p60
    %p62 = scmp.ne.s32.totalorder %s54, %s57
    %p63 = scmp.eq.s32.totalorder %s18, 0
    %p64 = por %p62, %p63
    %p65 = scmp.ne.s32.totalorder %s54, %s57
    %p66 = scmp.eq.s32.totalorder %s23, 1
    %p67 = por %p65, %p66
    %p68 = scmp.ne.s32.totalorder %s57, %s58
    %p69 = scmp.eq.s32.totalorder %s23, 0
    %p70 = por %p68, %p69
    %p71 = scmp.ne.s32.totalorder %s57, %s58
    %p72 = scmp.eq.s32.totalorder %s24, 1
    %p73 = por %p71, %p72
    %p75 = scmp.ne.s32.totalorder %s58, %s74
    %p76 = scmp.eq.s32.totalorder %s24, 0
    %p77 = por %p75, %p76
    %s78 = ssub.s32 %s18, %s25
    %p79 = scmp.eq.s32.totalorder %s78, 0
    %s81 = sadd.s32 %s80, 1
    %s82 = scalar_select %p79, %s80, %s81
    %p85 = pneg %p79
    %p86 = scmp.eq.s32.totalorder %s18, 1
    %p87 = por %p85, %p86
    %p88 = scmp.ne.s32.totalorder %s80, %s83
    %p89 = scmp.eq.s32.totalorder %s18, 0
    %p90 = por %p88, %p89
    %p91 = scmp.ne.s32.totalorder %s80, %s83
    %p92 = scmp.eq.s32.totalorder %s23, 1
    %p93 = por %p91, %p92
    %p94 = scmp.ne.s32.totalorder %s83, %s84
    %p95 = scmp.eq.s32.totalorder %s23, 0
    %p96 = por %p94, %p95
    %p97 = scmp.ne.s32.totalorder %s83, %s84
    %p98 = scmp.eq.s32.totalorder %s24, 1
    %p99 = por %p97, %p98
    %p101 = scmp.ne.s32.totalorder %s84, %s100
    %p102 = scmp.eq.s32.totalorder %s24, 0
    %p103 = por %p101, %p102
    %s105 = sadd.s32 %s104, 1
    %p108 = scmp.eq.s32.totalorder %s18, 1
    %p109 = scmp.ne.s32.totalorder %s104, %s106
    %p110 = scmp.eq.s32.totalorder %s18, 0
    %p111 = por %p109, %p110
    %p112 = scmp.ne.s32.totalorder %s104, %s106
    %p113 = scmp.eq.s32.totalorder %s23, 1
    %p114 = por %p112, %p113
    %p115 = scmp.ne.s32.totalorder %s106, %s107
    %p116 = scmp.eq.s32.totalorder %s23, 0
    %p117 = por %p115, %p116
    %p118 = scmp.ne.s32.totalorder %s106, %s107
    %p119 = scmp.eq.s32.totalorder %s24, 1
    %p120 = por %p118, %p119
    %p122 = scmp.ne.s32.totalorder %s107, %s121
    %p123 = scmp.eq.s32.totalorder %s24, 0
    %p124 = por %p122, %p123
    %s126 = sadd.s32 %s125, 1
    %p129 = scmp.eq.s32.totalorder %s18, 1
    %p130 = scmp.ne.s32.totalorder %s125, %s127
    %p131 = scmp.eq.s32.totalorder %s18, 0
    %p132 = por %p130, %p131
    %p133 = scmp.ne.s32.totalorder %s125, %s127
    %p134 = scmp.eq.s32.totalorder %s23, 1
    %p135 = por %p133, %p134
    %p136 = scmp.ne.s32.totalorder %s127, %s128
    %p137 = scmp.eq.s32.totalorder %s23, 0
    %p138 = por %p136, %p137
    %p139 = scmp.ne.s32.totalorder %s127, %s128
    %p140 = scmp.eq.s32.totalorder %s24, 1
    %p141 = por %p139, %p140
    %p143 = scmp.ne.s32.totalorder %s128, %s142
    %p144 = scmp.eq.s32.totalorder %s24, 0
    %p145 = por %p143, %p144
    %s147 = sadd.s32 %s146, 1
    %p150 = scmp.eq.s32.totalorder %s18, 1
    %p151 = scmp.ne.s32.totalorder %s146, %s148
    %p152 = scmp.eq.s32.totalorder %s18, 0
    %p153 = por %p151, %p152
    %p154 = scmp.ne.s32.totalorder %s146, %s148
    %p155 = scmp.eq.s32.totalorder %s23, 1
    %p156 = por %p154, %p155
    %p157 = scmp.ne.s32.totalorder %s148, %s149
    %p158 = scmp.eq.s32.totalorder %s23, 0
    %p159 = por %p157, %p158
    %p160 = scmp.ne.s32.totalorder %s148, %s149
    %p161 = scmp.eq.s32.totalorder %s24, 1
    %p162 = por %p160, %p161
    %p164 = scmp.ne.s32.totalorder %s149, %s163
    %p165 = scmp.eq.s32.totalorder %s24, 0
    %p166 = por %p164, %p165
    %s168 = sadd.s32 %s167, 1
    %p171 = scmp.eq.s32.totalorder %s18, 1
    %p172 = scmp.ne.s32.totalorder %s167, %s169
    %p173 = scmp.eq.s32.totalorder %s18, 0
    %p174 = por %p172, %p173
    %p175 = scmp.ne.s32.totalorder %s167, %s169
    %p176 = scmp.eq.s32.totalorder %s23, 1
    %p177 = por %p175, %p176
    %p178 = scmp.ne.s32.totalorder %s169, %s170
    %p179 = scmp.eq.s32.totalorder %s23, 0
    %p180 = por %p178, %p179
    %p181 = scmp.ne.s32.totalorder %s169, %s170
    %p182 = scmp.eq.s32.totalorder %s24, 1
    %p183 = por %p181, %p182
    %p185 = scmp.ne.s32.totalorder %s170, %s184
    %p186 = scmp.eq.s32.totalorder %s24, 0
    %p187 = por %p185, %p186
    %s189 = sadd.s32 %s188, 1
    %p192 = scmp.eq.s32.totalorder %s18, 1
    %p193 = scmp.ne.s32.totalorder %s188, %s190
    %p194 = scmp.eq.s32.totalorder %s18, 0
    %p195 = por %p193, %p194
    %p196 = scmp.ne.s32.totalorder %s188, %s190
    %p197 = scmp.eq.s32.totalorder %s23, 1
    %p198 = por %p196, %p197
    %p199 = scmp.ne.s32.totalorder %s190, %s191
    %p200 = scmp.eq.s32.totalorder %s23, 0
    %p201 = por %p199, %p200
    %p202 = scmp.ne.s32.totalorder %s190, %s191
    %p203 = scmp.eq.s32.totalorder %s24, 1
    %p204 = por %p202, %p203
    %p206 = scmp.ne.s32.totalorder %s191, %s205
    %p207 = scmp.eq.s32.totalorder %s24, 0
    %p208 = por %p206, %p207
    %s210 = sadd.s32 %s209, 1
    %p213 = scmp.eq.s32.totalorder %s18, 1
    %p214 = scmp.ne.s32.totalorder %s209, %s211
    %p215 = scmp.eq.s32.totalorder %s18, 0
    %p216 = por %p214, %p215
    %p217 = scmp.ne.s32.totalorder %s209, %s211
    %p218 = scmp.eq.s32.totalorder %s23, 1
    %p219 = por %p217, %p218
    %p220 = scmp.ne.s32.totalorder %s211, %s212
    %p221 = scmp.eq.s32.totalorder %s23, 0
    %p222 = por %p220, %p221
    %p223 = scmp.ne.s32.totalorder %s211, %s212
    %p224 = scmp.eq.s32.totalorder %s24, 1
    %p225 = por %p223, %p224
    %p227 = scmp.ne.s32.totalorder %s212, %s226
    %p228 = scmp.eq.s32.totalorder %s24, 0
    %p229 = por %p227, %p228
    %s231 = sadd.s32 %s230, 1
    %p234 = scmp.eq.s32.totalorder %s18, 1
    %p235 = scmp.ne.s32.totalorder %s230, %s232
    %p236 = scmp.eq.s32.totalorder %s18, 0
    %p237 = por %p235, %p236
    %p238 = scmp.ne.s32.totalorder %s230, %s232
    %p239 = scmp.eq.s32.totalorder %s23, 1
    %p240 = por %p238, %p239
    %p241 = scmp.ne.s32.totalorder %s232, %s233
    %p242 = scmp.eq.s32.totalorder %s23, 0
    %p243 = por %p241, %p242
    %p244 = scmp.ne.s32.totalorder %s232, %s233
    %p245 = scmp.eq.s32.totalorder %s24, 1
    %p246 = por %p244, %p245
    %p248 = scmp.ne.s32.totalorder %s233, %s247
    %p249 = scmp.eq.s32.totalorder %s24, 0
    %p250 = por %p248, %p249
    %s251 = ssub.s32 %s18, %s25
    %p252 = scmp.eq.s32.totalorder %s251, 0
    %s254 = sadd.s32 %s253, 1
    %s255 = scalar_select %p252, %s253, %s254
    %p258 = pneg %p252
    %p259 = scmp.eq.s32.totalorder %s18, 1
    %p260 = por %p258, %p259
    %p261 = scmp.ne.s32.totalorder %s253, %s256
    %p262 = scmp.eq.s32.totalorder %s18, 0
    %p263 = por %p261, %p262
    %p264 = scmp.ne.s32.totalorder %s253, %s256
    %p265 = scmp.eq.s32.totalorder %s23, 1
    %p266 = por %p264, %p265
    %p267 = scmp.ne.s32.totalorder %s256, %s257
    %p268 = scmp.eq.s32.totalorder %s23, 0
    %p269 = por %p267, %p268
    %p270 = scmp.ne.s32.totalorder %s256, %s257
    %p271 = scmp.eq.s32.totalorder %s24, 1
    %p272 = por %p270, %p271
    %p274 = scmp.ne.s32.totalorder %s257, %s273
    %p275 = scmp.eq.s32.totalorder %s24, 0
    %p276 = por %p274, %p275
    %s277 = ssub.s32 %s18, %s25
    %p278 = scmp.eq.s32.totalorder %s277, 0
    %s280 = sadd.s32 %s279, 1
    %s281 = scalar_select %p278, %s279, %s280
    %p284 = pneg %p278
    %p285 = scmp.eq.s32.totalorder %s18, 1
    %p286 = por %p284, %p285
    %p287 = scmp.ne.s32.totalorder %s279, %s282
    %p288 = scmp.eq.s32.totalorder %s18, 0
    %p289 = por %p287, %p288
    %p290 = scmp.ne.s32.totalorder %s279, %s282
    %p291 = scmp.eq.s32.totalorder %s23, 1
    %p292 = por %p290, %p291
    %p293 = scmp.ne.s32.totalorder %s282, %s283
    %p294 = scmp.eq.s32.totalorder %s23, 0
    %p295 = por %p293, %p294
    %p296 = scmp.ne.s32.totalorder %s282, %s283
    %p297 = scmp.eq.s32.totalorder %s24, 1
    %p298 = por %p296, %p297
    %p300 = scmp.ne.s32.totalorder %s283, %s299
    %p301 = scmp.eq.s32.totalorder %s24, 0
    %p302 = por %p300, %p301
    %p303 = scmp.le.s32.totalorder 1, %s18
    %p304 = scmp.lt.s32.totalorder %s18, 3
    %p305 = pnand %p303, %p304
    %p306 = pneg %p305
    // Predicated region
    $region9: #{tpu_custom_call.1} parent=5 // pred_check
      _
    $region10: #{tpu_custom_call.1} parent=5 // pred_check_branch
      %308 = sbr.rel (%p305) target = $region12
    $region11: #{tpu_custom_call.1} parent=5 // pred_region
      %s309 = ssub.s32 %s18, 1
      // Predicated region
      $region13: #{tpu_custom_call.1} parent=11 // pred_check
        %p310 = pneg %p117
      $region14: #{tpu_custom_call.1} parent=11 // pred_check_branch
        %312 = sbr.rel (%p310) target = $region16
      $region15: #{tpu_custom_call.1} parent=11 // pred_region
        _
      $region16: #{tpu_custom_call.1} parent=11 // pred_fallthru
        _
      // Predicated region
      $region17: #{tpu_custom_call.1} parent=11 // pred_check
        %p313 = pneg %p138
      $region18: #{tpu_custom_call.1} parent=11 // pred_check_branch
        %315 = sbr.rel (%p313) target = $region20
      $region19: #{tpu_custom_call.1} parent=11 // pred_region
        _
      $region20: #{tpu_custom_call.1} parent=11 // pred_fallthru
        _
      // Predicated region
      $region21: #{tpu_custom_call.1} parent=11 // pred_check
        %p316 = pneg %p159
      $region22: #{tpu_custom_call.1} parent=11 // pred_check_branch
        %318 = sbr.rel (%p316) target = $region24
      $region23: #{tpu_custom_call.1} parent=11 // pred_region
        _
      $region24: #{tpu_custom_call.1} parent=11 // pred_fallthru
        _
      // Predicated region
      $region25: #{tpu_custom_call.1} parent=11 // pred_check
        %p319 = pneg %p180
      $region26: #{tpu_custom_call.1} parent=11 // pred_check_branch
        %321 = sbr.rel (%p319) target = $region28
      $region27: #{tpu_custom_call.1} parent=11 // pred_region
        _
      $region28: #{tpu_custom_call.1} parent=11 // pred_fallthru
        _
      // Predicated region
      $region29: #{tpu_custom_call.1} parent=11 // pred_check
        %p322 = pneg %p201
      $region30: #{tpu_custom_call.1} parent=11 // pred_check_branch
        %324 = sbr.rel (%p322) target = $region32
      $region31: #{tpu_custom_call.1} parent=11 // pred_region
        _
      $region32: #{tpu_custom_call.1} parent=11 // pred_fallthru
        _
      // Predicated region
      $region33: #{tpu_custom_call.1} parent=11 // pred_check
        %p325 = pneg %p222
      $region34: #{tpu_custom_call.1} parent=11 // pred_check_branch
        %327 = sbr.rel (%p325) target = $region36
      $region35: #{tpu_custom_call.1} parent=11 // pred_region
        _
      $region36: #{tpu_custom_call.1} parent=11 // pred_fallthru
        _
      // Predicated region
      $region37: #{tpu_custom_call.1} parent=11 // pred_check
        %p328 = pneg %p243
      $region38: #{tpu_custom_call.1} parent=11 // pred_check_branch
        %330 = sbr.rel (%p328) target = $region40
      $region39: #{tpu_custom_call.1} parent=11 // pred_region
        _
      $region40: #{tpu_custom_call.1} parent=11 // pred_fallthru
        _
    $region12: #{tpu_custom_call.1} parent=5 // pred_fallthru
      _
    %p331 = scmp.lt.s32.totalorder %s18, 2
    // Predicated region
    $region41: #{tpu_custom_call.1} parent=5 // pred_check
      %p332 = pneg %p331
    $region42: #{tpu_custom_call.1} parent=5 // pred_check_branch
      %334 = sbr.rel (%p332) target = $region44
    $region43: #{tpu_custom_call.1} parent=5 // pred_region
      // Predicated region
      $region45: #{tpu_custom_call.1} parent=43 // pred_check
        %p335 = pneg %p38
      $region46: #{tpu_custom_call.1} parent=43 // pred_check_branch
        %337 = sbr.rel (%p335) target = $region48
      $region47: #{tpu_custom_call.1} parent=43 // pred_region
        %p338 = scmp.lt.s32.totalorder %s18, 1
        %s339 = scalar_select %p338, %s18, 1
        %s340 = scalar_lea.vmem %s0, %s339
      $region48: #{tpu_custom_call.1} parent=43 // pred_fallthru
        _
      // Predicated region
      $region49: #{tpu_custom_call.1} parent=43 // pred_check
        %p341 = pneg %p64
      $region50: #{tpu_custom_call.1} parent=43 // pred_check_branch
        %343 = sbr.rel (%p341) target = $region52
      $region51: #{tpu_custom_call.1} parent=43 // pred_region
        %s344 = smul.u32 8, %s18
        %p345 = scmp.lt.s32.totalorder %s344, 15
        %s346 = scalar_select %p345, %s344, 15
        %s347 = smul.addr %s346, 8
        %s348 = scalar_lea.vmem %s1, %s347
        %s349 = smul.u32 8, %s18
      $region52: #{tpu_custom_call.1} parent=43 // pred_fallthru
        _
      // Predicated region
      $region53: #{tpu_custom_call.1} parent=43 // pred_check
        %p350 = pneg %p90
      $region54: #{tpu_custom_call.1} parent=43 // pred_check_branch
        %352 = sbr.rel (%p350) target = $region56
      $region55: #{tpu_custom_call.1} parent=43 // pred_region
        %s353 = smul.u32 8, %s18
        %p354 = scmp.lt.s32.totalorder %s353, 15
        %s355 = scalar_select %p354, %s353, 15
        %s356 = smul.addr %s355, 8
        %s357 = scalar_lea.vmem %s2, %s356
        %s358 = smul.u32 8, %s18
      $region56: #{tpu_custom_call.1} parent=43 // pred_fallthru
        _
    $region44: #{tpu_custom_call.1} parent=5 // pred_fallthru
      _
    %p359 = scmp.le.s32.totalorder 1, %s18
    %p360 = scmp.lt.s32.totalorder %s18, 3
    %p361 = pnand %p359, %p360
    %p362 = pneg %p361
    // Predicated region
    $region57: #{tpu_custom_call.1} parent=5 // pred_check
      _
    $region58: #{tpu_custom_call.1} parent=5 // pred_check_branch
      %364 = sbr.rel (%p361) target = $region60
    $region59: #{tpu_custom_call.1} parent=5 // pred_region
      %s365 = ssub.s32 %s18, 1
      %p366 = scmp.lt.s32.totalorder %s23, 1
      %s367 = scalar_select %p366, %s23, 1
      %s368 = scalar_lea.vmem %s0, %s367
      %p369 = pneg %p44
      %p370 = pneg %p41
      %s371 = smul.u32 8, %s23
      %p372 = scmp.lt.s32.totalorder %s371, 15
      %s373 = scalar_select %p372, %s371, 15
      %s374 = smul.addr %s373, 8
      %s375 = scalar_lea.vmem %s1, %s374
      %p376 = pneg %p70
      %p377 = pneg %p67
      %s378 = smul.u32 8, %s23
      %p379 = scmp.lt.s32.totalorder %s378, 15
      %s380 = scalar_select %p379, %s378, 15
      %s381 = smul.addr %s380, 8
      %s382 = scalar_lea.vmem %s2, %s381
      %p383 = pneg %p96
      %p384 = pneg %p93
      %p385 = pneg %p117
      %p386 = pneg %p114
      %p387 = pneg %p138
      %p388 = pneg %p135
      %p389 = pneg %p159
      %p390 = pneg %p156
      %p391 = pneg %p180
      %p392 = pneg %p177
      %p393 = pneg %p201
      %p394 = pneg %p198
      %p395 = pneg %p222
      %p396 = pneg %p219
      %p397 = pneg %p243
      %p398 = pneg %p240
      %p399 = pneg %p269
      %p400 = pneg %p266
      %s401 = smul.u32 8, %s23
      %p402 = scmp.lt.s32.totalorder %s401, 15
      %s403 = scalar_select %p402, %s401, 15
      %s404 = smul.addr %s403, 8
      %s405 = scalar_lea.vmem %s10, %s404
      %p406 = pneg %p295
      %p407 = pneg %p292
      %s408 = smul.u32 8, %s23
      %p409 = scmp.lt.s32.totalorder %s408, 15
      %s410 = scalar_select %p409, %s408, 15
      %s411 = smul.addr %s410, 8
      %s412 = scalar_lea.vmem %s11, %s411
      %p413 = scmp.lt.s32.totalorder %s23, 1
      %s414 = scalar_select %p413, %s23, 1
      %s415 = scalar_lea.vmem %s0, %s414
      %s416 = smul.u32 8, %s23
      %p417 = scmp.lt.s32.totalorder %s416, 15
      %s418 = scalar_select %p417, %s416, 15
      %s419 = smul.addr %s418, 8
      %s420 = scalar_lea.vmem %s1, %s419
      %s421 = smul.u32 8, %s23
      %s422 = smul.u32 8, %s23
      %p423 = scmp.lt.s32.totalorder %s422, 15
      %s424 = scalar_select %p423, %s422, 15
      %s425 = smul.addr %s424, 8
      %s426 = scalar_lea.vmem %s2, %s425
      %s427 = smul.u32 8, %s23
      %s428 = smul.u32 8, %s23
      %p429 = scmp.lt.s32.totalorder %s428, 15
      %s430 = scalar_select %p429, %s428, 15
      %s431 = smul.addr %s430, 8
      %s432 = scalar_lea.vmem %s10, %s431
      %s433 = smul.u32 8, %s23
      %s434 = smul.u32 8, %s23
      %p435 = scmp.lt.s32.totalorder %s434, 15
      %s436 = scalar_select %p435, %s434, 15
      %s437 = smul.addr %s436, 8
      %s438 = scalar_lea.vmem %s11, %s437
      %s439 = smul.u32 8, %s23
      %v440 = vld [vmem:[%s420] sm:$0xff]
      %v441 = vld [vmem:[%s420 + $0x8] sm:$0xff]
      %v442 = vld [vmem:[%s420 + $0x10] sm:$0xff]
      %v443 = vld [vmem:[%s420 + $0x18] sm:$0xff]
      %v444 = vld [vmem:[%s420 + $0x20] sm:$0xff]
      %v445 = vld [vmem:[%s420 + $0x28] sm:$0xff]
      %v446 = vld [vmem:[%s420 + $0x30] sm:$0xff]
      %v447 = vld [vmem:[%s420 + $0x38] sm:$0xff]
      %v448 = vld [vmem:[%s426] sm:$0xff]
      %v449 = vld [vmem:[%s426 + $0x8] sm:$0xff]
      %v450 = vld [vmem:[%s426 + $0x10] sm:$0xff]
      %v451 = vld [vmem:[%s426 + $0x18] sm:$0xff]
      %v452 = vld [vmem:[%s426 + $0x20] sm:$0xff]
      %v453 = vld [vmem:[%s426 + $0x28] sm:$0xff]
      %v454 = vld [vmem:[%s426 + $0x30] sm:$0xff]
      %v455 = vld [vmem:[%s426 + $0x38] sm:$0xff]
      %v456 = vadd.f32 %v440, %v448
      %v457 = vadd.f32 %v441, %v449
      %v458 = vadd.f32 %v442, %v450
      %v459 = vadd.f32 %v443, %v451
      %v460 = vadd.f32 %v444, %v452
      %v461 = vadd.f32 %v445, %v453
      %v462 = vadd.f32 %v446, %v454
      %v463 = vadd.f32 %v447, %v455
      %vm464 = vcmask 261120
      %465 = vst.msk [vmem:[%s432] sm:$0xff] %vm464, %v456
      %466 = vst.msk [vmem:[%s432 + $0x8] sm:$0xff] %vm464, %v457
      %467 = vst.msk [vmem:[%s432 + $0x10] sm:$0xff] %vm464, %v458
      %468 = vst.msk [vmem:[%s432 + $0x18] sm:$0xff] %vm464, %v459
      %469 = vst.msk [vmem:[%s432 + $0x20] sm:$0xff] %vm464, %v460
      %470 = vst.msk [vmem:[%s432 + $0x28] sm:$0xff] %vm464, %v461
      %471 = vst.msk [vmem:[%s432 + $0x30] sm:$0xff] %vm464, %v462
      %472 = vst.msk [vmem:[%s432 + $0x38] sm:$0xff] %vm464, %v463
      %v473 = vlaneseq
      %v474 = vshrl.u32 %v473, 7
      %v475 = vadd.s32 %v474, 8
      %v476 = vadd.s32 %v474, 16
      %v477 = vadd.s32 %v474, 24
      %v478 = vadd.s32 %v474, 32
      %v479 = vadd.s32 %v474, 40
      %v480 = vadd.s32 %v474, 48
      %v481 = vadd.s32 %v474, 56
      %v482 = vlaneseq
      %v483 = vand.u32 %v482, 127
      %v484 = vshrl.u32 %v474, 3
      %v485 = vshrl.u32 %v475, 3
      %v486 = vshrl.u32 %v476, 3
      %v487 = vshrl.u32 %v477, 3
      %v488 = vshrl.u32 %v478, 3
      %v489 = vshrl.u32 %v479, 3
      %v490 = vshrl.u32 %v480, 3
      %v491 = vshrl.u32 %v481, 3
      %v492 = vshrl.u32 %v483, 3
      %vm493 = vcmp.le.s32.totalorder %v483, %v474
      %vm494 = vcmp.le.s32.totalorder %v483, %v475
      %vm495 = vcmp.le.s32.totalorder %v483, %v476
      %vm496 = vcmp.le.s32.totalorder %v483, %v477
      %vm497 = vcmp.le.s32.totalorder %v483, %v478
      %vm498 = vcmp.le.s32.totalorder %v483, %v479
      %vm499 = vcmp.le.s32.totalorder %v483, %v480
      %vm500 = vcmp.le.s32.totalorder %v483, %v481
      %vm501 = vcmp.eq.s32.totalorder %v484, %v492
      %vm502 = vcmp.eq.s32.totalorder %v485, %v492
      %vm503 = vcmp.eq.s32.totalorder %v486, %v492
      %vm504 = vcmp.eq.s32.totalorder %v487, %v492
      %vm505 = vcmp.eq.s32.totalorder %v488, %v492
      %vm506 = vcmp.eq.s32.totalorder %v489, %v492
      %vm507 = vcmp.eq.s32.totalorder %v490, %v492
      %vm508 = vcmp.eq.s32.totalorder %v491, %v492
      %vm509 = vmand %vm493, %vm501
      %vm510 = vmand %vm494, %vm502
      %vm511 = vmand %vm495, %vm503
      %vm512 = vmand %vm496, %vm504
      %vm513 = vmand %vm497, %vm505
      %vm514 = vmand %vm498, %vm506
      %vm515 = vmand %vm499, %vm507
      %vm516 = vmand %vm500, %vm508
      %v517 = vsel %vm509, 0.0, -1e+30
      %v518 = vsel %vm510, 0.0, -1e+30
      %v519 = vsel %vm511, 0.0, -1e+30
      %v520 = vsel %vm512, 0.0, -1e+30
      %v521 = vsel %vm513, 0.0, -1e+30
      %v522 = vsel %vm514, 0.0, -1e+30
      %v523 = vsel %vm515, 0.0, -1e+30
      %v524 = vsel %vm516, 0.0, -1e+30
      %v525 = vld [vmem:[%s415] sm:$0x1]
      %v527 = vperm.slane %v525, 0
      %v529 = vadd.f32 %v517, %v527
      %v530 = vadd.f32 %v518, %v527
      %v531 = vadd.f32 %v519, %v527
      %v532 = vadd.f32 %v520, %v527
      %v533 = vadd.f32 %v521, %v527
      %v534 = vadd.f32 %v522, %v527
      %v535 = vadd.f32 %v523, %v527
      %v536 = vadd.f32 %v524, %v527
      %v537 = vld [vmem:[%s3] sm:$0xff]
      %v538 = vld [vmem:[%s3 + $0x8] sm:$0xff]
      %v539 = vld [vmem:[%s3 + $0x10] sm:$0xff]
      %v540 = vld [vmem:[%s3 + $0x18] sm:$0xff]
      %v541 = vld [vmem:[%s4] sm:$0xff]
      %v542 = vld [vmem:[%s4 + $0x8] sm:$0xff]
      %v543 = vld [vmem:[%s4 + $0x10] sm:$0xff]
      %v544 = vld [vmem:[%s4 + $0x18] sm:$0xff]
      %v545 = vld [vmem:[%s5] sm:$0xff]
      %v546 = vld [vmem:[%s5 + $0x8] sm:$0xff]
      %v547 = vld [vmem:[%s5 + $0x10] sm:$0xff]
      %v548 = vld [vmem:[%s5 + $0x18] sm:$0xff]
      %v549 = vld [vmem:[%s6] sm:$0xff]
      %v550 = vld [vmem:[%s6 + $0x8] sm:$0xff]
      %v551 = vld [vmem:[%s6 + $0x10] sm:$0xff]
      %v552 = vld [vmem:[%s6 + $0x18] sm:$0xff]
      %v553 = vld [vmem:[%s6 + $0x20] sm:$0xff]
      %v554 = vld [vmem:[%s6 + $0x28] sm:$0xff]
      %v555 = vld [vmem:[%s6 + $0x30] sm:$0xff]
      %v556 = vld [vmem:[%s6 + $0x38] sm:$0xff]
      %v557 = vld [vmem:[%s7] sm:$0x1]
      %v558 = vld [vmem:[%s8] sm:$0x1]
      %v559 = vld [vmem:[%s9] sm:$0x3f]
      %v561 = vperm.slane %v557, 0
      %v564 = vsel %vm464, %v456, 0
      %v567 = vsel %vm464, %v457, 0
      %v570 = vsel %vm464, %v458, 0
      %v573 = vsel %vm464, %v459, 0
      %v576 = vsel %vm464, %v460, 0
      %v579 = vsel %vm464, %v461, 0
      %v582 = vsel %vm464, %v462, 0
      %v585 = vsel %vm464, %v463, 0
      %587 = vmatpush.msra.mxu0 0.0
      %588 = vmatpush.msra.mxu0 0.0
      %589 = vmatpush.msra.mxu0 0.0
      %590 = vmatpush.msra.mxu0 0.0
      %591 = vmatpush.msra.mxu0 0.0
      %592 = vmatpush.msra.mxu0 0.0
      %593 = vmatpush.msra.mxu0 0.0
      %594 = vmatpush.msra.mxu0 0.0
      %595 = vmatpush.msra.mxu0 0.0
      %596 = vmatpush.msra.mxu0 0.0
      %597 = vmatpush.msra.mxu0 0.0
      %598 = vmatpush.msra.mxu0 0.0
      %599 = vmatpush.msra.mxu0 %v540
      %600 = vmatpush.msra.mxu0 %v539
      %601 = vmatpush.msra.mxu0 %v538
      %602 = vmatpush.msra.mxu0 %v537
      %603 = vmatmul.f32.gmra.mxu0 %v564
      %v604 = vpop.f32.mrf.mxu0
      %v605 = vadd.f32 %v561, %v604
      %606 = vmatmul.f32.gmra.mxu0 %v567
      %v607 = vpop.f32.mrf.mxu0
      %v608 = vadd.f32 %v561, %v607
      %609 = vmatmul.f32.gmra.mxu0 %v570
      %v610 = vpop.f32.mrf.mxu0
      %v611 = vadd.f32 %v561, %v610
      %612 = vmatmul.f32.gmra.mxu0 %v573
      %v613 = vpop.f32.mrf.mxu0
      %v614 = vadd.f32 %v561, %v613
      %615 = vmatmul.f32.gmra.mxu0 %v576
      %v616 = vpop.f32.mrf.mxu0
      %v617 = vadd.f32 %v561, %v616
      %618 = vmatmul.f32.gmra.mxu0 %v579
      %v619 = vpop.f32.mrf.mxu0
      %v620 = vadd.f32 %v561, %v619
      %621 = vmatmul.f32.gmra.mxu0 %v582
      %v622 = vpop.f32.mrf.mxu0
      %v623 = vadd.f32 %v561, %v622
      %624 = vmatmul.f32.gmra.mxu0 %v585
      %v625 = vpop.f32.mrf.mxu0
      %v626 = vadd.f32 %v561, %v625
      %627 = vdwg.mxu0
      %v628 = vmul.f32 %v605, 0.35355338
      %v629 = vmul.f32 %v608, 0.35355338
      %v630 = vmul.f32 %v611, 0.35355338
      %v631 = vmul.f32 %v614, 0.35355338
      %v632 = vmul.f32 %v617, 0.35355338
      %v633 = vmul.f32 %v620, 0.35355338
      %v634 = vmul.f32 %v623, 0.35355338
      %v635 = vmul.f32 %v626, 0.35355338
      %644 = vrot.lane.b32.xlu0 %v605, 96
      %v645 = vpop.permute.xlu0 %644
      %646 = vrot.lane.b32.xlu0 %v608, 96
      %v647 = vpop.permute.xlu0 %646
      %648 = vrot.lane.b32.xlu0 %v611, 96
      %v649 = vpop.permute.xlu0 %648
      %650 = vrot.lane.b32.xlu0 %v614, 96
      %v651 = vpop.permute.xlu0 %650
      %652 = vrot.lane.b32.xlu0 %v617, 96
      %v653 = vpop.permute.xlu0 %652
      %654 = vrot.lane.b32.xlu0 %v620, 96
      %v655 = vpop.permute.xlu0 %654
      %656 = vrot.lane.b32.xlu0 %v623, 96
      %v657 = vpop.permute.xlu0 %656
      %658 = vrot.lane.b32.xlu0 %v626, 96
      %v659 = vpop.permute.xlu0 %658
      %vm660 = vcmask 64512
      %v662 = vsel %vm660, %v628, 0
      %v665 = vsel %vm660, %v629, 0
      %v668 = vsel %vm660, %v630, 0
      %v671 = vsel %vm660, %v631, 0
      %v674 = vsel %vm660, %v632, 0
      %v677 = vsel %vm660, %v633, 0
      %v680 = vsel %vm660, %v634, 0
      %v683 = vsel %vm660, %v635, 0
      %v685 = vsel %vm660, %v645, 0
      %v687 = vsel %vm660, %v647, 0
      %v689 = vsel %vm660, %v649, 0
      %v691 = vsel %vm660, %v651, 0
      %v693 = vsel %vm660, %v653, 0
      %v695 = vsel %vm660, %v655, 0
      %v697 = vsel %vm660, %v657, 0
      %v699 = vsel %vm660, %v659, 0
      %701 = vmatpush.xpose.msra.mxu0 0.0
      %702 = vmatpush.xpose.msra.mxu0 0.0
      %703 = vmatpush.xpose.msra.mxu0 0.0
      %704 = vmatpush.xpose.msra.mxu0 0.0
      %705 = vmatpush.xpose.msra.mxu0 0.0
      %706 = vmatpush.xpose.msra.mxu0 0.0
      %707 = vmatpush.xpose.msra.mxu0 0.0
      %708 = vmatpush.xpose.msra.mxu0 0.0
      %709 = vmatpush.xpose.msra.mxu0 %v699
      %710 = vmatpush.xpose.msra.mxu0 %v697
      %711 = vmatpush.xpose.msra.mxu0 %v695
      %712 = vmatpush.xpose.msra.mxu0 %v693
      %713 = vmatpush.xpose.msra.mxu0 %v691
      %714 = vmatpush.xpose.msra.mxu0 %v689
      %715 = vmatpush.xpose.msra.mxu0 %v687
      %716 = vmatpush.xpose.msra.mxu0 %v685
      %717 = vmatmul.f32.gmra.mxu0 %v662
      %v718 = vpop.f32.mrf.mxu0
      %v719 = vadd.f32 %v529, %v718
      %720 = vmatmul.f32.gmra.mxu0 %v665
      %v721 = vpop.f32.mrf.mxu0
      %v722 = vadd.f32 %v530, %v721
      %723 = vmatmul.f32.gmra.mxu0 %v668
      %v724 = vpop.f32.mrf.mxu0
      %v725 = vadd.f32 %v531, %v724
      %726 = vmatmul.f32.gmra.mxu0 %v671
      %v727 = vpop.f32.mrf.mxu0
      %v728 = vadd.f32 %v532, %v727
      %729 = vmatmul.f32.gmra.mxu0 %v674
      %v730 = vpop.f32.mrf.mxu0
      %v731 = vadd.f32 %v533, %v730
      %732 = vmatmul.f32.gmra.mxu0 %v677
      %v733 = vpop.f32.mrf.mxu0
      %v734 = vadd.f32 %v534, %v733
      %735 = vmatmul.f32.gmra.mxu0 %v680
      %v736 = vpop.f32.mrf.mxu0
      %v737 = vadd.f32 %v535, %v736
      %738 = vmatmul.f32.gmra.mxu0 %v683
      %v739 = vpop.f32.mrf.mxu0
      %v740 = vadd.f32 %v536, %v739
      %741 = vdwg.mxu0
      %vm742 = vcmask 523264
      %v743 = vsel %vm742, %v719, -inf
      %744 = vmax.xlane.f32.xlu0 %v743
      %v745 = vpop.xlane.xlu0 %744
      %v746 = vsel %vm742, %v722, -inf
      %747 = vmax.xlane.f32.xlu0 %v746
      %v748 = vpop.xlane.xlu0 %747
      %v749 = vsel %vm742, %v725, -inf
      %750 = vmax.xlane.f32.xlu0 %v749
      %v751 = vpop.xlane.xlu0 %750
      %v752 = vsel %vm742, %v728, -inf
      %753 = vmax.xlane.f32.xlu0 %v752
      %v754 = vpop.xlane.xlu0 %753
      %v755 = vsel %vm742, %v731, -inf
      %756 = vmax.xlane.f32.xlu0 %v755
      %v757 = vpop.xlane.xlu0 %756
      %v758 = vsel %vm742, %v734, -inf
      %759 = vmax.xlane.f32.xlu0 %v758
      %v760 = vpop.xlane.xlu0 %759
      %v761 = vsel %vm742, %v737, -inf
      %762 = vmax.xlane.f32.xlu0 %v761
      %v763 = vpop.xlane.xlu0 %762
      %v764 = vsel %vm742, %v740, -inf
      %765 = vmax.xlane.f32.xlu0 %v764
      %v766 = vpop.xlane.xlu0 %765
      %v767 = vsub.f32 %v719, %v745
      %v768 = vsub.f32 %v722, %v748
      %v769 = vsub.f32 %v725, %v751
      %v770 = vsub.f32 %v728, %v754
      %v771 = vsub.f32 %v731, %v757
      %v772 = vsub.f32 %v734, %v760
      %v773 = vsub.f32 %v737, %v763
      %v774 = vsub.f32 %v740, %v766
      %v775 = vmul.f32 %v767, 1.442695
      %v776 = vpow.pop %v775
      %v777 = vmul.f32 %v768, 1.442695
      %v778 = vpow.pop %v777
      %v779 = vmul.f32 %v769, 1.442695
      %v780 = vpow.pop %v779
      %v781 = vmul.f32 %v770, 1.442695
      %v782 = vpow.pop %v781
      %v783 = vmul.f32 %v771, 1.442695
      %v784 = vpow.pop %v783
      %v785 = vmul.f32 %v772, 1.442695
      %v786 = vpow.pop %v785
      %v787 = vmul.f32 %v773, 1.442695
      %v788 = vpow.pop %v787
      %v789 = vmul.f32 %v774, 1.442695
      %v790 = vpow.pop %v789
      %v791 = vsel %vm742, %v776, 0.0
      %792 = vadd.xlane.f32.xlu0 %v791
      %v793 = vpop.xlane.xlu0 %792
      %v794 = vsel %vm742, %v778, 0.0
      %795 = vadd.xlane.f32.xlu0 %v794
      %v796 = vpop.xlane.xlu0 %795
      %v797 = vsel %vm742, %v780, 0.0
      %798 = vadd.xlane.f32.xlu0 %v797
      %v799 = vpop.xlane.xlu0 %798
      %v800 = vsel %vm742, %v782, 0.0
      %801 = vadd.xlane.f32.xlu0 %v800
      %v802 = vpop.xlane.xlu0 %801
      %v803 = vsel %vm742, %v784, 0.0
      %804 = vadd.xlane.f32.xlu0 %v803
      %v805 = vpop.xlane.xlu0 %804
      %v806 = vsel %vm742, %v786, 0.0
      %807 = vadd.xlane.f32.xlu0 %v806
      %v808 = vpop.xlane.xlu0 %807
      %v809 = vsel %vm742, %v788, 0.0
      %810 = vadd.xlane.f32.xlu0 %v809
      %v811 = vpop.xlane.xlu0 %810
      %v812 = vsel %vm742, %v790, 0.0
      %813 = vadd.xlane.f32.xlu0 %v812
      %v814 = vpop.xlane.xlu0 %813
      %v815 = vrcp.pop %v793
      %v816 = vrcp.pop %v796
      %v817 = vrcp.pop %v799
      %v818 = vrcp.pop %v802
      %v819 = vrcp.pop %v805
      %v820 = vrcp.pop %v808
      %v821 = vrcp.pop %v811
      %v822 = vrcp.pop %v814
      %v823 = vmul.f32 %v776, %v815
      %v824 = vmul.f32 %v778, %v816
      %v825 = vmul.f32 %v780, %v817
      %v826 = vmul.f32 %v782, %v818
      %v827 = vmul.f32 %v784, %v819
      %v828 = vmul.f32 %v786, %v820
      %v829 = vmul.f32 %v788, %v821
      %v830 = vmul.f32 %v790, %v822
      %831 = vrot.lane.b32.xlu0 %v605, 64
      %v832 = vpop.permute.xlu0 %831
      %833 = vrot.lane.b32.xlu0 %v608, 64
      %v834 = vpop.permute.xlu0 %833
      %835 = vrot.lane.b32.xlu0 %v611, 64
      %v836 = vpop.permute.xlu0 %835
      %837 = vrot.lane.b32.xlu0 %v614, 64
      %v838 = vpop.permute.xlu0 %837
      %839 = vrot.lane.b32.xlu0 %v617, 64
      %v840 = vpop.permute.xlu0 %839
      %841 = vrot.lane.b32.xlu0 %v620, 64
      %v842 = vpop.permute.xlu0 %841
      %843 = vrot.lane.b32.xlu0 %v623, 64
      %v844 = vpop.permute.xlu0 %843
      %845 = vrot.lane.b32.xlu0 %v626, 64
      %v846 = vpop.permute.xlu0 %845
      %v856 = vsel %vm742, %v823, 0
      %v859 = vsel %vm742, %v824, 0
      %v862 = vsel %vm742, %v825, 0
      %v865 = vsel %vm742, %v826, 0
      %v868 = vsel %vm742, %v827, 0
      %v871 = vsel %vm742, %v828, 0
      %v874 = vsel %vm742, %v829, 0
      %v877 = vsel %vm742, %v830, 0
      %879 = vmatpush.msra.mxu0 0.0
      %880 = vmatpush.msra.mxu0 0.0
      %881 = vmatpush.msra.mxu0 0.0
      %882 = vmatpush.msra.mxu0 0.0
      %883 = vmatpush.msra.mxu0 0.0
      %884 = vmatpush.msra.mxu0 0.0
      %885 = vmatpush.msra.mxu0 0.0
      %886 = vmatpush.msra.mxu0 0.0
      %887 = vmatpush.msra.mxu0 %v846
      %888 = vmatpush.msra.mxu0 %v844
      %889 = vmatpush.msra.mxu0 %v842
      %890 = vmatpush.msra.mxu0 %v840
      %891 = vmatpush.msra.mxu0 %v838
      %892 = vmatpush.msra.mxu0 %v836
      %893 = vmatpush.msra.mxu0 %v834
      %894 = vmatpush.msra.mxu0 %v832
      %895 = vmatmul.f32.gmra.mxu0 %v856
      %v896 = vpop.f32.mrf.mxu0
      %v897 = vadd.f32 0.0, %v896
      %898 = vmatmul.f32.gmra.mxu0 %v859
      %v899 = vpop.f32.mrf.mxu0
      %v900 = vadd.f32 0.0, %v899
      %901 = vmatmul.f32.gmra.mxu0 %v862
      %v902 = vpop.f32.mrf.mxu0
      %v903 = vadd.f32 0.0, %v902
      %904 = vmatmul.f32.gmra.mxu0 %v865
      %v905 = vpop.f32.mrf.mxu0
      %v906 = vadd.f32 0.0, %v905
      %907 = vmatmul.f32.gmra.mxu0 %v868
      %v908 = vpop.f32.mrf.mxu0
      %v909 = vadd.f32 0.0, %v908
      %910 = vmatmul.f32.gmra.mxu0 %v871
      %v911 = vpop.f32.mrf.mxu0
      %v912 = vadd.f32 0.0, %v911
      %913 = vmatmul.f32.gmra.mxu0 %v874
      %v914 = vpop.f32.mrf.mxu0
      %v915 = vadd.f32 0.0, %v914
      %916 = vmatmul.f32.gmra.mxu0 %v877
      %v917 = vpop.f32.mrf.mxu0
      %v918 = vadd.f32 0.0, %v917
      %919 = vdwg.mxu0
      %920 = vrot.lane.b32.xlu0 %v628, 120
      %v921 = vpop.permute.xlu0 %920
      %922 = vrot.lane.b32.xlu0 %v629, 120
      %v923 = vpop.permute.xlu0 %922
      %924 = vrot.lane.b32.xlu0 %v630, 120
      %v925 = vpop.permute.xlu0 %924
      %926 = vrot.lane.b32.xlu0 %v631, 120
      %v927 = vpop.permute.xlu0 %926
      %928 = vrot.lane.b32.xlu0 %v632, 120
      %v929 = vpop.permute.xlu0 %928
      %930 = vrot.lane.b32.xlu0 %v633, 120
      %v931 = vpop.permute.xlu0 %930
      %932 = vrot.lane.b32.xlu0 %v634, 120
      %v933 = vpop.permute.xlu0 %932
      %934 = vrot.lane.b32.xlu0 %v635, 120
      %v935 = vpop.permute.xlu0 %934
      %936 = vrot.lane.b32.xlu0 %v605, 88
      %v937 = vpop.permute.xlu0 %936
      %938 = vrot.lane.b32.xlu0 %v608, 88
      %v939 = vpop.permute.xlu0 %938
      %940 = vrot.lane.b32.xlu0 %v611, 88
      %v941 = vpop.permute.xlu0 %940
      %942 = vrot.lane.b32.xlu0 %v614, 88
      %v943 = vpop.permute.xlu0 %942
      %944 = vrot.lane.b32.xlu0 %v617, 88
      %v945 = vpop.permute.xlu0 %944
      %946 = vrot.lane.b32.xlu0 %v620, 88
      %v947 = vpop.permute.xlu0 %946
      %948 = vrot.lane.b32.xlu0 %v623, 88
      %v949 = vpop.permute.xlu0 %948
      %950 = vrot.lane.b32.xlu0 %v626, 88
      %v951 = vpop.permute.xlu0 %950
      %v952 = vsel %vm660, %v921, 0
      %v954 = vsel %vm660, %v923, 0
      %v956 = vsel %vm660, %v925, 0
      %v958 = vsel %vm660, %v927, 0
      %v960 = vsel %vm660, %v929, 0
      %v962 = vsel %vm660, %v931, 0
      %v964 = vsel %vm660, %v933, 0
      %v966 = vsel %vm660, %v935, 0
      %v968 = vsel %vm660, %v937, 0
      %v970 = vsel %vm660, %v939, 0
      %v972 = vsel %vm660, %v941, 0
      %v974 = vsel %vm660, %v943, 0
      %v976 = vsel %vm660, %v945, 0
      %v978 = vsel %vm660, %v947, 0
      %v980 = vsel %vm660, %v949, 0
      %v982 = vsel %vm660, %v951, 0
      %984 = vmatpush.xpose.msra.mxu0 0.0
      %985 = vmatpush.xpose.msra.mxu0 0.0
      %986 = vmatpush.xpose.msra.mxu0 0.0
      %987 = vmatpush.xpose.msra.mxu0 0.0
      %988 = vmatpush.xpose.msra.mxu0 0.0
      %989 = vmatpush.xpose.msra.mxu0 0.0
      %990 = vmatpush.xpose.msra.mxu0 0.0
      %991 = vmatpush.xpose.msra.mxu0 0.0
      %992 = vmatpush.xpose.msra.mxu0 %v982
      %993 = vmatpush.xpose.msra.mxu0 %v980
      %994 = vmatpush.xpose.msra.mxu0 %v978
      %995 = vmatpush.xpose.msra.mxu0 %v976
      %996 = vmatpush.xpose.msra.mxu0 %v974
      %997 = vmatpush.xpose.msra.mxu0 %v972
      %998 = vmatpush.xpose.msra.mxu0 %v970
      %999 = vmatpush.xpose.msra.mxu0 %v968
      %1000 = vmatmul.f32.gmra.mxu0 %v952
      %v1001 = vpop.f32.mrf.mxu0
      %v1002 = vadd.f32 %v529, %v1001
      %1003 = vmatmul.f32.gmra.mxu0 %v954
      %v1004 = vpop.f32.mrf.mxu0
      %v1005 = vadd.f32 %v530, %v1004
      %1006 = vmatmul.f32.gmra.mxu0 %v956
      %v1007 = vpop.f32.mrf.mxu0
      %v1008 = vadd.f32 %v531, %v1007
      %1009 = vmatmul.f32.gmra.mxu0 %v958
      %v1010 = vpop.f32.mrf.mxu0
      %v1011 = vadd.f32 %v532, %v1010
      %1012 = vmatmul.f32.gmra.mxu0 %v960
      %v1013 = vpop.f32.mrf.mxu0
      %v1014 = vadd.f32 %v533, %v1013
      %1015 = vmatmul.f32.gmra.mxu0 %v962
      %v1016 = vpop.f32.mrf.mxu0
      %v1017 = vadd.f32 %v534, %v1016
      %1018 = vmatmul.f32.gmra.mxu0 %v964
      %v1019 = vpop.f32.mrf.mxu0
      %v1020 = vadd.f32 %v535, %v1019
      %1021 = vmatmul.f32.gmra.mxu0 %v966
      %v1022 = vpop.f32.mrf.mxu0
      %v1023 = vadd.f32 %v536, %v1022
      %1024 = vdwg.mxu0
      %v1025 = vsel %vm742, %v1002, -inf
      %1026 = vmax.xlane.f32.xlu0 %v1025
      %v1027 = vpop.xlane.xlu0 %1026
      %v1028 = vsel %vm742, %v1005, -inf
      %1029 = vmax.xlane.f32.xlu0 %v1028
      %v1030 = vpop.xlane.xlu0 %1029
      %v1031 = vsel %vm742, %v1008, -inf
      %1032 = vmax.xlane.f32.xlu0 %v1031
      %v1033 = vpop.xlane.xlu0 %1032
      %v1034 = vsel %vm742, %v1011, -inf
      %1035 = vmax.xlane.f32.xlu0 %v1034
      %v1036 = vpop.xlane.xlu0 %1035
      %v1037 = vsel %vm742, %v1014, -inf
      %1038 = vmax.xlane.f32.xlu0 %v1037
      %v1039 = vpop.xlane.xlu0 %1038
      %v1040 = vsel %vm742, %v1017, -inf
      %1041 = vmax.xlane.f32.xlu0 %v1040
      %v1042 = vpop.xlane.xlu0 %1041
      %v1043 = vsel %vm742, %v1020, -inf
      %1044 = vmax.xlane.f32.xlu0 %v1043
      %v1045 = vpop.xlane.xlu0 %1044
      %v1046 = vsel %vm742, %v1023, -inf
      %1047 = vmax.xlane.f32.xlu0 %v1046
      %v1048 = vpop.xlane.xlu0 %1047
      %v1049 = vsub.f32 %v1002, %v1027
      %v1050 = vsub.f32 %v1005, %v1030
      %v1051 = vsub.f32 %v1008, %v1033
      %v1052 = vsub.f32 %v1011, %v1036
      %v1053 = vsub.f32 %v1014, %v1039
      %v1054 = vsub.f32 %v1017, %v1042
      %v1055 = vsub.f32 %v1020, %v1045
      %v1056 = vsub.f32 %v1023, %v1048
      %v1057 = vmul.f32 %v1049, 1.442695
      %v1058 = vpow.pop %v1057
      %v1059 = vmul.f32 %v1050, 1.442695
      %v1060 = vpow.pop %v1059
      %v1061 = vmul.f32 %v1051, 1.442695
      %v1062 = vpow.pop %v1061
      %v1063 = vmul.f32 %v1052, 1.442695
      %v1064 = vpow.pop %v1063
      %v1065 = vmul.f32 %v1053, 1.442695
      %v1066 = vpow.pop %v1065
      %v1067 = vmul.f32 %v1054, 1.442695
      %v1068 = vpow.pop %v1067
      %v1069 = vmul.f32 %v1055, 1.442695
      %v1070 = vpow.pop %v1069
      %v1071 = vmul.f32 %v1056, 1.442695
      %v1072 = vpow.pop %v1071
      %v1073 = vsel %vm742, %v1058, 0.0
      %1074 = vadd.xlane.f32.xlu0 %v1073
      %v1075 = vpop.xlane.xlu0 %1074
      %v1076 = vsel %vm742, %v1060, 0.0
      %1077 = vadd.xlane.f32.xlu0 %v1076
      %v1078 = vpop.xlane.xlu0 %1077
      %v1079 = vsel %vm742, %v1062, 0.0
      %1080 = vadd.xlane.f32.xlu0 %v1079
      %v1081 = vpop.xlane.xlu0 %1080
      %v1082 = vsel %vm742, %v1064, 0.0
      %1083 = vadd.xlane.f32.xlu0 %v1082
      %v1084 = vpop.xlane.xlu0 %1083
      %v1085 = vsel %vm742, %v1066, 0.0
      %1086 = vadd.xlane.f32.xlu0 %v1085
      %v1087 = vpop.xlane.xlu0 %1086
      %v1088 = vsel %vm742, %v1068, 0.0
      %1089 = vadd.xlane.f32.xlu0 %v1088
      %v1090 = vpop.xlane.xlu0 %1089
      %v1091 = vsel %vm742, %v1070, 0.0
      %1092 = vadd.xlane.f32.xlu0 %v1091
      %v1093 = vpop.xlane.xlu0 %1092
      %v1094 = vsel %vm742, %v1072, 0.0
      %1095 = vadd.xlane.f32.xlu0 %v1094
      %v1096 = vpop.xlane.xlu0 %1095
      %v1097 = vrcp.pop %v1075
      %v1098 = vrcp.pop %v1078
      %v1099 = vrcp.pop %v1081
      %v1100 = vrcp.pop %v1084
      %v1101 = vrcp.pop %v1087
      %v1102 = vrcp.pop %v1090
      %v1103 = vrcp.pop %v1093
      %v1104 = vrcp.pop %v1096
      %v1105 = vmul.f32 %v1058, %v1097
      %v1106 = vmul.f32 %v1060, %v1098
      %v1107 = vmul.f32 %v1062, %v1099
      %v1108 = vmul.f32 %v1064, %v1100
      %v1109 = vmul.f32 %v1066, %v1101
      %v1110 = vmul.f32 %v1068, %v1102
      %v1111 = vmul.f32 %v1070, %v1103
      %v1112 = vmul.f32 %v1072, %v1104
      %1113 = vrot.lane.b32.xlu0 %v605, 56
      %v1114 = vpop.permute.xlu0 %1113
      %1115 = vrot.lane.b32.xlu0 %v608, 56
      %v1116 = vpop.permute.xlu0 %1115
      %1117 = vrot.lane.b32.xlu0 %v611, 56
      %v1118 = vpop.permute.xlu0 %1117
      %1119 = vrot.lane.b32.xlu0 %v614, 56
      %v1120 = vpop.permute.xlu0 %1119
      %1121 = vrot.lane.b32.xlu0 %v617, 56
      %v1122 = vpop.permute.xlu0 %1121
      %1123 = vrot.lane.b32.xlu0 %v620, 56
      %v1124 = vpop.permute.xlu0 %1123
      %1125 = vrot.lane.b32.xlu0 %v623, 56
      %v1126 = vpop.permute.xlu0 %1125
      %1127 = vrot.lane.b32.xlu0 %v626, 56
      %v1128 = vpop.permute.xlu0 %1127
      %v1138 = vsel %vm742, %v1105, 0
      %v1141 = vsel %vm742, %v1106, 0
      %v1144 = vsel %vm742, %v1107, 0
      %v1147 = vsel %vm742, %v1108, 0
      %v1150 = vsel %vm742, %v1109, 0
      %v1153 = vsel %vm742, %v1110, 0
      %v1156 = vsel %vm742, %v1111, 0
      %v1159 = vsel %vm742, %v1112, 0
      %1161 = vmatpush.msra.mxu0 0.0
      %1162 = vmatpush.msra.mxu0 0.0
      %1163 = vmatpush.msra.mxu0 0.0
      %1164 = vmatpush.msra.mxu0 0.0
      %1165 = vmatpush.msra.mxu0 0.0
      %1166 = vmatpush.msra.mxu0 0.0
      %1167 = vmatpush.msra.mxu0 0.0
      %1168 = vmatpush.msra.mxu0 0.0
      %1169 = vmatpush.msra.mxu0 %v1128
      %1170 = vmatpush.msra.mxu0 %v1126
      %1171 = vmatpush.msra.mxu0 %v1124
      %1172 = vmatpush.msra.mxu0 %v1122
      %1173 = vmatpush.msra.mxu0 %v1120
      %1174 = vmatpush.msra.mxu0 %v1118
      %1175 = vmatpush.msra.mxu0 %v1116
      %1176 = vmatpush.msra.mxu0 %v1114
      %1177 = vmatmul.f32.gmra.mxu0 %v1138
      %v1178 = vpop.f32.mrf.mxu0
      %v1179 = vadd.f32 0.0, %v1178
      %1180 = vmatmul.f32.gmra.mxu0 %v1141
      %v1181 = vpop.f32.mrf.mxu0
      %v1182 = vadd.f32 0.0, %v1181
      %1183 = vmatmul.f32.gmra.mxu0 %v1144
      %v1184 = vpop.f32.mrf.mxu0
      %v1185 = vadd.f32 0.0, %v1184
      %1186 = vmatmul.f32.gmra.mxu0 %v1147
      %v1187 = vpop.f32.mrf.mxu0
      %v1188 = vadd.f32 0.0, %v1187
      %1189 = vmatmul.f32.gmra.mxu0 %v1150
      %v1190 = vpop.f32.mrf.mxu0
      %v1191 = vadd.f32 0.0, %v1190
      %1192 = vmatmul.f32.gmra.mxu0 %v1153
      %v1193 = vpop.f32.mrf.mxu0
      %v1194 = vadd.f32 0.0, %v1193
      %1195 = vmatmul.f32.gmra.mxu0 %v1156
      %v1196 = vpop.f32.mrf.mxu0
      %v1197 = vadd.f32 0.0, %v1196
      %1198 = vmatmul.f32.gmra.mxu0 %v1159
      %v1199 = vpop.f32.mrf.mxu0
      %v1200 = vadd.f32 0.0, %v1199
      %1201 = vdwg.mxu0
      %v1203 = vsel %vm660, %v1179, 0
      %v1206 = vsel %vm660, %v1182, 0
      %v1209 = vsel %vm660, %v1185, 0
      %v1212 = vsel %vm660, %v1188, 0
      %v1215 = vsel %vm660, %v1191, 0
      %v1218 = vsel %vm660, %v1194, 0
      %v1221 = vsel %vm660, %v1197, 0
      %v1224 = vsel %vm660, %v1200, 0
      %1226 = vmatpush.msra.mxu0 0.0
      %1227 = vmatpush.msra.mxu0 0.0
      %1228 = vmatpush.msra.mxu0 0.0
      %1229 = vmatpush.msra.mxu0 0.0
      %1230 = vmatpush.msra.mxu0 0.0
      %1231 = vmatpush.msra.mxu0 0.0
      %1232 = vmatpush.msra.mxu0 0.0
      %1233 = vmatpush.msra.mxu0 0.0
      %1234 = vmatpush.msra.mxu0 0.0
      %1235 = vmatpush.msra.mxu0 0.0
      %1236 = vmatpush.msra.mxu0 0.0
      %1237 = vmatpush.msra.mxu0 0.0
      %1238 = vmatpush.msra.mxu0 0.0
      %1239 = vmatpush.msra.mxu0 0.0
      %1240 = vmatpush.msra.mxu0 0.0
      %1241 = vmatpush.msra.mxu0 %v542
      %1242 = vmatmul.f32.gmra.mxu0 %v1203
      %v1243 = vpop.f32.mrf.mxu0
      %v1244 = vadd.f32 0.0, %v1243
      %1245 = vmatmul.f32.gmra.mxu0 %v1206
      %v1246 = vpop.f32.mrf.mxu0
      %v1247 = vadd.f32 0.0, %v1246
      %1248 = vmatmul.f32.gmra.mxu0 %v1209
      %v1249 = vpop.f32.mrf.mxu0
      %v1250 = vadd.f32 0.0, %v1249
      %1251 = vmatmul.f32.gmra.mxu0 %v1212
      %v1252 = vpop.f32.mrf.mxu0
      %v1253 = vadd.f32 0.0, %v1252
      %1254 = vmatmul.f32.gmra.mxu0 %v1215
      %v1255 = vpop.f32.mrf.mxu0
      %v1256 = vadd.f32 0.0, %v1255
      %1257 = vmatmul.f32.gmra.mxu0 %v1218
      %v1258 = vpop.f32.mrf.mxu0
      %v1259 = vadd.f32 0.0, %v1258
      %1260 = vmatmul.f32.gmra.mxu0 %v1221
      %v1261 = vpop.f32.mrf.mxu0
      %v1262 = vadd.f32 0.0, %v1261
      %1263 = vmatmul.f32.gmra.mxu0 %v1224
      %v1264 = vpop.f32.mrf.mxu0
      %v1265 = vadd.f32 0.0, %v1264
      %1266 = vdwg.mxu0
      %v1268 = vsel %vm660, %v897, 0
      %v1271 = vsel %vm660, %v900, 0
      %v1274 = vsel %vm660, %v903, 0
      %v1277 = vsel %vm660, %v906, 0
      %v1280 = vsel %vm660, %v909, 0
      %v1283 = vsel %vm660, %v912, 0
      %v1286 = vsel %vm660, %v915, 0
      %v1289 = vsel %vm660, %v918, 0
      %1291 = vmatpush.msra.mxu0 0.0
      %1292 = vmatpush.msra.mxu0 0.0
      %1293 = vmatpush.msra.mxu0 0.0
      %1294 = vmatpush.msra.mxu0 0.0
      %1295 = vmatpush.msra.mxu0 0.0
      %1296 = vmatpush.msra.mxu0 0.0
      %1297 = vmatpush.msra.mxu0 0.0
      %1298 = vmatpush.msra.mxu0 0.0
      %1299 = vmatpush.msra.mxu0 0.0
      %1300 = vmatpush.msra.mxu0 0.0
      %1301 = vmatpush.msra.mxu0 0.0
      %1302 = vmatpush.msra.mxu0 0.0
      %1303 = vmatpush.msra.mxu0 0.0
      %1304 = vmatpush.msra.mxu0 0.0
      %1305 = vmatpush.msra.mxu0 0.0
      %1306 = vmatpush.msra.mxu0 %v541
      %1307 = vmatmul.f32.gmra.mxu0 %v1268
      %v1308 = vpop.f32.mrf.mxu0
      %v1309 = vadd.f32 %v1244, %v1308
      %1310 = vmatmul.f32.gmra.mxu0 %v1271
      %v1311 = vpop.f32.mrf.mxu0
      %v1312 = vadd.f32 %v1247, %v1311
      %1313 = vmatmul.f32.gmra.mxu0 %v1274
      %v1314 = vpop.f32.mrf.mxu0
      %v1315 = vadd.f32 %v1250, %v1314
      %1316 = vmatmul.f32.gmra.mxu0 %v1277
      %v1317 = vpop.f32.mrf.mxu0
      %v1318 = vadd.f32 %v1253, %v1317
      %1319 = vmatmul.f32.gmra.mxu0 %v1280
      %v1320 = vpop.f32.mrf.mxu0
      %v1321 = vadd.f32 %v1256, %v1320
      %1322 = vmatmul.f32.gmra.mxu0 %v1283
      %v1323 = vpop.f32.mrf.mxu0
      %v1324 = vadd.f32 %v1259, %v1323
      %1325 = vmatmul.f32.gmra.mxu0 %v1286
      %v1326 = vpop.f32.mrf.mxu0
      %v1327 = vadd.f32 %v1262, %v1326
      %1328 = vmatmul.f32.gmra.mxu0 %v1289
      %v1329 = vpop.f32.mrf.mxu0
      %v1330 = vadd.f32 %v1265, %v1329
      %1331 = vdwg.mxu0
      %1332 = vrot.lane.b32.xlu0 %v628, 112
      %v1333 = vpop.permute.xlu0 %1332
      %1334 = vrot.lane.b32.xlu0 %v629, 112
      %v1335 = vpop.permute.xlu0 %1334
      %1336 = vrot.lane.b32.xlu0 %v630, 112
      %v1337 = vpop.permute.xlu0 %1336
      %1338 = vrot.lane.b32.xlu0 %v631, 112
      %v1339 = vpop.permute.xlu0 %1338
      %1340 = vrot.lane.b32.xlu0 %v632, 112
      %v1341 = vpop.permute.xlu0 %1340
      %1342 = vrot.lane.b32.xlu0 %v633, 112
      %v1343 = vpop.permute.xlu0 %1342
      %1344 = vrot.lane.b32.xlu0 %v634, 112
      %v1345 = vpop.permute.xlu0 %1344
      %1346 = vrot.lane.b32.xlu0 %v635, 112
      %v1347 = vpop.permute.xlu0 %1346
      %1348 = vrot.lane.b32.xlu0 %v605, 80
      %v1349 = vpop.permute.xlu0 %1348
      %1350 = vrot.lane.b32.xlu0 %v608, 80
      %v1351 = vpop.permute.xlu0 %1350
      %1352 = vrot.lane.b32.xlu0 %v611, 80
      %v1353 = vpop.permute.xlu0 %1352
      %1354 = vrot.lane.b32.xlu0 %v614, 80
      %v1355 = vpop.permute.xlu0 %1354
      %1356 = vrot.lane.b32.xlu0 %v617, 80
      %v1357 = vpop.permute.xlu0 %1356
      %1358 = vrot.lane.b32.xlu0 %v620, 80
      %v1359 = vpop.permute.xlu0 %1358
      %1360 = vrot.lane.b32.xlu0 %v623, 80
      %v1361 = vpop.permute.xlu0 %1360
      %1362 = vrot.lane.b32.xlu0 %v626, 80
      %v1363 = vpop.permute.xlu0 %1362
      %v1364 = vsel %vm660, %v1333, 0
      %v1366 = vsel %vm660, %v1335, 0
      %v1368 = vsel %vm660, %v1337, 0
      %v1370 = vsel %vm660, %v1339, 0
      %v1372 = vsel %vm660, %v1341, 0
      %v1374 = vsel %vm660, %v1343, 0
      %v1376 = vsel %vm660, %v1345, 0
      %v1378 = vsel %vm660, %v1347, 0
      %v1380 = vsel %vm660, %v1349, 0
      %v1382 = vsel %vm660, %v1351, 0
      %v1384 = vsel %vm660, %v1353, 0
      %v1386 = vsel %vm660, %v1355, 0
      %v1388 = vsel %vm660, %v1357, 0
      %v1390 = vsel %vm660, %v1359, 0
      %v1392 = vsel %vm660, %v1361, 0
      %v1394 = vsel %vm660, %v1363, 0
      %1396 = vmatpush.xpose.msra.mxu0 0.0
      %1397 = vmatpush.xpose.msra.mxu0 0.0
      %1398 = vmatpush.xpose.msra.mxu0 0.0
      %1399 = vmatpush.xpose.msra.mxu0 0.0
      %1400 = vmatpush.xpose.msra.mxu0 0.0
      %1401 = vmatpush.xpose.msra.mxu0 0.0
      %1402 = vmatpush.xpose.msra.mxu0 0.0
      %1403 = vmatpush.xpose.msra.mxu0 0.0
      %1404 = vmatpush.xpose.msra.mxu0 %v1394
      %1405 = vmatpush.xpose.msra.mxu0 %v1392
      %1406 = vmatpush.xpose.msra.mxu0 %v1390
      %1407 = vmatpush.xpose.msra.mxu0 %v1388
      %1408 = vmatpush.xpose.msra.mxu0 %v1386
      %1409 = vmatpush.xpose.msra.mxu0 %v1384
      %1410 = vmatpush.xpose.msra.mxu0 %v1382
      %1411 = vmatpush.xpose.msra.mxu0 %v1380
      %1412 = vmatmul.f32.gmra.mxu0 %v1364
      %v1413 = vpop.f32.mrf.mxu0
      %v1414 = vadd.f32 %v529, %v1413
      %1415 = vmatmul.f32.gmra.mxu0 %v1366
      %v1416 = vpop.f32.mrf.mxu0
      %v1417 = vadd.f32 %v530, %v1416
      %1418 = vmatmul.f32.gmra.mxu0 %v1368
      %v1419 = vpop.f32.mrf.mxu0
      %v1420 = vadd.f32 %v531, %v1419
      %1421 = vmatmul.f32.gmra.mxu0 %v1370
      %v1422 = vpop.f32.mrf.mxu0
      %v1423 = vadd.f32 %v532, %v1422
      %1424 = vmatmul.f32.gmra.mxu0 %v1372
      %v1425 = vpop.f32.mrf.mxu0
      %v1426 = vadd.f32 %v533, %v1425
      %1427 = vmatmul.f32.gmra.mxu0 %v1374
      %v1428 = vpop.f32.mrf.mxu0
      %v1429 = vadd.f32 %v534, %v1428
      %1430 = vmatmul.f32.gmra.mxu0 %v1376
      %v1431 = vpop.f32.mrf.mxu0
      %v1432 = vadd.f32 %v535, %v1431
      %1433 = vmatmul.f32.gmra.mxu0 %v1378
      %v1434 = vpop.f32.mrf.mxu0
      %v1435 = vadd.f32 %v536, %v1434
      %1436 = vdwg.mxu0
      %v1437 = vsel %vm742, %v1414, -inf
      %1438 = vmax.xlane.f32.xlu0 %v1437
      %v1439 = vpop.xlane.xlu0 %1438
      %v1440 = vsel %vm742, %v1417, -inf
      %1441 = vmax.xlane.f32.xlu0 %v1440
      %v1442 = vpop.xlane.xlu0 %1441
      %v1443 = vsel %vm742, %v1420, -inf
      %1444 = vmax.xlane.f32.xlu0 %v1443
      %v1445 = vpop.xlane.xlu0 %1444
      %v1446 = vsel %vm742, %v1423, -inf
      %1447 = vmax.xlane.f32.xlu0 %v1446
      %v1448 = vpop.xlane.xlu0 %1447
      %v1449 = vsel %vm742, %v1426, -inf
      %1450 = vmax.xlane.f32.xlu0 %v1449
      %v1451 = vpop.xlane.xlu0 %1450
      %v1452 = vsel %vm742, %v1429, -inf
      %1453 = vmax.xlane.f32.xlu0 %v1452
      %v1454 = vpop.xlane.xlu0 %1453
      %v1455 = vsel %vm742, %v1432, -inf
      %1456 = vmax.xlane.f32.xlu0 %v1455
      %v1457 = vpop.xlane.xlu0 %1456
      %v1458 = vsel %vm742, %v1435, -inf
      %1459 = vmax.xlane.f32.xlu0 %v1458
      %v1460 = vpop.xlane.xlu0 %1459
      %v1461 = vsub.f32 %v1414, %v1439
      %v1462 = vsub.f32 %v1417, %v1442
      %v1463 = vsub.f32 %v1420, %v1445
      %v1464 = vsub.f32 %v1423, %v1448
      %v1465 = vsub.f32 %v1426, %v1451
      %v1466 = vsub.f32 %v1429, %v1454
      %v1467 = vsub.f32 %v1432, %v1457
      %v1468 = vsub.f32 %v1435, %v1460
      %v1469 = vmul.f32 %v1461, 1.442695
      %v1470 = vpow.pop %v1469
      %v1471 = vmul.f32 %v1462, 1.442695
      %v1472 = vpow.pop %v1471
      %v1473 = vmul.f32 %v1463, 1.442695
      %v1474 = vpow.pop %v1473
      %v1475 = vmul.f32 %v1464, 1.442695
      %v1476 = vpow.pop %v1475
      %v1477 = vmul.f32 %v1465, 1.442695
      %v1478 = vpow.pop %v1477
      %v1479 = vmul.f32 %v1466, 1.442695
      %v1480 = vpow.pop %v1479
      %v1481 = vmul.f32 %v1467, 1.442695
      %v1482 = vpow.pop %v1481
      %v1483 = vmul.f32 %v1468, 1.442695
      %v1484 = vpow.pop %v1483
      %v1485 = vsel %vm742, %v1470, 0.0
      %1486 = vadd.xlane.f32.xlu0 %v1485
      %v1487 = vpop.xlane.xlu0 %1486
      %v1488 = vsel %vm742, %v1472, 0.0
      %1489 = vadd.xlane.f32.xlu0 %v1488
      %v1490 = vpop.xlane.xlu0 %1489
      %v1491 = vsel %vm742, %v1474, 0.0
      %1492 = vadd.xlane.f32.xlu0 %v1491
      %v1493 = vpop.xlane.xlu0 %1492
      %v1494 = vsel %vm742, %v1476, 0.0
      %1495 = vadd.xlane.f32.xlu0 %v1494
      %v1496 = vpop.xlane.xlu0 %1495
      %v1497 = vsel %vm742, %v1478, 0.0
      %1498 = vadd.xlane.f32.xlu0 %v1497
      %v1499 = vpop.xlane.xlu0 %1498
      %v1500 = vsel %vm742, %v1480, 0.0
      %1501 = vadd.xlane.f32.xlu0 %v1500
      %v1502 = vpop.xlane.xlu0 %1501
      %v1503 = vsel %vm742, %v1482, 0.0
      %1504 = vadd.xlane.f32.xlu0 %v1503
      %v1505 = vpop.xlane.xlu0 %1504
      %v1506 = vsel %vm742, %v1484, 0.0
      %1507 = vadd.xlane.f32.xlu0 %v1506
      %v1508 = vpop.xlane.xlu0 %1507
      %v1509 = vrcp.pop %v1487
      %v1510 = vrcp.pop %v1490
      %v1511 = vrcp.pop %v1493
      %v1512 = vrcp.pop %v1496
      %v1513 = vrcp.pop %v1499
      %v1514 = vrcp.pop %v1502
      %v1515 = vrcp.pop %v1505
      %v1516 = vrcp.pop %v1508
      %v1517 = vmul.f32 %v1470, %v1509
      %v1518 = vmul.f32 %v1472, %v1510
      %v1519 = vmul.f32 %v1474, %v1511
      %v1520 = vmul.f32 %v1476, %v1512
      %v1521 = vmul.f32 %v1478, %v1513
      %v1522 = vmul.f32 %v1480, %v1514
      %v1523 = vmul.f32 %v1482, %v1515
      %v1524 = vmul.f32 %v1484, %v1516
      %1525 = vrot.lane.b32.xlu0 %v605, 48
      %v1526 = vpop.permute.xlu0 %1525
      %1527 = vrot.lane.b32.xlu0 %v608, 48
      %v1528 = vpop.permute.xlu0 %1527
      %1529 = vrot.lane.b32.xlu0 %v611, 48
      %v1530 = vpop.permute.xlu0 %1529
      %1531 = vrot.lane.b32.xlu0 %v614, 48
      %v1532 = vpop.permute.xlu0 %1531
      %1533 = vrot.lane.b32.xlu0 %v617, 48
      %v1534 = vpop.permute.xlu0 %1533
      %1535 = vrot.lane.b32.xlu0 %v620, 48
      %v1536 = vpop.permute.xlu0 %1535
      %1537 = vrot.lane.b32.xlu0 %v623, 48
      %v1538 = vpop.permute.xlu0 %1537
      %1539 = vrot.lane.b32.xlu0 %v626, 48
      %v1540 = vpop.permute.xlu0 %1539
      %v1550 = vsel %vm742, %v1517, 0
      %v1553 = vsel %vm742, %v1518, 0
      %v1556 = vsel %vm742, %v1519, 0
      %v1559 = vsel %vm742, %v1520, 0
      %v1562 = vsel %vm742, %v1521, 0
      %v1565 = vsel %vm742, %v1522, 0
      %v1568 = vsel %vm742, %v1523, 0
      %v1571 = vsel %vm742, %v1524, 0
      %1573 = vmatpush.msra.mxu0 0.0
      %1574 = vmatpush.msra.mxu0 0.0
      %1575 = vmatpush.msra.mxu0 0.0
      %1576 = vmatpush.msra.mxu0 0.0
      %1577 = vmatpush.msra.mxu0 0.0
      %1578 = vmatpush.msra.mxu0 0.0
      %1579 = vmatpush.msra.mxu0 0.0
      %1580 = vmatpush.msra.mxu0 0.0
      %1581 = vmatpush.msra.mxu0 %v1540
      %1582 = vmatpush.msra.mxu0 %v1538
      %1583 = vmatpush.msra.mxu0 %v1536
      %1584 = vmatpush.msra.mxu0 %v1534
      %1585 = vmatpush.msra.mxu0 %v1532
      %1586 = vmatpush.msra.mxu0 %v1530
      %1587 = vmatpush.msra.mxu0 %v1528
      %1588 = vmatpush.msra.mxu0 %v1526
      %1589 = vmatmul.f32.gmra.mxu0 %v1550
      %v1590 = vpop.f32.mrf.mxu0
      %v1591 = vadd.f32 0.0, %v1590
      %1592 = vmatmul.f32.gmra.mxu0 %v1553
      %v1593 = vpop.f32.mrf.mxu0
      %v1594 = vadd.f32 0.0, %v1593
      %1595 = vmatmul.f32.gmra.mxu0 %v1556
      %v1596 = vpop.f32.mrf.mxu0
      %v1597 = vadd.f32 0.0, %v1596
      %1598 = vmatmul.f32.gmra.mxu0 %v1559
      %v1599 = vpop.f32.mrf.mxu0
      %v1600 = vadd.f32 0.0, %v1599
      %1601 = vmatmul.f32.gmra.mxu0 %v1562
      %v1602 = vpop.f32.mrf.mxu0
      %v1603 = vadd.f32 0.0, %v1602
      %1604 = vmatmul.f32.gmra.mxu0 %v1565
      %v1605 = vpop.f32.mrf.mxu0
      %v1606 = vadd.f32 0.0, %v1605
      %1607 = vmatmul.f32.gmra.mxu0 %v1568
      %v1608 = vpop.f32.mrf.mxu0
      %v1609 = vadd.f32 0.0, %v1608
      %1610 = vmatmul.f32.gmra.mxu0 %v1571
      %v1611 = vpop.f32.mrf.mxu0
      %v1612 = vadd.f32 0.0, %v1611
      %1613 = vdwg.mxu0
      %v1615 = vsel %vm660, %v1591, 0
      %v1618 = vsel %vm660, %v1594, 0
      %v1621 = vsel %vm660, %v1597, 0
      %v1624 = vsel %vm660, %v1600, 0
      %v1627 = vsel %vm660, %v1603, 0
      %v1630 = vsel %vm660, %v1606, 0
      %v1633 = vsel %vm660, %v1609, 0
      %v1636 = vsel %vm660, %v1612, 0
      %1638 = vmatpush.msra.mxu0 0.0
      %1639 = vmatpush.msra.mxu0 0.0
      %1640 = vmatpush.msra.mxu0 0.0
      %1641 = vmatpush.msra.mxu0 0.0
      %1642 = vmatpush.msra.mxu0 0.0
      %1643 = vmatpush.msra.mxu0 0.0
      %1644 = vmatpush.msra.mxu0 0.0
      %1645 = vmatpush.msra.mxu0 0.0
      %1646 = vmatpush.msra.mxu0 0.0
      %1647 = vmatpush.msra.mxu0 0.0
      %1648 = vmatpush.msra.mxu0 0.0
      %1649 = vmatpush.msra.mxu0 0.0
      %1650 = vmatpush.msra.mxu0 0.0
      %1651 = vmatpush.msra.mxu0 0.0
      %1652 = vmatpush.msra.mxu0 0.0
      %1653 = vmatpush.msra.mxu0 %v543
      %1654 = vmatmul.f32.gmra.mxu0 %v1615
      %v1655 = vpop.f32.mrf.mxu0
      %v1656 = vadd.f32 0.0, %v1655
      %1657 = vmatmul.f32.gmra.mxu0 %v1618
      %v1658 = vpop.f32.mrf.mxu0
      %v1659 = vadd.f32 0.0, %v1658
      %1660 = vmatmul.f32.gmra.mxu0 %v1621
      %v1661 = vpop.f32.mrf.mxu0
      %v1662 = vadd.f32 0.0, %v1661
      %1663 = vmatmul.f32.gmra.mxu0 %v1624
      %v1664 = vpop.f32.mrf.mxu0
      %v1665 = vadd.f32 0.0, %v1664
      %1666 = vmatmul.f32.gmra.mxu0 %v1627
      %v1667 = vpop.f32.mrf.mxu0
      %v1668 = vadd.f32 0.0, %v1667
      %1669 = vmatmul.f32.gmra.mxu0 %v1630
      %v1670 = vpop.f32.mrf.mxu0
      %v1671 = vadd.f32 0.0, %v1670
      %1672 = vmatmul.f32.gmra.mxu0 %v1633
      %v1673 = vpop.f32.mrf.mxu0
      %v1674 = vadd.f32 0.0, %v1673
      %1675 = vmatmul.f32.gmra.mxu0 %v1636
      %v1676 = vpop.f32.mrf.mxu0
      %v1677 = vadd.f32 0.0, %v1676
      %1678 = vdwg.mxu0
      %v1679 = vadd.f32 %v1309, %v1656
      %v1680 = vadd.f32 %v1312, %v1659
      %v1681 = vadd.f32 %v1315, %v1662
      %v1682 = vadd.f32 %v1318, %v1665
      %v1683 = vadd.f32 %v1321, %v1668
      %v1684 = vadd.f32 %v1324, %v1671
      %v1685 = vadd.f32 %v1327, %v1674
      %v1686 = vadd.f32 %v1330, %v1677
      %1687 = vrot.lane.b32.xlu0 %v628, 104
      %v1688 = vpop.permute.xlu0 %1687
      %1689 = vrot.lane.b32.xlu0 %v629, 104
      %v1690 = vpop.permute.xlu0 %1689
      %1691 = vrot.lane.b32.xlu0 %v630, 104
      %v1692 = vpop.permute.xlu0 %1691
      %1693 = vrot.lane.b32.xlu0 %v631, 104
      %v1694 = vpop.permute.xlu0 %1693
      %1695 = vrot.lane.b32.xlu0 %v632, 104
      %v1696 = vpop.permute.xlu0 %1695
      %1697 = vrot.lane.b32.xlu0 %v633, 104
      %v1698 = vpop.permute.xlu0 %1697
      %1699 = vrot.lane.b32.xlu0 %v634, 104
      %v1700 = vpop.permute.xlu0 %1699
      %1701 = vrot.lane.b32.xlu0 %v635, 104
      %v1702 = vpop.permute.xlu0 %1701
      %1703 = vrot.lane.b32.xlu0 %v605, 72
      %v1704 = vpop.permute.xlu0 %1703
      %1705 = vrot.lane.b32.xlu0 %v608, 72
      %v1706 = vpop.permute.xlu0 %1705
      %1707 = vrot.lane.b32.xlu0 %v611, 72
      %v1708 = vpop.permute.xlu0 %1707
      %1709 = vrot.lane.b32.xlu0 %v614, 72
      %v1710 = vpop.permute.xlu0 %1709
      %1711 = vrot.lane.b32.xlu0 %v617, 72
      %v1712 = vpop.permute.xlu0 %1711
      %1713 = vrot.lane.b32.xlu0 %v620, 72
      %v1714 = vpop.permute.xlu0 %1713
      %1715 = vrot.lane.b32.xlu0 %v623, 72
      %v1716 = vpop.permute.xlu0 %1715
      %1717 = vrot.lane.b32.xlu0 %v626, 72
      %v1718 = vpop.permute.xlu0 %1717
      %v1719 = vsel %vm660, %v1688, 0
      %v1721 = vsel %vm660, %v1690, 0
      %v1723 = vsel %vm660, %v1692, 0
      %v1725 = vsel %vm660, %v1694, 0
      %v1727 = vsel %vm660, %v1696, 0
      %v1729 = vsel %vm660, %v1698, 0
      %v1731 = vsel %vm660, %v1700, 0
      %v1733 = vsel %vm660, %v1702, 0
      %v1735 = vsel %vm660, %v1704, 0
      %v1737 = vsel %vm660, %v1706, 0
      %v1739 = vsel %vm660, %v1708, 0
      %v1741 = vsel %vm660, %v1710, 0
      %v1743 = vsel %vm660, %v1712, 0
      %v1745 = vsel %vm660, %v1714, 0
      %v1747 = vsel %vm660, %v1716, 0
      %v1749 = vsel %vm660, %v1718, 0
      %1751 = vmatpush.xpose.msra.mxu0 0.0
      %1752 = vmatpush.xpose.msra.mxu0 0.0
      %1753 = vmatpush.xpose.msra.mxu0 0.0
      %1754 = vmatpush.xpose.msra.mxu0 0.0
      %1755 = vmatpush.xpose.msra.mxu0 0.0
      %1756 = vmatpush.xpose.msra.mxu0 0.0
      %1757 = vmatpush.xpose.msra.mxu0 0.0
      %1758 = vmatpush.xpose.msra.mxu0 0.0
      %1759 = vmatpush.xpose.msra.mxu0 %v1749
      %1760 = vmatpush.xpose.msra.mxu0 %v1747
      %1761 = vmatpush.xpose.msra.mxu0 %v1745
      %1762 = vmatpush.xpose.msra.mxu0 %v1743
      %1763 = vmatpush.xpose.msra.mxu0 %v1741
      %1764 = vmatpush.xpose.msra.mxu0 %v1739
      %1765 = vmatpush.xpose.msra.mxu0 %v1737
      %1766 = vmatpush.xpose.msra.mxu0 %v1735
      %1767 = vmatmul.f32.gmra.mxu0 %v1719
      %v1768 = vpop.f32.mrf.mxu0
      %v1769 = vadd.f32 %v529, %v1768
      %1770 = vmatmul.f32.gmra.mxu0 %v1721
      %v1771 = vpop.f32.mrf.mxu0
      %v1772 = vadd.f32 %v530, %v1771
      %1773 = vmatmul.f32.gmra.mxu0 %v1723
      %v1774 = vpop.f32.mrf.mxu0
      %v1775 = vadd.f32 %v531, %v1774
      %1776 = vmatmul.f32.gmra.mxu0 %v1725
      %v1777 = vpop.f32.mrf.mxu0
      %v1778 = vadd.f32 %v532, %v1777
      %1779 = vmatmul.f32.gmra.mxu0 %v1727
      %v1780 = vpop.f32.mrf.mxu0
      %v1781 = vadd.f32 %v533, %v1780
      %1782 = vmatmul.f32.gmra.mxu0 %v1729
      %v1783 = vpop.f32.mrf.mxu0
      %v1784 = vadd.f32 %v534, %v1783
      %1785 = vmatmul.f32.gmra.mxu0 %v1731
      %v1786 = vpop.f32.mrf.mxu0
      %v1787 = vadd.f32 %v535, %v1786
      %1788 = vmatmul.f32.gmra.mxu0 %v1733
      %v1789 = vpop.f32.mrf.mxu0
      %v1790 = vadd.f32 %v536, %v1789
      %1791 = vdwg.mxu0
      %v1792 = vsel %vm742, %v1769, -inf
      %1793 = vmax.xlane.f32.xlu0 %v1792
      %v1794 = vpop.xlane.xlu0 %1793
      %v1795 = vsel %vm742, %v1772, -inf
      %1796 = vmax.xlane.f32.xlu0 %v1795
      %v1797 = vpop.xlane.xlu0 %1796
      %v1798 = vsel %vm742, %v1775, -inf
      %1799 = vmax.xlane.f32.xlu0 %v1798
      %v1800 = vpop.xlane.xlu0 %1799
      %v1801 = vsel %vm742, %v1778, -inf
      %1802 = vmax.xlane.f32.xlu0 %v1801
      %v1803 = vpop.xlane.xlu0 %1802
      %v1804 = vsel %vm742, %v1781, -inf
      %1805 = vmax.xlane.f32.xlu0 %v1804
      %v1806 = vpop.xlane.xlu0 %1805
      %v1807 = vsel %vm742, %v1784, -inf
      %1808 = vmax.xlane.f32.xlu0 %v1807
      %v1809 = vpop.xlane.xlu0 %1808
      %v1810 = vsel %vm742, %v1787, -inf
      %1811 = vmax.xlane.f32.xlu0 %v1810
      %v1812 = vpop.xlane.xlu0 %1811
      %v1813 = vsel %vm742, %v1790, -inf
      %1814 = vmax.xlane.f32.xlu0 %v1813
      %v1815 = vpop.xlane.xlu0 %1814
      %v1816 = vsub.f32 %v1769, %v1794
      %v1817 = vsub.f32 %v1772, %v1797
      %v1818 = vsub.f32 %v1775, %v1800
      %v1819 = vsub.f32 %v1778, %v1803
      %v1820 = vsub.f32 %v1781, %v1806
      %v1821 = vsub.f32 %v1784, %v1809
      %v1822 = vsub.f32 %v1787, %v1812
      %v1823 = vsub.f32 %v1790, %v1815
      %v1824 = vmul.f32 %v1816, 1.442695
      %v1825 = vpow.pop %v1824
      %v1826 = vmul.f32 %v1817, 1.442695
      %v1827 = vpow.pop %v1826
      %v1828 = vmul.f32 %v1818, 1.442695
      %v1829 = vpow.pop %v1828
      %v1830 = vmul.f32 %v1819, 1.442695
      %v1831 = vpow.pop %v1830
      %v1832 = vmul.f32 %v1820, 1.442695
      %v1833 = vpow.pop %v1832
      %v1834 = vmul.f32 %v1821, 1.442695
      %v1835 = vpow.pop %v1834
      %v1836 = vmul.f32 %v1822, 1.442695
      %v1837 = vpow.pop %v1836
      %v1838 = vmul.f32 %v1823, 1.442695
      %v1839 = vpow.pop %v1838
      %v1840 = vsel %vm742, %v1825, 0.0
      %1841 = vadd.xlane.f32.xlu0 %v1840
      %v1842 = vpop.xlane.xlu0 %1841
      %v1843 = vsel %vm742, %v1827, 0.0
      %1844 = vadd.xlane.f32.xlu0 %v1843
      %v1845 = vpop.xlane.xlu0 %1844
      %v1846 = vsel %vm742, %v1829, 0.0
      %1847 = vadd.xlane.f32.xlu0 %v1846
      %v1848 = vpop.xlane.xlu0 %1847
      %v1849 = vsel %vm742, %v1831, 0.0
      %1850 = vadd.xlane.f32.xlu0 %v1849
      %v1851 = vpop.xlane.xlu0 %1850
      %v1852 = vsel %vm742, %v1833, 0.0
      %1853 = vadd.xlane.f32.xlu0 %v1852
      %v1854 = vpop.xlane.xlu0 %1853
      %v1855 = vsel %vm742, %v1835, 0.0
      %1856 = vadd.xlane.f32.xlu0 %v1855
      %v1857 = vpop.xlane.xlu0 %1856
      %v1858 = vsel %vm742, %v1837, 0.0
      %1859 = vadd.xlane.f32.xlu0 %v1858
      %v1860 = vpop.xlane.xlu0 %1859
      %v1861 = vsel %vm742, %v1839, 0.0
      %1862 = vadd.xlane.f32.xlu0 %v1861
      %v1863 = vpop.xlane.xlu0 %1862
      %v1864 = vrcp.pop %v1842
      %v1865 = vrcp.pop %v1845
      %v1866 = vrcp.pop %v1848
      %v1867 = vrcp.pop %v1851
      %v1868 = vrcp.pop %v1854
      %v1869 = vrcp.pop %v1857
      %v1870 = vrcp.pop %v1860
      %v1871 = vrcp.pop %v1863
      %v1872 = vmul.f32 %v1825, %v1864
      %v1873 = vmul.f32 %v1827, %v1865
      %v1874 = vmul.f32 %v1829, %v1866
      %v1875 = vmul.f32 %v1831, %v1867
      %v1876 = vmul.f32 %v1833, %v1868
      %v1877 = vmul.f32 %v1835, %v1869
      %v1878 = vmul.f32 %v1837, %v1870
      %v1879 = vmul.f32 %v1839, %v1871
      %1880 = vrot.lane.b32.xlu0 %v605, 40
      %v1881 = vpop.permute.xlu0 %1880
      %1882 = vrot.lane.b32.xlu0 %v608, 40
      %v1883 = vpop.permute.xlu0 %1882
      %1884 = vrot.lane.b32.xlu0 %v611, 40
      %v1885 = vpop.permute.xlu0 %1884
      %1886 = vrot.lane.b32.xlu0 %v614, 40
      %v1887 = vpop.permute.xlu0 %1886
      %1888 = vrot.lane.b32.xlu0 %v617, 40
      %v1889 = vpop.permute.xlu0 %1888
      %1890 = vrot.lane.b32.xlu0 %v620, 40
      %v1891 = vpop.permute.xlu0 %1890
      %1892 = vrot.lane.b32.xlu0 %v623, 40
      %v1893 = vpop.permute.xlu0 %1892
      %1894 = vrot.lane.b32.xlu0 %v626, 40
      %v1895 = vpop.permute.xlu0 %1894
      %v1905 = vsel %vm742, %v1872, 0
      %v1908 = vsel %vm742, %v1873, 0
      %v1911 = vsel %vm742, %v1874, 0
      %v1914 = vsel %vm742, %v1875, 0
      %v1917 = vsel %vm742, %v1876, 0
      %v1920 = vsel %vm742, %v1877, 0
      %v1923 = vsel %vm742, %v1878, 0
      %v1926 = vsel %vm742, %v1879, 0
      %1928 = vmatpush.msra.mxu0 0.0
      %1929 = vmatpush.msra.mxu0 0.0
      %1930 = vmatpush.msra.mxu0 0.0
      %1931 = vmatpush.msra.mxu0 0.0
      %1932 = vmatpush.msra.mxu0 0.0
      %1933 = vmatpush.msra.mxu0 0.0
      %1934 = vmatpush.msra.mxu0 0.0
      %1935 = vmatpush.msra.mxu0 0.0
      %1936 = vmatpush.msra.mxu0 %v1895
      %1937 = vmatpush.msra.mxu0 %v1893
      %1938 = vmatpush.msra.mxu0 %v1891
      %1939 = vmatpush.msra.mxu0 %v1889
      %1940 = vmatpush.msra.mxu0 %v1887
      %1941 = vmatpush.msra.mxu0 %v1885
      %1942 = vmatpush.msra.mxu0 %v1883
      %1943 = vmatpush.msra.mxu0 %v1881
      %1944 = vmatmul.f32.gmra.mxu0 %v1905
      %v1945 = vpop.f32.mrf.mxu0
      %v1946 = vadd.f32 0.0, %v1945
      %1947 = vmatmul.f32.gmra.mxu0 %v1908
      %v1948 = vpop.f32.mrf.mxu0
      %v1949 = vadd.f32 0.0, %v1948
      %1950 = vmatmul.f32.gmra.mxu0 %v1911
      %v1951 = vpop.f32.mrf.mxu0
      %v1952 = vadd.f32 0.0, %v1951
      %1953 = vmatmul.f32.gmra.mxu0 %v1914
      %v1954 = vpop.f32.mrf.mxu0
      %v1955 = vadd.f32 0.0, %v1954
      %1956 = vmatmul.f32.gmra.mxu0 %v1917
      %v1957 = vpop.f32.mrf.mxu0
      %v1958 = vadd.f32 0.0, %v1957
      %1959 = vmatmul.f32.gmra.mxu0 %v1920
      %v1960 = vpop.f32.mrf.mxu0
      %v1961 = vadd.f32 0.0, %v1960
      %1962 = vmatmul.f32.gmra.mxu0 %v1923
      %v1963 = vpop.f32.mrf.mxu0
      %v1964 = vadd.f32 0.0, %v1963
      %1965 = vmatmul.f32.gmra.mxu0 %v1926
      %v1966 = vpop.f32.mrf.mxu0
      %v1967 = vadd.f32 0.0, %v1966
      %1968 = vdwg.mxu0
      %v1970 = vsel %vm660, %v1946, 0
      %v1973 = vsel %vm660, %v1949, 0
      %v1976 = vsel %vm660, %v1952, 0
      %v1979 = vsel %vm660, %v1955, 0
      %v1982 = vsel %vm660, %v1958, 0
      %v1985 = vsel %vm660, %v1961, 0
      %v1988 = vsel %vm660, %v1964, 0
      %v1991 = vsel %vm660, %v1967, 0
      %1993 = vmatpush.msra.mxu0 0.0
      %1994 = vmatpush.msra.mxu0 0.0
      %1995 = vmatpush.msra.mxu0 0.0
      %1996 = vmatpush.msra.mxu0 0.0
      %1997 = vmatpush.msra.mxu0 0.0
      %1998 = vmatpush.msra.mxu0 0.0
      %1999 = vmatpush.msra.mxu0 0.0
      %2000 = vmatpush.msra.mxu0 0.0
      %2001 = vmatpush.msra.mxu0 0.0
      %2002 = vmatpush.msra.mxu0 0.0
      %2003 = vmatpush.msra.mxu0 0.0
      %2004 = vmatpush.msra.mxu0 0.0
      %2005 = vmatpush.msra.mxu0 0.0
      %2006 = vmatpush.msra.mxu0 0.0
      %2007 = vmatpush.msra.mxu0 0.0
      %2008 = vmatpush.msra.mxu0 %v544
      %2009 = vmatmul.f32.gmra.mxu0 %v1970
      %v2010 = vpop.f32.mrf.mxu0
      %v2011 = vadd.f32 0.0, %v2010
      %2012 = vmatmul.f32.gmra.mxu0 %v1973
      %v2013 = vpop.f32.mrf.mxu0
      %v2014 = vadd.f32 0.0, %v2013
      %2015 = vmatmul.f32.gmra.mxu0 %v1976
      %v2016 = vpop.f32.mrf.mxu0
      %v2017 = vadd.f32 0.0, %v2016
      %2018 = vmatmul.f32.gmra.mxu0 %v1979
      %v2019 = vpop.f32.mrf.mxu0
      %v2020 = vadd.f32 0.0, %v2019
      %2021 = vmatmul.f32.gmra.mxu0 %v1982
      %v2022 = vpop.f32.mrf.mxu0
      %v2023 = vadd.f32 0.0, %v2022
      %2024 = vmatmul.f32.gmra.mxu0 %v1985
      %v2025 = vpop.f32.mrf.mxu0
      %v2026 = vadd.f32 0.0, %v2025
      %2027 = vmatmul.f32.gmra.mxu0 %v1988
      %v2028 = vpop.f32.mrf.mxu0
      %v2029 = vadd.f32 0.0, %v2028
      %2030 = vmatmul.f32.gmra.mxu0 %v1991
      %v2031 = vpop.f32.mrf.mxu0
      %v2032 = vadd.f32 0.0, %v2031
      %2033 = vdwg.mxu0
      %v2034 = vadd.f32 %v1679, %v2011
      %v2035 = vadd.f32 %v1680, %v2014
      %v2036 = vadd.f32 %v1681, %v2017
      %v2037 = vadd.f32 %v1682, %v2020
      %v2038 = vadd.f32 %v1683, %v2023
      %v2039 = vadd.f32 %v1684, %v2026
      %v2040 = vadd.f32 %v1685, %v2029
      %v2041 = vadd.f32 %v1686, %v2032
      %v2042 = vperm.slane %v559, 0
      %v2043 = vadd.f32 %v2034, %v2042
      %v2044 = vadd.f32 %v2035, %v2042
      %v2045 = vadd.f32 %v2036, %v2042
      %v2046 = vadd.f32 %v2037, %v2042
      %v2047 = vadd.f32 %v2038, %v2042
      %v2048 = vadd.f32 %v2039, %v2042
      %v2049 = vadd.f32 %v2040, %v2042
      %v2050 = vadd.f32 %v2041, %v2042
      %v2051 = vadd.f32 %v456, %v2043
      %v2052 = vadd.f32 %v457, %v2044
      %v2053 = vadd.f32 %v458, %v2045
      %v2054 = vadd.f32 %v459, %v2046
      %v2055 = vadd.f32 %v460, %v2047
      %v2056 = vadd.f32 %v461, %v2048
      %v2057 = vadd.f32 %v462, %v2049
      %v2058 = vadd.f32 %v463, %v2050
      %v2059 = vsel %vm464, %v2051, 0.0
      %2060 = vadd.xlane.f32.xlu0 %v2059
      %v2061 = vpop.xlane.xlu0 %2060
      %v2062 = vsel %vm464, %v2052, 0.0
      %2063 = vadd.xlane.f32.xlu0 %v2062
      %v2064 = vpop.xlane.xlu0 %2063
      %v2065 = vsel %vm464, %v2053, 0.0
      %2066 = vadd.xlane.f32.xlu0 %v2065
      %v2067 = vpop.xlane.xlu0 %2066
      %v2068 = vsel %vm464, %v2054, 0.0
      %2069 = vadd.xlane.f32.xlu0 %v2068
      %v2070 = vpop.xlane.xlu0 %2069
      %v2071 = vsel %vm464, %v2055, 0.0
      %2072 = vadd.xlane.f32.xlu0 %v2071
      %v2073 = vpop.xlane.xlu0 %2072
      %v2074 = vsel %vm464, %v2056, 0.0
      %2075 = vadd.xlane.f32.xlu0 %v2074
      %v2076 = vpop.xlane.xlu0 %2075
      %v2077 = vsel %vm464, %v2057, 0.0
      %2078 = vadd.xlane.f32.xlu0 %v2077
      %v2079 = vpop.xlane.xlu0 %2078
      %v2080 = vsel %vm464, %v2058, 0.0
      %2081 = vadd.xlane.f32.xlu0 %v2080
      %v2082 = vpop.xlane.xlu0 %2081
      %v2083 = vrcp.pop 32.0
      %v2084 = vmul.f32 32.0, %v2083
      %v2085 = vsub.f32 1.0, %v2084
      %v2086 = vmul.f32 %v2083, %v2085
      %v2087 = vadd.f32 %v2083, %v2086
      %vm2088 = vweird.f32 %v2083
      %v2089 = vsel %vm2088, %v2083, %v2087
      %v2090 = vmul.f32 %v2061, %v2089
      %v2091 = vmul.f32 %v2064, %v2089
      %v2092 = vmul.f32 %v2067, %v2089
      %v2093 = vmul.f32 %v2070, %v2089
      %v2094 = vmul.f32 %v2073, %v2089
      %v2095 = vmul.f32 %v2076, %v2089
      %v2096 = vmul.f32 %v2079, %v2089
      %v2097 = vmul.f32 %v2082, %v2089
      %v2098 = vsub.f32 %v2051, %v2090
      %v2099 = vsub.f32 %v2052, %v2091
      %v2100 = vsub.f32 %v2053, %v2092
      %v2101 = vsub.f32 %v2054, %v2093
      %v2102 = vsub.f32 %v2055, %v2094
      %v2103 = vsub.f32 %v2056, %v2095
      %v2104 = vsub.f32 %v2057, %v2096
      %v2105 = vsub.f32 %v2058, %v2097
      %v2106 = vmul.f32 %v2098, %v2098
      %v2107 = vmul.f32 %v2099, %v2099
      %v2108 = vmul.f32 %v2100, %v2100
      %v2109 = vmul.f32 %v2101, %v2101
      %v2110 = vmul.f32 %v2102, %v2102
      %v2111 = vmul.f32 %v2103, %v2103
      %v2112 = vmul.f32 %v2104, %v2104
      %v2113 = vmul.f32 %v2105, %v2105
      %v2114 = vsel %vm464, %v2106, 0.0
      %2115 = vadd.xlane.f32.xlu0 %v2114
      %v2116 = vpop.xlane.xlu0 %2115
      %v2117 = vsel %vm464, %v2107, 0.0
      %2118 = vadd.xlane.f32.xlu0 %v2117
      %v2119 = vpop.xlane.xlu0 %2118
      %v2120 = vsel %vm464, %v2108, 0.0
      %2121 = vadd.xlane.f32.xlu0 %v2120
      %v2122 = vpop.xlane.xlu0 %2121
      %v2123 = vsel %vm464, %v2109, 0.0
      %2124 = vadd.xlane.f32.xlu0 %v2123
      %v2125 = vpop.xlane.xlu0 %2124
      %v2126 = vsel %vm464, %v2110, 0.0
      %2127 = vadd.xlane.f32.xlu0 %v2126
      %v2128 = vpop.xlane.xlu0 %2127
      %v2129 = vsel %vm464, %v2111, 0.0
      %2130 = vadd.xlane.f32.xlu0 %v2129
      %v2131 = vpop.xlane.xlu0 %2130
      %v2132 = vsel %vm464, %v2112, 0.0
      %2133 = vadd.xlane.f32.xlu0 %v2132
      %v2134 = vpop.xlane.xlu0 %2133
      %v2135 = vsel %vm464, %v2113, 0.0
      %2136 = vadd.xlane.f32.xlu0 %v2135
      %v2137 = vpop.xlane.xlu0 %2136
      %v2138 = vmul.f32 %v2116, %v2089
      %v2139 = vmul.f32 %v2119, %v2089
      %v2140 = vmul.f32 %v2122, %v2089
      %v2141 = vmul.f32 %v2125, %v2089
      %v2142 = vmul.f32 %v2128, %v2089
      %v2143 = vmul.f32 %v2131, %v2089
      %v2144 = vmul.f32 %v2134, %v2089
      %v2145 = vmul.f32 %v2137, %v2089
      %v2146 = vadd.f32 %v2138, 1e-05
      %v2147 = vadd.f32 %v2139, 1e-05
      %v2148 = vadd.f32 %v2140, 1e-05
      %v2149 = vadd.f32 %v2141, 1e-05
      %v2150 = vadd.f32 %v2142, 1e-05
      %v2151 = vadd.f32 %v2143, 1e-05
      %v2152 = vadd.f32 %v2144, 1e-05
      %v2153 = vadd.f32 %v2145, 1e-05
      %v2154 = vrsqrt.pop %v2146
      %v2155 = vmul.f32 %v2154, %v2146
      %v2156 = vmul.f32 %v2155, %v2154
      %v2157 = vmul.f32 0.5, %v2156
      %v2158 = vsub.f32 1.5, %v2157
      %v2159 = vmul.f32 %v2154, %v2158
      %vm2160 = vweird.f32 %v2146
      %vm2161 = vweird.f32 %v2154
      %vm2162 = vmor %vm2160, %vm2161
      %v2163 = vsel %vm2162, %v2154, %v2159
      %v2164 = vrsqrt.pop %v2147
      %v2165 = vmul.f32 %v2164, %v2147
      %v2166 = vmul.f32 %v2165, %v2164
      %v2167 = vmul.f32 0.5, %v2166
      %v2168 = vsub.f32 1.5, %v2167
      %v2169 = vmul.f32 %v2164, %v2168
      %vm2170 = vweird.f32 %v2147
      %vm2171 = vweird.f32 %v2164
      %vm2172 = vmor %vm2170, %vm2171
      %v2173 = vsel %vm2172, %v2164, %v2169
      %v2174 = vrsqrt.pop %v2148
      %v2175 = vmul.f32 %v2174, %v2148
      %v2176 = vmul.f32 %v2175, %v2174
      %v2177 = vmul.f32 0.5, %v2176
      %v2178 = vsub.f32 1.5, %v2177
      %v2179 = vmul.f32 %v2174, %v2178
      %vm2180 = vweird.f32 %v2148
      %vm2181 = vweird.f32 %v2174
      %vm2182 = vmor %vm2180, %vm2181
      %v2183 = vsel %vm2182, %v2174, %v2179
      %v2184 = vrsqrt.pop %v2149
      %v2185 = vmul.f32 %v2184, %v2149
      %v2186 = vmul.f32 %v2185, %v2184
      %v2187 = vmul.f32 0.5, %v2186
      %v2188 = vsub.f32 1.5, %v2187
      %v2189 = vmul.f32 %v2184, %v2188
      %vm2190 = vweird.f32 %v2149
      %vm2191 = vweird.f32 %v2184
      %vm2192 = vmor %vm2190, %vm2191
      %v2193 = vsel %vm2192, %v2184, %v2189
      %v2194 = vrsqrt.pop %v2150
      %v2195 = vmul.f32 %v2194, %v2150
      %v2196 = vmul.f32 %v2195, %v2194
      %v2197 = vmul.f32 0.5, %v2196
      %v2198 = vsub.f32 1.5, %v2197
      %v2199 = vmul.f32 %v2194, %v2198
      %vm2200 = vweird.f32 %v2150
      %vm2201 = vweird.f32 %v2194
      %vm2202 = vmor %vm2200, %vm2201
      %v2203 = vsel %vm2202, %v2194, %v2199
      %v2204 = vrsqrt.pop %v2151
      %v2205 = vmul.f32 %v2204, %v2151
      %v2206 = vmul.f32 %v2205, %v2204
      %v2207 = vmul.f32 0.5, %v2206
      %v2208 = vsub.f32 1.5, %v2207
      %v2209 = vmul.f32 %v2204, %v2208
      %vm2210 = vweird.f32 %v2151
      %vm2211 = vweird.f32 %v2204
      %vm2212 = vmor %vm2210, %vm2211
      %v2213 = vsel %vm2212, %v2204, %v2209
      %v2214 = vrsqrt.pop %v2152
      %v2215 = vmul.f32 %v2214, %v2152
      %v2216 = vmul.f32 %v2215, %v2214
      %v2217 = vmul.f32 0.5, %v2216
      %v2218 = vsub.f32 1.5, %v2217
      %v2219 = vmul.f32 %v2214, %v2218
      %vm2220 = vweird.f32 %v2152
      %vm2221 = vweird.f32 %v2214
      %vm2222 = vmor %vm2220, %vm2221
      %v2223 = vsel %vm2222, %v2214, %v2219
      %v2224 = vrsqrt.pop %v2153
      %v2225 = vmul.f32 %v2224, %v2153
      %v2226 = vmul.f32 %v2225, %v2224
      %v2227 = vmul.f32 0.5, %v2226
      %v2228 = vsub.f32 1.5, %v2227
      %v2229 = vmul.f32 %v2224, %v2228
      %vm2230 = vweird.f32 %v2153
      %vm2231 = vweird.f32 %v2224
      %vm2232 = vmor %vm2230, %vm2231
      %v2233 = vsel %vm2232, %v2224, %v2229
      %v2234 = vmul.f32 %v2098, %v2163
      %v2235 = vmul.f32 %v2099, %v2173
      %v2236 = vmul.f32 %v2100, %v2183
      %v2237 = vmul.f32 %v2101, %v2193
      %v2238 = vmul.f32 %v2102, %v2203
      %v2239 = vmul.f32 %v2103, %v2213
      %v2240 = vmul.f32 %v2104, %v2223
      %v2241 = vmul.f32 %v2105, %v2233
      %v2242 = vperm.slane %v559, 1
      %v2243 = vmul.f32 %v2234, %v2242
      %v2244 = vmul.f32 %v2235, %v2242
      %v2245 = vmul.f32 %v2236, %v2242
      %v2246 = vmul.f32 %v2237, %v2242
      %v2247 = vmul.f32 %v2238, %v2242
      %v2248 = vmul.f32 %v2239, %v2242
      %v2249 = vmul.f32 %v2240, %v2242
      %v2250 = vmul.f32 %v2241, %v2242
      %v2251 = vperm.slane %v559, 2
      %v2252 = vadd.f32 %v2243, %v2251
      %v2253 = vadd.f32 %v2244, %v2251
      %v2254 = vadd.f32 %v2245, %v2251
      %v2255 = vadd.f32 %v2246, %v2251
      %v2256 = vadd.f32 %v2247, %v2251
      %v2257 = vadd.f32 %v2248, %v2251
      %v2258 = vadd.f32 %v2249, %v2251
      %v2259 = vadd.f32 %v2250, %v2251
      %v2261 = vperm.slane %v558, 0
      %v2264 = vsel %vm464, %v2252, 0
      %v2267 = vsel %vm464, %v2253, 0
      %v2270 = vsel %vm464, %v2254, 0
      %v2273 = vsel %vm464, %v2255, 0
      %v2276 = vsel %vm464, %v2256, 0
      %v2279 = vsel %vm464, %v2257, 0
      %v2282 = vsel %vm464, %v2258, 0
      %v2285 = vsel %vm464, %v2259, 0
      %2287 = vmatpush.msra.mxu0 0.0
      %2288 = vmatpush.msra.mxu0 0.0
      %2289 = vmatpush.msra.mxu0 0.0
      %2290 = vmatpush.msra.mxu0 0.0
      %2291 = vmatpush.msra.mxu0 0.0
      %2292 = vmatpush.msra.mxu0 0.0
      %2293 = vmatpush.msra.mxu0 0.0
      %2294 = vmatpush.msra.mxu0 0.0
      %2295 = vmatpush.msra.mxu0 0.0
      %2296 = vmatpush.msra.mxu0 0.0
      %2297 = vmatpush.msra.mxu0 0.0
      %2298 = vmatpush.msra.mxu0 0.0
      %2299 = vmatpush.msra.mxu0 %v548
      %2300 = vmatpush.msra.mxu0 %v547
      %2301 = vmatpush.msra.mxu0 %v546
      %2302 = vmatpush.msra.mxu0 %v545
      %2303 = vmatmul.f32.gmra.mxu0 %v2264
      %v2304 = vpop.f32.mrf.mxu0
      %v2305 = vadd.f32 %v2261, %v2304
      %2306 = vmatmul.f32.gmra.mxu0 %v2267
      %v2307 = vpop.f32.mrf.mxu0
      %v2308 = vadd.f32 %v2261, %v2307
      %2309 = vmatmul.f32.gmra.mxu0 %v2270
      %v2310 = vpop.f32.mrf.mxu0
      %v2311 = vadd.f32 %v2261, %v2310
      %2312 = vmatmul.f32.gmra.mxu0 %v2273
      %v2313 = vpop.f32.mrf.mxu0
      %v2314 = vadd.f32 %v2261, %v2313
      %2315 = vmatmul.f32.gmra.mxu0 %v2276
      %v2316 = vpop.f32.mrf.mxu0
      %v2317 = vadd.f32 %v2261, %v2316
      %2318 = vmatmul.f32.gmra.mxu0 %v2279
      %v2319 = vpop.f32.mrf.mxu0
      %v2320 = vadd.f32 %v2261, %v2319
      %2321 = vmatmul.f32.gmra.mxu0 %v2282
      %v2322 = vpop.f32.mrf.mxu0
      %v2323 = vadd.f32 %v2261, %v2322
      %2324 = vmatmul.f32.gmra.mxu0 %v2285
      %v2325 = vpop.f32.mrf.mxu0
      %v2326 = vadd.f32 %v2261, %v2325
      %2327 = vdwg.mxu0
      %v2328 = vmax.f32 %v2305, 0.0
      %v2329 = vmax.f32 %v2308, 0.0
      %v2330 = vmax.f32 %v2311, 0.0
      %v2331 = vmax.f32 %v2314, 0.0
      %v2332 = vmax.f32 %v2317, 0.0
      %v2333 = vmax.f32 %v2320, 0.0
      %v2334 = vmax.f32 %v2323, 0.0
      %v2335 = vmax.f32 %v2326, 0.0
      %v2336 = vperm.slane %v559, 3
      %v2338 = vsel %vm742, %v2328, 0
      %v2341 = vsel %vm742, %v2329, 0
      %v2344 = vsel %vm742, %v2330, 0
      %v2347 = vsel %vm742, %v2331, 0
      %v2350 = vsel %vm742, %v2332, 0
      %v2353 = vsel %vm742, %v2333, 0
      %v2356 = vsel %vm742, %v2334, 0
      %v2359 = vsel %vm742, %v2335, 0
      %2361 = vmatpush.msra.mxu0 0.0
      %2362 = vmatpush.msra.mxu0 0.0
      %2363 = vmatpush.msra.mxu0 0.0
      %2364 = vmatpush.msra.mxu0 0.0
      %2365 = vmatpush.msra.mxu0 0.0
      %2366 = vmatpush.msra.mxu0 0.0
      %2367 = vmatpush.msra.mxu0 0.0
      %2368 = vmatpush.msra.mxu0 0.0
      %2369 = vmatpush.msra.mxu0 %v556
      %2370 = vmatpush.msra.mxu0 %v555
      %2371 = vmatpush.msra.mxu0 %v554
      %2372 = vmatpush.msra.mxu0 %v553
      %2373 = vmatpush.msra.mxu0 %v552
      %2374 = vmatpush.msra.mxu0 %v551
      %2375 = vmatpush.msra.mxu0 %v550
      %2376 = vmatpush.msra.mxu0 %v549
      %2377 = vmatmul.f32.gmra.mxu0 %v2338
      %v2378 = vpop.f32.mrf.mxu0
      %v2379 = vadd.f32 %v2336, %v2378
      %2380 = vmatmul.f32.gmra.mxu0 %v2341
      %v2381 = vpop.f32.mrf.mxu0
      %v2382 = vadd.f32 %v2336, %v2381
      %2383 = vmatmul.f32.gmra.mxu0 %v2344
      %v2384 = vpop.f32.mrf.mxu0
      %v2385 = vadd.f32 %v2336, %v2384
      %2386 = vmatmul.f32.gmra.mxu0 %v2347
      %v2387 = vpop.f32.mrf.mxu0
      %v2388 = vadd.f32 %v2336, %v2387
      %2389 = vmatmul.f32.gmra.mxu0 %v2350
      %v2390 = vpop.f32.mrf.mxu0
      %v2391 = vadd.f32 %v2336, %v2390
      %2392 = vmatmul.f32.gmra.mxu0 %v2353
      %v2393 = vpop.f32.mrf.mxu0
      %v2394 = vadd.f32 %v2336, %v2393
      %2395 = vmatmul.f32.gmra.mxu0 %v2356
      %v2396 = vpop.f32.mrf.mxu0
      %v2397 = vadd.f32 %v2336, %v2396
      %2398 = vmatmul.f32.gmra.mxu0 %v2359
      %v2399 = vpop.f32.mrf.mxu0
      %v2400 = vadd.f32 %v2336, %v2399
      %2401 = vdwg.mxu0
      %v2402 = vadd.f32 %v2252, %v2379
      %v2403 = vadd.f32 %v2253, %v2382
      %v2404 = vadd.f32 %v2254, %v2385
      %v2405 = vadd.f32 %v2255, %v2388
      %v2406 = vadd.f32 %v2256, %v2391
      %v2407 = vadd.f32 %v2257, %v2394
      %v2408 = vadd.f32 %v2258, %v2397
      %v2409 = vadd.f32 %v2259, %v2400
      %v2410 = vsel %vm464, %v2402, 0.0
      %2411 = vadd.xlane.f32.xlu0 %v2410
      %v2412 = vpop.xlane.xlu0 %2411
      %v2413 = vsel %vm464, %v2403, 0.0
      %2414 = vadd.xlane.f32.xlu0 %v2413
      %v2415 = vpop.xlane.xlu0 %2414
      %v2416 = vsel %vm464, %v2404, 0.0
      %2417 = vadd.xlane.f32.xlu0 %v2416
      %v2418 = vpop.xlane.xlu0 %2417
      %v2419 = vsel %vm464, %v2405, 0.0
      %2420 = vadd.xlane.f32.xlu0 %v2419
      %v2421 = vpop.xlane.xlu0 %2420
      %v2422 = vsel %vm464, %v2406, 0.0
      %2423 = vadd.xlane.f32.xlu0 %v2422
      %v2424 = vpop.xlane.xlu0 %2423
      %v2425 = vsel %vm464, %v2407, 0.0
      %2426 = vadd.xlane.f32.xlu0 %v2425
      %v2427 = vpop.xlane.xlu0 %2426
      %v2428 = vsel %vm464, %v2408, 0.0
      %2429 = vadd.xlane.f32.xlu0 %v2428
      %v2430 = vpop.xlane.xlu0 %2429
      %v2431 = vsel %vm464, %v2409, 0.0
      %2432 = vadd.xlane.f32.xlu0 %v2431
      %v2433 = vpop.xlane.xlu0 %2432
      %v2434 = vmul.f32 %v2412, %v2089
      %v2435 = vmul.f32 %v2415, %v2089
      %v2436 = vmul.f32 %v2418, %v2089
      %v2437 = vmul.f32 %v2421, %v2089
      %v2438 = vmul.f32 %v2424, %v2089
      %v2439 = vmul.f32 %v2427, %v2089
      %v2440 = vmul.f32 %v2430, %v2089
      %v2441 = vmul.f32 %v2433, %v2089
      %v2442 = vsub.f32 %v2402, %v2434
      %v2443 = vsub.f32 %v2403, %v2435
      %v2444 = vsub.f32 %v2404, %v2436
      %v2445 = vsub.f32 %v2405, %v2437
      %v2446 = vsub.f32 %v2406, %v2438
      %v2447 = vsub.f32 %v2407, %v2439
      %v2448 = vsub.f32 %v2408, %v2440
      %v2449 = vsub.f32 %v2409, %v2441
      %v2450 = vmul.f32 %v2442, %v2442
      %v2451 = vmul.f32 %v2443, %v2443
      %v2452 = vmul.f32 %v2444, %v2444
      %v2453 = vmul.f32 %v2445, %v2445
      %v2454 = vmul.f32 %v2446, %v2446
      %v2455 = vmul.f32 %v2447, %v2447
      %v2456 = vmul.f32 %v2448, %v2448
      %v2457 = vmul.f32 %v2449, %v2449
      %v2458 = vsel %vm464, %v2450, 0.0
      %2459 = vadd.xlane.f32.xlu0 %v2458
      %v2460 = vpop.xlane.xlu0 %2459
      %v2461 = vsel %vm464, %v2451, 0.0
      %2462 = vadd.xlane.f32.xlu0 %v2461
      %v2463 = vpop.xlane.xlu0 %2462
      %v2464 = vsel %vm464, %v2452, 0.0
      %2465 = vadd.xlane.f32.xlu0 %v2464
      %v2466 = vpop.xlane.xlu0 %2465
      %v2467 = vsel %vm464, %v2453, 0.0
      %2468 = vadd.xlane.f32.xlu0 %v2467
      %v2469 = vpop.xlane.xlu0 %2468
      %v2470 = vsel %vm464, %v2454, 0.0
      %2471 = vadd.xlane.f32.xlu0 %v2470
      %v2472 = vpop.xlane.xlu0 %2471
      %v2473 = vsel %vm464, %v2455, 0.0
      %2474 = vadd.xlane.f32.xlu0 %v2473
      %v2475 = vpop.xlane.xlu0 %2474
      %v2476 = vsel %vm464, %v2456, 0.0
      %2477 = vadd.xlane.f32.xlu0 %v2476
      %v2478 = vpop.xlane.xlu0 %2477
      %v2479 = vsel %vm464, %v2457, 0.0
      %2480 = vadd.xlane.f32.xlu0 %v2479
      %v2481 = vpop.xlane.xlu0 %2480
      %v2482 = vmul.f32 %v2460, %v2089
      %v2483 = vmul.f32 %v2463, %v2089
      %v2484 = vmul.f32 %v2466, %v2089
      %v2485 = vmul.f32 %v2469, %v2089
      %v2486 = vmul.f32 %v2472, %v2089
      %v2487 = vmul.f32 %v2475, %v2089
      %v2488 = vmul.f32 %v2478, %v2089
      %v2489 = vmul.f32 %v2481, %v2089
      %v2490 = vadd.f32 %v2482, 1e-05
      %v2491 = vadd.f32 %v2483, 1e-05
      %v2492 = vadd.f32 %v2484, 1e-05
      %v2493 = vadd.f32 %v2485, 1e-05
      %v2494 = vadd.f32 %v2486, 1e-05
      %v2495 = vadd.f32 %v2487, 1e-05
      %v2496 = vadd.f32 %v2488, 1e-05
      %v2497 = vadd.f32 %v2489, 1e-05
      %v2498 = vrsqrt.pop %v2490
      %v2499 = vmul.f32 %v2498, %v2490
      %v2500 = vmul.f32 %v2499, %v2498
      %v2501 = vmul.f32 0.5, %v2500
      %v2502 = vsub.f32 1.5, %v2501
      %v2503 = vmul.f32 %v2498, %v2502
      %vm2504 = vweird.f32 %v2490
      %vm2505 = vweird.f32 %v2498
      %vm2506 = vmor %vm2504, %vm2505
      %v2507 = vsel %vm2506, %v2498, %v2503
      %v2508 = vrsqrt.pop %v2491
      %v2509 = vmul.f32 %v2508, %v2491
      %v2510 = vmul.f32 %v2509, %v2508
      %v2511 = vmul.f32 0.5, %v2510
      %v2512 = vsub.f32 1.5, %v2511
      %v2513 = vmul.f32 %v2508, %v2512
      %vm2514 = vweird.f32 %v2491
      %vm2515 = vweird.f32 %v2508
      %vm2516 = vmor %vm2514, %vm2515
      %v2517 = vsel %vm2516, %v2508, %v2513
      %v2518 = vrsqrt.pop %v2492
      %v2519 = vmul.f32 %v2518, %v2492
      %v2520 = vmul.f32 %v2519, %v2518
      %v2521 = vmul.f32 0.5, %v2520
      %v2522 = vsub.f32 1.5, %v2521
      %v2523 = vmul.f32 %v2518, %v2522
      %vm2524 = vweird.f32 %v2492
      %vm2525 = vweird.f32 %v2518
      %vm2526 = vmor %vm2524, %vm2525
      %v2527 = vsel %vm2526, %v2518, %v2523
      %v2528 = vrsqrt.pop %v2493
      %v2529 = vmul.f32 %v2528, %v2493
      %v2530 = vmul.f32 %v2529, %v2528
      %v2531 = vmul.f32 0.5, %v2530
      %v2532 = vsub.f32 1.5, %v2531
      %v2533 = vmul.f32 %v2528, %v2532
      %vm2534 = vweird.f32 %v2493
      %vm2535 = vweird.f32 %v2528
      %vm2536 = vmor %vm2534, %vm2535
      %v2537 = vsel %vm2536, %v2528, %v2533
      %v2538 = vrsqrt.pop %v2494
      %v2539 = vmul.f32 %v2538, %v2494
      %v2540 = vmul.f32 %v2539, %v2538
      %v2541 = vmul.f32 0.5, %v2540
      %v2542 = vsub.f32 1.5, %v2541
      %v2543 = vmul.f32 %v2538, %v2542
      %vm2544 = vweird.f32 %v2494
      %vm2545 = vweird.f32 %v2538
      %vm2546 = vmor %vm2544, %vm2545
      %v2547 = vsel %vm2546, %v2538, %v2543
      %v2548 = vrsqrt.pop %v2495
      %v2549 = vmul.f32 %v2548, %v2495
      %v2550 = vmul.f32 %v2549, %v2548
      %v2551 = vmul.f32 0.5, %v2550
      %v2552 = vsub.f32 1.5, %v2551
      %v2553 = vmul.f32 %v2548, %v2552
      %vm2554 = vweird.f32 %v2495
      %vm2555 = vweird.f32 %v2548
      %vm2556 = vmor %vm2554, %vm2555
      %v2557 = vsel %vm2556, %v2548, %v2553
      %v2558 = vrsqrt.pop %v2496
      %v2559 = vmul.f32 %v2558, %v2496
      %v2560 = vmul.f32 %v2559, %v2558
      %v2561 = vmul.f32 0.5, %v2560
      %v2562 = vsub.f32 1.5, %v2561
      %v2563 = vmul.f32 %v2558, %v2562
      %vm2564 = vweird.f32 %v2496
      %vm2565 = vweird.f32 %v2558
      %vm2566 = vmor %vm2564, %vm2565
      %v2567 = vsel %vm2566, %v2558, %v2563
      %v2568 = vrsqrt.pop %v2497
      %v2569 = vmul.f32 %v2568, %v2497
      %v2570 = vmul.f32 %v2569, %v2568
      %v2571 = vmul.f32 0.5, %v2570
      %v2572 = vsub.f32 1.5, %v2571
      %v2573 = vmul.f32 %v2568, %v2572
      %vm2574 = vweird.f32 %v2497
      %vm2575 = vweird.f32 %v2568
      %vm2576 = vmor %vm2574, %vm2575
      %v2577 = vsel %vm2576, %v2568, %v2573
      %v2578 = vmul.f32 %v2442, %v2507
      %v2579 = vmul.f32 %v2443, %v2517
      %v2580 = vmul.f32 %v2444, %v2527
      %v2581 = vmul.f32 %v2445, %v2537
      %v2582 = vmul.f32 %v2446, %v2547
      %v2583 = vmul.f32 %v2447, %v2557
      %v2584 = vmul.f32 %v2448, %v2567
      %v2585 = vmul.f32 %v2449, %v2577
      %v2586 = vperm.slane %v559, 4
      %v2587 = vmul.f32 %v2578, %v2586
      %v2588 = vmul.f32 %v2579, %v2586
      %v2589 = vmul.f32 %v2580, %v2586
      %v2590 = vmul.f32 %v2581, %v2586
      %v2591 = vmul.f32 %v2582, %v2586
      %v2592 = vmul.f32 %v2583, %v2586
      %v2593 = vmul.f32 %v2584, %v2586
      %v2594 = vmul.f32 %v2585, %v2586
      %v2595 = vperm.slane %v559, 5
      %v2596 = vadd.f32 %v2587, %v2595
      %v2597 = vadd.f32 %v2588, %v2595
      %v2598 = vadd.f32 %v2589, %v2595
      %v2599 = vadd.f32 %v2590, %v2595
      %v2600 = vadd.f32 %v2591, %v2595
      %v2601 = vadd.f32 %v2592, %v2595
      %v2602 = vadd.f32 %v2593, %v2595
      %v2603 = vadd.f32 %v2594, %v2595
      %s2604 = scalar_lea.vmem %s3, 32
      %v2605 = vld [vmem:[%s2604] sm:$0xff]
      %v2606 = vld [vmem:[%s2604 + $0x8] sm:$0xff]
      %v2607 = vld [vmem:[%s2604 + $0x10] sm:$0xff]
      %v2608 = vld [vmem:[%s2604 + $0x18] sm:$0xff]
      %s2609 = scalar_lea.vmem %s4, 32
      %v2610 = vld [vmem:[%s2609] sm:$0xff]
      %v2611 = vld [vmem:[%s2609 + $0x8] sm:$0xff]
      %v2612 = vld [vmem:[%s2609 + $0x10] sm:$0xff]
      %v2613 = vld [vmem:[%s2609 + $0x18] sm:$0xff]
      %s2614 = scalar_lea.vmem %s5, 32
      %v2615 = vld [vmem:[%s2614] sm:$0xff]
      %v2616 = vld [vmem:[%s2614 + $0x8] sm:$0xff]
      %v2617 = vld [vmem:[%s2614 + $0x10] sm:$0xff]
      %v2618 = vld [vmem:[%s2614 + $0x18] sm:$0xff]
      %s2619 = scalar_lea.vmem %s6, 64
      %v2620 = vld [vmem:[%s2619] sm:$0xff]
      %v2621 = vld [vmem:[%s2619 + $0x8] sm:$0xff]
      %v2622 = vld [vmem:[%s2619 + $0x10] sm:$0xff]
      %v2623 = vld [vmem:[%s2619 + $0x18] sm:$0xff]
      %v2624 = vld [vmem:[%s2619 + $0x20] sm:$0xff]
      %v2625 = vld [vmem:[%s2619 + $0x28] sm:$0xff]
      %v2626 = vld [vmem:[%s2619 + $0x30] sm:$0xff]
      %v2627 = vld [vmem:[%s2619 + $0x38] sm:$0xff]
      %s2628 = scalar_lea.vmem %s7, 1
      %v2629 = vld [vmem:[%s2628] sm:$0x1]
      %s2630 = scalar_lea.vmem %s8, 1
      %v2631 = vld [vmem:[%s2630] sm:$0x1]
      %s2632 = scalar_lea.vmem %s9, 8
      %v2633 = vld [vmem:[%s2632] sm:$0x3f]
      %v2635 = vperm.slane %v2629, 0
      %v2638 = vsel %vm464, %v2596, 0
      %v2641 = vsel %vm464, %v2597, 0
      %v2644 = vsel %vm464, %v2598, 0
      %v2647 = vsel %vm464, %v2599, 0
      %v2650 = vsel %vm464, %v2600, 0
      %v2653 = vsel %vm464, %v2601, 0
      %v2656 = vsel %vm464, %v2602, 0
      %v2659 = vsel %vm464, %v2603, 0
      %2661 = vmatpush.msra.mxu0 0.0
      %2662 = vmatpush.msra.mxu0 0.0
      %2663 = vmatpush.msra.mxu0 0.0
      %2664 = vmatpush.msra.mxu0 0.0
      %2665 = vmatpush.msra.mxu0 0.0
      %2666 = vmatpush.msra.mxu0 0.0
      %2667 = vmatpush.msra.mxu0 0.0
      %2668 = vmatpush.msra.mxu0 0.0
      %2669 = vmatpush.msra.mxu0 0.0
      %2670 = vmatpush.msra.mxu0 0.0
      %2671 = vmatpush.msra.mxu0 0.0
      %2672 = vmatpush.msra.mxu0 0.0
      %2673 = vmatpush.msra.mxu0 %v2608
      %2674 = vmatpush.msra.mxu0 %v2607
      %2675 = vmatpush.msra.mxu0 %v2606
      %2676 = vmatpush.msra.mxu0 %v2605
      %2677 = vmatmul.f32.gmra.mxu0 %v2638
      %v2678 = vpop.f32.mrf.mxu0
      %v2679 = vadd.f32 %v2635, %v2678
      %2680 = vmatmul.f32.gmra.mxu0 %v2641
      %v2681 = vpop.f32.mrf.mxu0
      %v2682 = vadd.f32 %v2635, %v2681
      %2683 = vmatmul.f32.gmra.mxu0 %v2644
      %v2684 = vpop.f32.mrf.mxu0
      %v2685 = vadd.f32 %v2635, %v2684
      %2686 = vmatmul.f32.gmra.mxu0 %v2647
      %v2687 = vpop.f32.mrf.mxu0
      %v2688 = vadd.f32 %v2635, %v2687
      %2689 = vmatmul.f32.gmra.mxu0 %v2650
      %v2690 = vpop.f32.mrf.mxu0
      %v2691 = vadd.f32 %v2635, %v2690
      %2692 = vmatmul.f32.gmra.mxu0 %v2653
      %v2693 = vpop.f32.mrf.mxu0
      %v2694 = vadd.f32 %v2635, %v2693
      %2695 = vmatmul.f32.gmra.mxu0 %v2656
      %v2696 = vpop.f32.mrf.mxu0
      %v2697 = vadd.f32 %v2635, %v2696
      %2698 = vmatmul.f32.gmra.mxu0 %v2659
      %v2699 = vpop.f32.mrf.mxu0
      %v2700 = vadd.f32 %v2635, %v2699
      %2701 = vdwg.mxu0
      %v2702 = vmul.f32 %v2679, 0.35355338
      %v2703 = vmul.f32 %v2682, 0.35355338
      %v2704 = vmul.f32 %v2685, 0.35355338
      %v2705 = vmul.f32 %v2688, 0.35355338
      %v2706 = vmul.f32 %v2691, 0.35355338
      %v2707 = vmul.f32 %v2694, 0.35355338
      %v2708 = vmul.f32 %v2697, 0.35355338
      %v2709 = vmul.f32 %v2700, 0.35355338
      %2718 = vrot.lane.b32.xlu0 %v2679, 96
      %v2719 = vpop.permute.xlu0 %2718
      %2720 = vrot.lane.b32.xlu0 %v2682, 96
      %v2721 = vpop.permute.xlu0 %2720
      %2722 = vrot.lane.b32.xlu0 %v2685, 96
      %v2723 = vpop.permute.xlu0 %2722
      %2724 = vrot.lane.b32.xlu0 %v2688, 96
      %v2725 = vpop.permute.xlu0 %2724
      %2726 = vrot.lane.b32.xlu0 %v2691, 96
      %v2727 = vpop.permute.xlu0 %2726
      %2728 = vrot.lane.b32.xlu0 %v2694, 96
      %v2729 = vpop.permute.xlu0 %2728
      %2730 = vrot.lane.b32.xlu0 %v2697, 96
      %v2731 = vpop.permute.xlu0 %2730
      %2732 = vrot.lane.b32.xlu0 %v2700, 96
      %v2733 = vpop.permute.xlu0 %2732
      %v2735 = vsel %vm660, %v2702, 0
      %v2738 = vsel %vm660, %v2703, 0
      %v2741 = vsel %vm660, %v2704, 0
      %v2744 = vsel %vm660, %v2705, 0
      %v2747 = vsel %vm660, %v2706, 0
      %v2750 = vsel %vm660, %v2707, 0
      %v2753 = vsel %vm660, %v2708, 0
      %v2756 = vsel %vm660, %v2709, 0
      %v2758 = vsel %vm660, %v2719, 0
      %v2760 = vsel %vm660, %v2721, 0
      %v2762 = vsel %vm660, %v2723, 0
      %v2764 = vsel %vm660, %v2725, 0
      %v2766 = vsel %vm660, %v2727, 0
      %v2768 = vsel %vm660, %v2729, 0
      %v2770 = vsel %vm660, %v2731, 0
      %v2772 = vsel %vm660, %v2733, 0
      %2774 = vmatpush.xpose.msra.mxu0 0.0
      %2775 = vmatpush.xpose.msra.mxu0 0.0
      %2776 = vmatpush.xpose.msra.mxu0 0.0
      %2777 = vmatpush.xpose.msra.mxu0 0.0
      %2778 = vmatpush.xpose.msra.mxu0 0.0
      %2779 = vmatpush.xpose.msra.mxu0 0.0
      %2780 = vmatpush.xpose.msra.mxu0 0.0
      %2781 = vmatpush.xpose.msra.mxu0 0.0
      %2782 = vmatpush.xpose.msra.mxu0 %v2772
      %2783 = vmatpush.xpose.msra.mxu0 %v2770
      %2784 = vmatpush.xpose.msra.mxu0 %v2768
      %2785 = vmatpush.xpose.msra.mxu0 %v2766
      %2786 = vmatpush.xpose.msra.mxu0 %v2764
      %2787 = vmatpush.xpose.msra.mxu0 %v2762
      %2788 = vmatpush.xpose.msra.mxu0 %v2760
      %2789 = vmatpush.xpose.msra.mxu0 %v2758
      %2790 = vmatmul.f32.gmra.mxu0 %v2735
      %v2791 = vpop.f32.mrf.mxu0
      %v2792 = vadd.f32 %v529, %v2791
      %2793 = vmatmul.f32.gmra.mxu0 %v2738
      %v2794 = vpop.f32.mrf.mxu0
      %v2795 = vadd.f32 %v530, %v2794
      %2796 = vmatmul.f32.gmra.mxu0 %v2741
      %v2797 = vpop.f32.mrf.mxu0
      %v2798 = vadd.f32 %v531, %v2797
      %2799 = vmatmul.f32.gmra.mxu0 %v2744
      %v2800 = vpop.f32.mrf.mxu0
      %v2801 = vadd.f32 %v532, %v2800
      %2802 = vmatmul.f32.gmra.mxu0 %v2747
      %v2803 = vpop.f32.mrf.mxu0
      %v2804 = vadd.f32 %v533, %v2803
      %2805 = vmatmul.f32.gmra.mxu0 %v2750
      %v2806 = vpop.f32.mrf.mxu0
      %v2807 = vadd.f32 %v534, %v2806
      %2808 = vmatmul.f32.gmra.mxu0 %v2753
      %v2809 = vpop.f32.mrf.mxu0
      %v2810 = vadd.f32 %v535, %v2809
      %2811 = vmatmul.f32.gmra.mxu0 %v2756
      %v2812 = vpop.f32.mrf.mxu0
      %v2813 = vadd.f32 %v536, %v2812
      %2814 = vdwg.mxu0
      %v2815 = vsel %vm742, %v2792, -inf
      %2816 = vmax.xlane.f32.xlu0 %v2815
      %v2817 = vpop.xlane.xlu0 %2816
      %v2818 = vsel %vm742, %v2795, -inf
      %2819 = vmax.xlane.f32.xlu0 %v2818
      %v2820 = vpop.xlane.xlu0 %2819
      %v2821 = vsel %vm742, %v2798, -inf
      %2822 = vmax.xlane.f32.xlu0 %v2821
      %v2823 = vpop.xlane.xlu0 %2822
      %v2824 = vsel %vm742, %v2801, -inf
      %2825 = vmax.xlane.f32.xlu0 %v2824
      %v2826 = vpop.xlane.xlu0 %2825
      %v2827 = vsel %vm742, %v2804, -inf
      %2828 = vmax.xlane.f32.xlu0 %v2827
      %v2829 = vpop.xlane.xlu0 %2828
      %v2830 = vsel %vm742, %v2807, -inf
      %2831 = vmax.xlane.f32.xlu0 %v2830
      %v2832 = vpop.xlane.xlu0 %2831
      %v2833 = vsel %vm742, %v2810, -inf
      %2834 = vmax.xlane.f32.xlu0 %v2833
      %v2835 = vpop.xlane.xlu0 %2834
      %v2836 = vsel %vm742, %v2813, -inf
      %2837 = vmax.xlane.f32.xlu0 %v2836
      %v2838 = vpop.xlane.xlu0 %2837
      %v2839 = vsub.f32 %v2792, %v2817
      %v2840 = vsub.f32 %v2795, %v2820
      %v2841 = vsub.f32 %v2798, %v2823
      %v2842 = vsub.f32 %v2801, %v2826
      %v2843 = vsub.f32 %v2804, %v2829
      %v2844 = vsub.f32 %v2807, %v2832
      %v2845 = vsub.f32 %v2810, %v2835
      %v2846 = vsub.f32 %v2813, %v2838
      %v2847 = vmul.f32 %v2839, 1.442695
      %v2848 = vpow.pop %v2847
      %v2849 = vmul.f32 %v2840, 1.442695
      %v2850 = vpow.pop %v2849
      %v2851 = vmul.f32 %v2841, 1.442695
      %v2852 = vpow.pop %v2851
      %v2853 = vmul.f32 %v2842, 1.442695
      %v2854 = vpow.pop %v2853
      %v2855 = vmul.f32 %v2843, 1.442695
      %v2856 = vpow.pop %v2855
      %v2857 = vmul.f32 %v2844, 1.442695
      %v2858 = vpow.pop %v2857
      %v2859 = vmul.f32 %v2845, 1.442695
      %v2860 = vpow.pop %v2859
      %v2861 = vmul.f32 %v2846, 1.442695
      %v2862 = vpow.pop %v2861
      %v2863 = vsel %vm742, %v2848, 0.0
      %2864 = vadd.xlane.f32.xlu0 %v2863
      %v2865 = vpop.xlane.xlu0 %2864
      %v2866 = vsel %vm742, %v2850, 0.0
      %2867 = vadd.xlane.f32.xlu0 %v2866
      %v2868 = vpop.xlane.xlu0 %2867
      %v2869 = vsel %vm742, %v2852, 0.0
      %2870 = vadd.xlane.f32.xlu0 %v2869
      %v2871 = vpop.xlane.xlu0 %2870
      %v2872 = vsel %vm742, %v2854, 0.0
      %2873 = vadd.xlane.f32.xlu0 %v2872
      %v2874 = vpop.xlane.xlu0 %2873
      %v2875 = vsel %vm742, %v2856, 0.0
      %2876 = vadd.xlane.f32.xlu0 %v2875
      %v2877 = vpop.xlane.xlu0 %2876
      %v2878 = vsel %vm742, %v2858, 0.0
      %2879 = vadd.xlane.f32.xlu0 %v2878
      %v2880 = vpop.xlane.xlu0 %2879
      %v2881 = vsel %vm742, %v2860, 0.0
      %2882 = vadd.xlane.f32.xlu0 %v2881
      %v2883 = vpop.xlane.xlu0 %2882
      %v2884 = vsel %vm742, %v2862, 0.0
      %2885 = vadd.xlane.f32.xlu0 %v2884
      %v2886 = vpop.xlane.xlu0 %2885
      %v2887 = vrcp.pop %v2865
      %v2888 = vrcp.pop %v2868
      %v2889 = vrcp.pop %v2871
      %v2890 = vrcp.pop %v2874
      %v2891 = vrcp.pop %v2877
      %v2892 = vrcp.pop %v2880
      %v2893 = vrcp.pop %v2883
      %v2894 = vrcp.pop %v2886
      %v2895 = vmul.f32 %v2848, %v2887
      %v2896 = vmul.f32 %v2850, %v2888
      %v2897 = vmul.f32 %v2852, %v2889
      %v2898 = vmul.f32 %v2854, %v2890
      %v2899 = vmul.f32 %v2856, %v2891
      %v2900 = vmul.f32 %v2858, %v2892
      %v2901 = vmul.f32 %v2860, %v2893
      %v2902 = vmul.f32 %v2862, %v2894
      %2903 = vrot.lane.b32.xlu0 %v2679, 64
      %v2904 = vpop.permute.xlu0 %2903
      %2905 = vrot.lane.b32.xlu0 %v2682, 64
      %v2906 = vpop.permute.xlu0 %2905
      %2907 = vrot.lane.b32.xlu0 %v2685, 64
      %v2908 = vpop.permute.xlu0 %2907
      %2909 = vrot.lane.b32.xlu0 %v2688, 64
      %v2910 = vpop.permute.xlu0 %2909
      %2911 = vrot.lane.b32.xlu0 %v2691, 64
      %v2912 = vpop.permute.xlu0 %2911
      %2913 = vrot.lane.b32.xlu0 %v2694, 64
      %v2914 = vpop.permute.xlu0 %2913
      %2915 = vrot.lane.b32.xlu0 %v2697, 64
      %v2916 = vpop.permute.xlu0 %2915
      %2917 = vrot.lane.b32.xlu0 %v2700, 64
      %v2918 = vpop.permute.xlu0 %2917
      %v2928 = vsel %vm742, %v2895, 0
      %v2931 = vsel %vm742, %v2896, 0
      %v2934 = vsel %vm742, %v2897, 0
      %v2937 = vsel %vm742, %v2898, 0
      %v2940 = vsel %vm742, %v2899, 0
      %v2943 = vsel %vm742, %v2900, 0
      %v2946 = vsel %vm742, %v2901, 0
      %v2949 = vsel %vm742, %v2902, 0
      %2951 = vmatpush.msra.mxu0 0.0
      %2952 = vmatpush.msra.mxu0 0.0
      %2953 = vmatpush.msra.mxu0 0.0
      %2954 = vmatpush.msra.mxu0 0.0
      %2955 = vmatpush.msra.mxu0 0.0
      %2956 = vmatpush.msra.mxu0 0.0
      %2957 = vmatpush.msra.mxu0 0.0
      %2958 = vmatpush.msra.mxu0 0.0
      %2959 = vmatpush.msra.mxu0 %v2918
      %2960 = vmatpush.msra.mxu0 %v2916
      %2961 = vmatpush.msra.mxu0 %v2914
      %2962 = vmatpush.msra.mxu0 %v2912
      %2963 = vmatpush.msra.mxu0 %v2910
      %2964 = vmatpush.msra.mxu0 %v2908
      %2965 = vmatpush.msra.mxu0 %v2906
      %2966 = vmatpush.msra.mxu0 %v2904
      %2967 = vmatmul.f32.gmra.mxu0 %v2928
      %v2968 = vpop.f32.mrf.mxu0
      %v2969 = vadd.f32 0.0, %v2968
      %2970 = vmatmul.f32.gmra.mxu0 %v2931
      %v2971 = vpop.f32.mrf.mxu0
      %v2972 = vadd.f32 0.0, %v2971
      %2973 = vmatmul.f32.gmra.mxu0 %v2934
      %v2974 = vpop.f32.mrf.mxu0
      %v2975 = vadd.f32 0.0, %v2974
      %2976 = vmatmul.f32.gmra.mxu0 %v2937
      %v2977 = vpop.f32.mrf.mxu0
      %v2978 = vadd.f32 0.0, %v2977
      %2979 = vmatmul.f32.gmra.mxu0 %v2940
      %v2980 = vpop.f32.mrf.mxu0
      %v2981 = vadd.f32 0.0, %v2980
      %2982 = vmatmul.f32.gmra.mxu0 %v2943
      %v2983 = vpop.f32.mrf.mxu0
      %v2984 = vadd.f32 0.0, %v2983
      %2985 = vmatmul.f32.gmra.mxu0 %v2946
      %v2986 = vpop.f32.mrf.mxu0
      %v2987 = vadd.f32 0.0, %v2986
      %2988 = vmatmul.f32.gmra.mxu0 %v2949
      %v2989 = vpop.f32.mrf.mxu0
      %v2990 = vadd.f32 0.0, %v2989
      %2991 = vdwg.mxu0
      %2992 = vrot.lane.b32.xlu0 %v2702, 120
      %v2993 = vpop.permute.xlu0 %2992
      %2994 = vrot.lane.b32.xlu0 %v2703, 120
      %v2995 = vpop.permute.xlu0 %2994
      %2996 = vrot.lane.b32.xlu0 %v2704, 120
      %v2997 = vpop.permute.xlu0 %2996
      %2998 = vrot.lane.b32.xlu0 %v2705, 120
      %v2999 = vpop.permute.xlu0 %2998
      %3000 = vrot.lane.b32.xlu0 %v2706, 120
      %v3001 = vpop.permute.xlu0 %3000
      %3002 = vrot.lane.b32.xlu0 %v2707, 120
      %v3003 = vpop.permute.xlu0 %3002
      %3004 = vrot.lane.b32.xlu0 %v2708, 120
      %v3005 = vpop.permute.xlu0 %3004
      %3006 = vrot.lane.b32.xlu0 %v2709, 120
      %v3007 = vpop.permute.xlu0 %3006
      %3008 = vrot.lane.b32.xlu0 %v2679, 88
      %v3009 = vpop.permute.xlu0 %3008
      %3010 = vrot.lane.b32.xlu0 %v2682, 88
      %v3011 = vpop.permute.xlu0 %3010
      %3012 = vrot.lane.b32.xlu0 %v2685, 88
      %v3013 = vpop.permute.xlu0 %3012
      %3014 = vrot.lane.b32.xlu0 %v2688, 88
      %v3015 = vpop.permute.xlu0 %3014
      %3016 = vrot.lane.b32.xlu0 %v2691, 88
      %v3017 = vpop.permute.xlu0 %3016
      %3018 = vrot.lane.b32.xlu0 %v2694, 88
      %v3019 = vpop.permute.xlu0 %3018
      %3020 = vrot.lane.b32.xlu0 %v2697, 88
      %v3021 = vpop.permute.xlu0 %3020
      %3022 = vrot.lane.b32.xlu0 %v2700, 88
      %v3023 = vpop.permute.xlu0 %3022
      %v3024 = vsel %vm660, %v2993, 0
      %v3026 = vsel %vm660, %v2995, 0
      %v3028 = vsel %vm660, %v2997, 0
      %v3030 = vsel %vm660, %v2999, 0
      %v3032 = vsel %vm660, %v3001, 0
      %v3034 = vsel %vm660, %v3003, 0
      %v3036 = vsel %vm660, %v3005, 0
      %v3038 = vsel %vm660, %v3007, 0
      %v3040 = vsel %vm660, %v3009, 0
      %v3042 = vsel %vm660, %v3011, 0
      %v3044 = vsel %vm660, %v3013, 0
      %v3046 = vsel %vm660, %v3015, 0
      %v3048 = vsel %vm660, %v3017, 0
      %v3050 = vsel %vm660, %v3019, 0
      %v3052 = vsel %vm660, %v3021, 0
      %v3054 = vsel %vm660, %v3023, 0
      %3056 = vmatpush.xpose.msra.mxu0 0.0
      %3057 = vmatpush.xpose.msra.mxu0 0.0
      %3058 = vmatpush.xpose.msra.mxu0 0.0
      %3059 = vmatpush.xpose.msra.mxu0 0.0
      %3060 = vmatpush.xpose.msra.mxu0 0.0
      %3061 = vmatpush.xpose.msra.mxu0 0.0
      %3062 = vmatpush.xpose.msra.mxu0 0.0
      %3063 = vmatpush.xpose.msra.mxu0 0.0
      %3064 = vmatpush.xpose.msra.mxu0 %v3054
      %3065 = vmatpush.xpose.msra.mxu0 %v3052
      %3066 = vmatpush.xpose.msra.mxu0 %v3050
      %3067 = vmatpush.xpose.msra.mxu0 %v3048
      %3068 = vmatpush.xpose.msra.mxu0 %v3046
      %3069 = vmatpush.xpose.msra.mxu0 %v3044
      %3070 = vmatpush.xpose.msra.mxu0 %v3042
      %3071 = vmatpush.xpose.msra.mxu0 %v3040
      %3072 = vmatmul.f32.gmra.mxu0 %v3024
      %v3073 = vpop.f32.mrf.mxu0
      %v3074 = vadd.f32 %v529, %v3073
      %3075 = vmatmul.f32.gmra.mxu0 %v3026
      %v3076 = vpop.f32.mrf.mxu0
      %v3077 = vadd.f32 %v530, %v3076
      %3078 = vmatmul.f32.gmra.mxu0 %v3028
      %v3079 = vpop.f32.mrf.mxu0
      %v3080 = vadd.f32 %v531, %v3079
      %3081 = vmatmul.f32.gmra.mxu0 %v3030
      %v3082 = vpop.f32.mrf.mxu0
      %v3083 = vadd.f32 %v532, %v3082
      %3084 = vmatmul.f32.gmra.mxu0 %v3032
      %v3085 = vpop.f32.mrf.mxu0
      %v3086 = vadd.f32 %v533, %v3085
      %3087 = vmatmul.f32.gmra.mxu0 %v3034
      %v3088 = vpop.f32.mrf.mxu0
      %v3089 = vadd.f32 %v534, %v3088
      %3090 = vmatmul.f32.gmra.mxu0 %v3036
      %v3091 = vpop.f32.mrf.mxu0
      %v3092 = vadd.f32 %v535, %v3091
      %3093 = vmatmul.f32.gmra.mxu0 %v3038
      %v3094 = vpop.f32.mrf.mxu0
      %v3095 = vadd.f32 %v536, %v3094
      %3096 = vdwg.mxu0
      %v3097 = vsel %vm742, %v3074, -inf
      %3098 = vmax.xlane.f32.xlu0 %v3097
      %v3099 = vpop.xlane.xlu0 %3098
      %v3100 = vsel %vm742, %v3077, -inf
      %3101 = vmax.xlane.f32.xlu0 %v3100
      %v3102 = vpop.xlane.xlu0 %3101
      %v3103 = vsel %vm742, %v3080, -inf
      %3104 = vmax.xlane.f32.xlu0 %v3103
      %v3105 = vpop.xlane.xlu0 %3104
      %v3106 = vsel %vm742, %v3083, -inf
      %3107 = vmax.xlane.f32.xlu0 %v3106
      %v3108 = vpop.xlane.xlu0 %3107
      %v3109 = vsel %vm742, %v3086, -inf
      %3110 = vmax.xlane.f32.xlu0 %v3109
      %v3111 = vpop.xlane.xlu0 %3110
      %v3112 = vsel %vm742, %v3089, -inf
      %3113 = vmax.xlane.f32.xlu0 %v3112
      %v3114 = vpop.xlane.xlu0 %3113
      %v3115 = vsel %vm742, %v3092, -inf
      %3116 = vmax.xlane.f32.xlu0 %v3115
      %v3117 = vpop.xlane.xlu0 %3116
      %v3118 = vsel %vm742, %v3095, -inf
      %3119 = vmax.xlane.f32.xlu0 %v3118
      %v3120 = vpop.xlane.xlu0 %3119
      %v3121 = vsub.f32 %v3074, %v3099
      %v3122 = vsub.f32 %v3077, %v3102
      %v3123 = vsub.f32 %v3080, %v3105
      %v3124 = vsub.f32 %v3083, %v3108
      %v3125 = vsub.f32 %v3086, %v3111
      %v3126 = vsub.f32 %v3089, %v3114
      %v3127 = vsub.f32 %v3092, %v3117
      %v3128 = vsub.f32 %v3095, %v3120
      %v3129 = vmul.f32 %v3121, 1.442695
      %v3130 = vpow.pop %v3129
      %v3131 = vmul.f32 %v3122, 1.442695
      %v3132 = vpow.pop %v3131
      %v3133 = vmul.f32 %v3123, 1.442695
      %v3134 = vpow.pop %v3133
      %v3135 = vmul.f32 %v3124, 1.442695
      %v3136 = vpow.pop %v3135
      %v3137 = vmul.f32 %v3125, 1.442695
      %v3138 = vpow.pop %v3137
      %v3139 = vmul.f32 %v3126, 1.442695
      %v3140 = vpow.pop %v3139
      %v3141 = vmul.f32 %v3127, 1.442695
      %v3142 = vpow.pop %v3141
      %v3143 = vmul.f32 %v3128, 1.442695
      %v3144 = vpow.pop %v3143
      %v3145 = vsel %vm742, %v3130, 0.0
      %3146 = vadd.xlane.f32.xlu0 %v3145
      %v3147 = vpop.xlane.xlu0 %3146
      %v3148 = vsel %vm742, %v3132, 0.0
      %3149 = vadd.xlane.f32.xlu0 %v3148
      %v3150 = vpop.xlane.xlu0 %3149
      %v3151 = vsel %vm742, %v3134, 0.0
      %3152 = vadd.xlane.f32.xlu0 %v3151
      %v3153 = vpop.xlane.xlu0 %3152
      %v3154 = vsel %vm742, %v3136, 0.0
      %3155 = vadd.xlane.f32.xlu0 %v3154
      %v3156 = vpop.xlane.xlu0 %3155
      %v3157 = vsel %vm742, %v3138, 0.0
      %3158 = vadd.xlane.f32.xlu0 %v3157
      %v3159 = vpop.xlane.xlu0 %3158
      %v3160 = vsel %vm742, %v3140, 0.0
      %3161 = vadd.xlane.f32.xlu0 %v3160
      %v3162 = vpop.xlane.xlu0 %3161
      %v3163 = vsel %vm742, %v3142, 0.0
      %3164 = vadd.xlane.f32.xlu0 %v3163
      %v3165 = vpop.xlane.xlu0 %3164
      %v3166 = vsel %vm742, %v3144, 0.0
      %3167 = vadd.xlane.f32.xlu0 %v3166
      %v3168 = vpop.xlane.xlu0 %3167
      %v3169 = vrcp.pop %v3147
      %v3170 = vrcp.pop %v3150
      %v3171 = vrcp.pop %v3153
      %v3172 = vrcp.pop %v3156
      %v3173 = vrcp.pop %v3159
      %v3174 = vrcp.pop %v3162
      %v3175 = vrcp.pop %v3165
      %v3176 = vrcp.pop %v3168
      %v3177 = vmul.f32 %v3130, %v3169
      %v3178 = vmul.f32 %v3132, %v3170
      %v3179 = vmul.f32 %v3134, %v3171
      %v3180 = vmul.f32 %v3136, %v3172
      %v3181 = vmul.f32 %v3138, %v3173
      %v3182 = vmul.f32 %v3140, %v3174
      %v3183 = vmul.f32 %v3142, %v3175
      %v3184 = vmul.f32 %v3144, %v3176
      %3185 = vrot.lane.b32.xlu0 %v2679, 56
      %v3186 = vpop.permute.xlu0 %3185
      %3187 = vrot.lane.b32.xlu0 %v2682, 56
      %v3188 = vpop.permute.xlu0 %3187
      %3189 = vrot.lane.b32.xlu0 %v2685, 56
      %v3190 = vpop.permute.xlu0 %3189
      %3191 = vrot.lane.b32.xlu0 %v2688, 56
      %v3192 = vpop.permute.xlu0 %3191
      %3193 = vrot.lane.b32.xlu0 %v2691, 56
      %v3194 = vpop.permute.xlu0 %3193
      %3195 = vrot.lane.b32.xlu0 %v2694, 56
      %v3196 = vpop.permute.xlu0 %3195
      %3197 = vrot.lane.b32.xlu0 %v2697, 56
      %v3198 = vpop.permute.xlu0 %3197
      %3199 = vrot.lane.b32.xlu0 %v2700, 56
      %v3200 = vpop.permute.xlu0 %3199
      %v3210 = vsel %vm742, %v3177, 0
      %v3213 = vsel %vm742, %v3178, 0
      %v3216 = vsel %vm742, %v3179, 0
      %v3219 = vsel %vm742, %v3180, 0
      %v3222 = vsel %vm742, %v3181, 0
      %v3225 = vsel %vm742, %v3182, 0
      %v3228 = vsel %vm742, %v3183, 0
      %v3231 = vsel %vm742, %v3184, 0
      %3233 = vmatpush.msra.mxu0 0.0
      %3234 = vmatpush.msra.mxu0 0.0
      %3235 = vmatpush.msra.mxu0 0.0
      %3236 = vmatpush.msra.mxu0 0.0
      %3237 = vmatpush.msra.mxu0 0.0
      %3238 = vmatpush.msra.mxu0 0.0
      %3239 = vmatpush.msra.mxu0 0.0
      %3240 = vmatpush.msra.mxu0 0.0
      %3241 = vmatpush.msra.mxu0 %v3200
      %3242 = vmatpush.msra.mxu0 %v3198
      %3243 = vmatpush.msra.mxu0 %v3196
      %3244 = vmatpush.msra.mxu0 %v3194
      %3245 = vmatpush.msra.mxu0 %v3192
      %3246 = vmatpush.msra.mxu0 %v3190
      %3247 = vmatpush.msra.mxu0 %v3188
      %3248 = vmatpush.msra.mxu0 %v3186
      %3249 = vmatmul.f32.gmra.mxu0 %v3210
      %v3250 = vpop.f32.mrf.mxu0
      %v3251 = vadd.f32 0.0, %v3250
      %3252 = vmatmul.f32.gmra.mxu0 %v3213
      %v3253 = vpop.f32.mrf.mxu0
      %v3254 = vadd.f32 0.0, %v3253
      %3255 = vmatmul.f32.gmra.mxu0 %v3216
      %v3256 = vpop.f32.mrf.mxu0
      %v3257 = vadd.f32 0.0, %v3256
      %3258 = vmatmul.f32.gmra.mxu0 %v3219
      %v3259 = vpop.f32.mrf.mxu0
      %v3260 = vadd.f32 0.0, %v3259
      %3261 = vmatmul.f32.gmra.mxu0 %v3222
      %v3262 = vpop.f32.mrf.mxu0
      %v3263 = vadd.f32 0.0, %v3262
      %3264 = vmatmul.f32.gmra.mxu0 %v3225
      %v3265 = vpop.f32.mrf.mxu0
      %v3266 = vadd.f32 0.0, %v3265
      %3267 = vmatmul.f32.gmra.mxu0 %v3228
      %v3268 = vpop.f32.mrf.mxu0
      %v3269 = vadd.f32 0.0, %v3268
      %3270 = vmatmul.f32.gmra.mxu0 %v3231
      %v3271 = vpop.f32.mrf.mxu0
      %v3272 = vadd.f32 0.0, %v3271
      %3273 = vdwg.mxu0
      %v3275 = vsel %vm660, %v3251, 0
      %v3278 = vsel %vm660, %v3254, 0
      %v3281 = vsel %vm660, %v3257, 0
      %v3284 = vsel %vm660, %v3260, 0
      %v3287 = vsel %vm660, %v3263, 0
      %v3290 = vsel %vm660, %v3266, 0
      %v3293 = vsel %vm660, %v3269, 0
      %v3296 = vsel %vm660, %v3272, 0
      %3298 = vmatpush.msra.mxu0 0.0
      %3299 = vmatpush.msra.mxu0 0.0
      %3300 = vmatpush.msra.mxu0 0.0
      %3301 = vmatpush.msra.mxu0 0.0
      %3302 = vmatpush.msra.mxu0 0.0
      %3303 = vmatpush.msra.mxu0 0.0
      %3304 = vmatpush.msra.mxu0 0.0
      %3305 = vmatpush.msra.mxu0 0.0
      %3306 = vmatpush.msra.mxu0 0.0
      %3307 = vmatpush.msra.mxu0 0.0
      %3308 = vmatpush.msra.mxu0 0.0
      %3309 = vmatpush.msra.mxu0 0.0
      %3310 = vmatpush.msra.mxu0 0.0
      %3311 = vmatpush.msra.mxu0 0.0
      %3312 = vmatpush.msra.mxu0 0.0
      %3313 = vmatpush.msra.mxu0 %v2611
      %3314 = vmatmul.f32.gmra.mxu0 %v3275
      %v3315 = vpop.f32.mrf.mxu0
      %v3316 = vadd.f32 0.0, %v3315
      %3317 = vmatmul.f32.gmra.mxu0 %v3278
      %v3318 = vpop.f32.mrf.mxu0
      %v3319 = vadd.f32 0.0, %v3318
      %3320 = vmatmul.f32.gmra.mxu0 %v3281
      %v3321 = vpop.f32.mrf.mxu0
      %v3322 = vadd.f32 0.0, %v3321
      %3323 = vmatmul.f32.gmra.mxu0 %v3284
      %v3324 = vpop.f32.mrf.mxu0
      %v3325 = vadd.f32 0.0, %v3324
      %3326 = vmatmul.f32.gmra.mxu0 %v3287
      %v3327 = vpop.f32.mrf.mxu0
      %v3328 = vadd.f32 0.0, %v3327
      %3329 = vmatmul.f32.gmra.mxu0 %v3290
      %v3330 = vpop.f32.mrf.mxu0
      %v3331 = vadd.f32 0.0, %v3330
      %3332 = vmatmul.f32.gmra.mxu0 %v3293
      %v3333 = vpop.f32.mrf.mxu0
      %v3334 = vadd.f32 0.0, %v3333
      %3335 = vmatmul.f32.gmra.mxu0 %v3296
      %v3336 = vpop.f32.mrf.mxu0
      %v3337 = vadd.f32 0.0, %v3336
      %3338 = vdwg.mxu0
      %v3340 = vsel %vm660, %v2969, 0
      %v3343 = vsel %vm660, %v2972, 0
      %v3346 = vsel %vm660, %v2975, 0
      %v3349 = vsel %vm660, %v2978, 0
      %v3352 = vsel %vm660, %v2981, 0
      %v3355 = vsel %vm660, %v2984, 0
      %v3358 = vsel %vm660, %v2987, 0
      %v3361 = vsel %vm660, %v2990, 0
      %3363 = vmatpush.msra.mxu0 0.0
      %3364 = vmatpush.msra.mxu0 0.0
      %3365 = vmatpush.msra.mxu0 0.0
      %3366 = vmatpush.msra.mxu0 0.0
      %3367 = vmatpush.msra.mxu0 0.0
      %3368 = vmatpush.msra.mxu0 0.0
      %3369 = vmatpush.msra.mxu0 0.0
      %3370 = vmatpush.msra.mxu0 0.0
      %3371 = vmatpush.msra.mxu0 0.0
      %3372 = vmatpush.msra.mxu0 0.0
      %3373 = vmatpush.msra.mxu0 0.0
      %3374 = vmatpush.msra.mxu0 0.0
      %3375 = vmatpush.msra.mxu0 0.0
      %3376 = vmatpush.msra.mxu0 0.0
      %3377 = vmatpush.msra.mxu0 0.0
      %3378 = vmatpush.msra.mxu0 %v2610
      %3379 = vmatmul.f32.gmra.mxu0 %v3340
      %v3380 = vpop.f32.mrf.mxu0
      %v3381 = vadd.f32 %v3316, %v3380
      %3382 = vmatmul.f32.gmra.mxu0 %v3343
      %v3383 = vpop.f32.mrf.mxu0
      %v3384 = vadd.f32 %v3319, %v3383
      %3385 = vmatmul.f32.gmra.mxu0 %v3346
      %v3386 = vpop.f32.mrf.mxu0
      %v3387 = vadd.f32 %v3322, %v3386
      %3388 = vmatmul.f32.gmra.mxu0 %v3349
      %v3389 = vpop.f32.mrf.mxu0
      %v3390 = vadd.f32 %v3325, %v3389
      %3391 = vmatmul.f32.gmra.mxu0 %v3352
      %v3392 = vpop.f32.mrf.mxu0
      %v3393 = vadd.f32 %v3328, %v3392
      %3394 = vmatmul.f32.gmra.mxu0 %v3355
      %v3395 = vpop.f32.mrf.mxu0
      %v3396 = vadd.f32 %v3331, %v3395
      %3397 = vmatmul.f32.gmra.mxu0 %v3358
      %v3398 = vpop.f32.mrf.mxu0
      %v3399 = vadd.f32 %v3334, %v3398
      %3400 = vmatmul.f32.gmra.mxu0 %v3361
      %v3401 = vpop.f32.mrf.mxu0
      %v3402 = vadd.f32 %v3337, %v3401
      %3403 = vdwg.mxu0
      %3404 = vrot.lane.b32.xlu0 %v2702, 112
      %v3405 = vpop.permute.xlu0 %3404
      %3406 = vrot.lane.b32.xlu0 %v2703, 112
      %v3407 = vpop.permute.xlu0 %3406
      %3408 = vrot.lane.b32.xlu0 %v2704, 112
      %v3409 = vpop.permute.xlu0 %3408
      %3410 = vrot.lane.b32.xlu0 %v2705, 112
      %v3411 = vpop.permute.xlu0 %3410
      %3412 = vrot.lane.b32.xlu0 %v2706, 112
      %v3413 = vpop.permute.xlu0 %3412
      %3414 = vrot.lane.b32.xlu0 %v2707, 112
      %v3415 = vpop.permute.xlu0 %3414
      %3416 = vrot.lane.b32.xlu0 %v2708, 112
      %v3417 = vpop.permute.xlu0 %3416
      %3418 = vrot.lane.b32.xlu0 %v2709, 112
      %v3419 = vpop.permute.xlu0 %3418
      %3420 = vrot.lane.b32.xlu0 %v2679, 80
      %v3421 = vpop.permute.xlu0 %3420
      %3422 = vrot.lane.b32.xlu0 %v2682, 80
      %v3423 = vpop.permute.xlu0 %3422
      %3424 = vrot.lane.b32.xlu0 %v2685, 80
      %v3425 = vpop.permute.xlu0 %3424
      %3426 = vrot.lane.b32.xlu0 %v2688, 80
      %v3427 = vpop.permute.xlu0 %3426
      %3428 = vrot.lane.b32.xlu0 %v2691, 80
      %v3429 = vpop.permute.xlu0 %3428
      %3430 = vrot.lane.b32.xlu0 %v2694, 80
      %v3431 = vpop.permute.xlu0 %3430
      %3432 = vrot.lane.b32.xlu0 %v2697, 80
      %v3433 = vpop.permute.xlu0 %3432
      %3434 = vrot.lane.b32.xlu0 %v2700, 80
      %v3435 = vpop.permute.xlu0 %3434
      %v3436 = vsel %vm660, %v3405, 0
      %v3438 = vsel %vm660, %v3407, 0
      %v3440 = vsel %vm660, %v3409, 0
      %v3442 = vsel %vm660, %v3411, 0
      %v3444 = vsel %vm660, %v3413, 0
      %v3446 = vsel %vm660, %v3415, 0
      %v3448 = vsel %vm660, %v3417, 0
      %v3450 = vsel %vm660, %v3419, 0
      %v3452 = vsel %vm660, %v3421, 0
      %v3454 = vsel %vm660, %v3423, 0
      %v3456 = vsel %vm660, %v3425, 0
      %v3458 = vsel %vm660, %v3427, 0
      %v3460 = vsel %vm660, %v3429, 0
      %v3462 = vsel %vm660, %v3431, 0
      %v3464 = vsel %vm660, %v3433, 0
      %v3466 = vsel %vm660, %v3435, 0
      %3468 = vmatpush.xpose.msra.mxu0 0.0
      %3469 = vmatpush.xpose.msra.mxu0 0.0
      %3470 = vmatpush.xpose.msra.mxu0 0.0
      %3471 = vmatpush.xpose.msra.mxu0 0.0
      %3472 = vmatpush.xpose.msra.mxu0 0.0
      %3473 = vmatpush.xpose.msra.mxu0 0.0
      %3474 = vmatpush.xpose.msra.mxu0 0.0
      %3475 = vmatpush.xpose.msra.mxu0 0.0
      %3476 = vmatpush.xpose.msra.mxu0 %v3466
      %3477 = vmatpush.xpose.msra.mxu0 %v3464
      %3478 = vmatpush.xpose.msra.mxu0 %v3462
      %3479 = vmatpush.xpose.msra.mxu0 %v3460
      %3480 = vmatpush.xpose.msra.mxu0 %v3458
      %3481 = vmatpush.xpose.msra.mxu0 %v3456
      %3482 = vmatpush.xpose.msra.mxu0 %v3454
      %3483 = vmatpush.xpose.msra.mxu0 %v3452
      %3484 = vmatmul.f32.gmra.mxu0 %v3436
      %v3485 = vpop.f32.mrf.mxu0
      %v3486 = vadd.f32 %v529, %v3485
      %3487 = vmatmul.f32.gmra.mxu0 %v3438
      %v3488 = vpop.f32.mrf.mxu0
      %v3489 = vadd.f32 %v530, %v3488
      %3490 = vmatmul.f32.gmra.mxu0 %v3440
      %v3491 = vpop.f32.mrf.mxu0
      %v3492 = vadd.f32 %v531, %v3491
      %3493 = vmatmul.f32.gmra.mxu0 %v3442
      %v3494 = vpop.f32.mrf.mxu0
      %v3495 = vadd.f32 %v532, %v3494
      %3496 = vmatmul.f32.gmra.mxu0 %v3444
      %v3497 = vpop.f32.mrf.mxu0
      %v3498 = vadd.f32 %v533, %v3497
      %3499 = vmatmul.f32.gmra.mxu0 %v3446
      %v3500 = vpop.f32.mrf.mxu0
      %v3501 = vadd.f32 %v534, %v3500
      %3502 = vmatmul.f32.gmra.mxu0 %v3448
      %v3503 = vpop.f32.mrf.mxu0
      %v3504 = vadd.f32 %v535, %v3503
      %3505 = vmatmul.f32.gmra.mxu0 %v3450
      %v3506 = vpop.f32.mrf.mxu0
      %v3507 = vadd.f32 %v536, %v3506
      %3508 = vdwg.mxu0
      %v3509 = vsel %vm742, %v3486, -inf
      %3510 = vmax.xlane.f32.xlu0 %v3509
      %v3511 = vpop.xlane.xlu0 %3510
      %v3512 = vsel %vm742, %v3489, -inf
      %3513 = vmax.xlane.f32.xlu0 %v3512
      %v3514 = vpop.xlane.xlu0 %3513
      %v3515 = vsel %vm742, %v3492, -inf
      %3516 = vmax.xlane.f32.xlu0 %v3515
      %v3517 = vpop.xlane.xlu0 %3516
      %v3518 = vsel %vm742, %v3495, -inf
      %3519 = vmax.xlane.f32.xlu0 %v3518
      %v3520 = vpop.xlane.xlu0 %3519
      %v3521 = vsel %vm742, %v3498, -inf
      %3522 = vmax.xlane.f32.xlu0 %v3521
      %v3523 = vpop.xlane.xlu0 %3522
      %v3524 = vsel %vm742, %v3501, -inf
      %3525 = vmax.xlane.f32.xlu0 %v3524
      %v3526 = vpop.xlane.xlu0 %3525
      %v3527 = vsel %vm742, %v3504, -inf
      %3528 = vmax.xlane.f32.xlu0 %v3527
      %v3529 = vpop.xlane.xlu0 %3528
      %v3530 = vsel %vm742, %v3507, -inf
      %3531 = vmax.xlane.f32.xlu0 %v3530
      %v3532 = vpop.xlane.xlu0 %3531
      %v3533 = vsub.f32 %v3486, %v3511
      %v3534 = vsub.f32 %v3489, %v3514
      %v3535 = vsub.f32 %v3492, %v3517
      %v3536 = vsub.f32 %v3495, %v3520
      %v3537 = vsub.f32 %v3498, %v3523
      %v3538 = vsub.f32 %v3501, %v3526
      %v3539 = vsub.f32 %v3504, %v3529
      %v3540 = vsub.f32 %v3507, %v3532
      %v3541 = vmul.f32 %v3533, 1.442695
      %v3542 = vpow.pop %v3541
      %v3543 = vmul.f32 %v3534, 1.442695
      %v3544 = vpow.pop %v3543
      %v3545 = vmul.f32 %v3535, 1.442695
      %v3546 = vpow.pop %v3545
      %v3547 = vmul.f32 %v3536, 1.442695
      %v3548 = vpow.pop %v3547
      %v3549 = vmul.f32 %v3537, 1.442695
      %v3550 = vpow.pop %v3549
      %v3551 = vmul.f32 %v3538, 1.442695
      %v3552 = vpow.pop %v3551
      %v3553 = vmul.f32 %v3539, 1.442695
      %v3554 = vpow.pop %v3553
      %v3555 = vmul.f32 %v3540, 1.442695
      %v3556 = vpow.pop %v3555
      %v3557 = vsel %vm742, %v3542, 0.0
      %3558 = vadd.xlane.f32.xlu0 %v3557
      %v3559 = vpop.xlane.xlu0 %3558
      %v3560 = vsel %vm742, %v3544, 0.0
      %3561 = vadd.xlane.f32.xlu0 %v3560
      %v3562 = vpop.xlane.xlu0 %3561
      %v3563 = vsel %vm742, %v3546, 0.0
      %3564 = vadd.xlane.f32.xlu0 %v3563
      %v3565 = vpop.xlane.xlu0 %3564
      %v3566 = vsel %vm742, %v3548, 0.0
      %3567 = vadd.xlane.f32.xlu0 %v3566
      %v3568 = vpop.xlane.xlu0 %3567
      %v3569 = vsel %vm742, %v3550, 0.0
      %3570 = vadd.xlane.f32.xlu0 %v3569
      %v3571 = vpop.xlane.xlu0 %3570
      %v3572 = vsel %vm742, %v3552, 0.0
      %3573 = vadd.xlane.f32.xlu0 %v3572
      %v3574 = vpop.xlane.xlu0 %3573
      %v3575 = vsel %vm742, %v3554, 0.0
      %3576 = vadd.xlane.f32.xlu0 %v3575
      %v3577 = vpop.xlane.xlu0 %3576
      %v3578 = vsel %vm742, %v3556, 0.0
      %3579 = vadd.xlane.f32.xlu0 %v3578
      %v3580 = vpop.xlane.xlu0 %3579
      %v3581 = vrcp.pop %v3559
      %v3582 = vrcp.pop %v3562
      %v3583 = vrcp.pop %v3565
      %v3584 = vrcp.pop %v3568
      %v3585 = vrcp.pop %v3571
      %v3586 = vrcp.pop %v3574
      %v3587 = vrcp.pop %v3577
      %v3588 = vrcp.pop %v3580
      %v3589 = vmul.f32 %v3542, %v3581
      %v3590 = vmul.f32 %v3544, %v3582
      %v3591 = vmul.f32 %v3546, %v3583
      %v3592 = vmul.f32 %v3548, %v3584
      %v3593 = vmul.f32 %v3550, %v3585
      %v3594 = vmul.f32 %v3552, %v3586
      %v3595 = vmul.f32 %v3554, %v3587
      %v3596 = vmul.f32 %v3556, %v3588
      %3597 = vrot.lane.b32.xlu0 %v2679, 48
      %v3598 = vpop.permute.xlu0 %3597
      %3599 = vrot.lane.b32.xlu0 %v2682, 48
      %v3600 = vpop.permute.xlu0 %3599
      %3601 = vrot.lane.b32.xlu0 %v2685, 48
      %v3602 = vpop.permute.xlu0 %3601
      %3603 = vrot.lane.b32.xlu0 %v2688, 48
      %v3604 = vpop.permute.xlu0 %3603
      %3605 = vrot.lane.b32.xlu0 %v2691, 48
      %v3606 = vpop.permute.xlu0 %3605
      %3607 = vrot.lane.b32.xlu0 %v2694, 48
      %v3608 = vpop.permute.xlu0 %3607
      %3609 = vrot.lane.b32.xlu0 %v2697, 48
      %v3610 = vpop.permute.xlu0 %3609
      %3611 = vrot.lane.b32.xlu0 %v2700, 48
      %v3612 = vpop.permute.xlu0 %3611
      %v3622 = vsel %vm742, %v3589, 0
      %v3625 = vsel %vm742, %v3590, 0
      %v3628 = vsel %vm742, %v3591, 0
      %v3631 = vsel %vm742, %v3592, 0
      %v3634 = vsel %vm742, %v3593, 0
      %v3637 = vsel %vm742, %v3594, 0
      %v3640 = vsel %vm742, %v3595, 0
      %v3643 = vsel %vm742, %v3596, 0
      %3645 = vmatpush.msra.mxu0 0.0
      %3646 = vmatpush.msra.mxu0 0.0
      %3647 = vmatpush.msra.mxu0 0.0
      %3648 = vmatpush.msra.mxu0 0.0
      %3649 = vmatpush.msra.mxu0 0.0
      %3650 = vmatpush.msra.mxu0 0.0
      %3651 = vmatpush.msra.mxu0 0.0
      %3652 = vmatpush.msra.mxu0 0.0
      %3653 = vmatpush.msra.mxu0 %v3612
      %3654 = vmatpush.msra.mxu0 %v3610
      %3655 = vmatpush.msra.mxu0 %v3608
      %3656 = vmatpush.msra.mxu0 %v3606
      %3657 = vmatpush.msra.mxu0 %v3604
      %3658 = vmatpush.msra.mxu0 %v3602
      %3659 = vmatpush.msra.mxu0 %v3600
      %3660 = vmatpush.msra.mxu0 %v3598
      %3661 = vmatmul.f32.gmra.mxu0 %v3622
      %v3662 = vpop.f32.mrf.mxu0
      %v3663 = vadd.f32 0.0, %v3662
      %3664 = vmatmul.f32.gmra.mxu0 %v3625
      %v3665 = vpop.f32.mrf.mxu0
      %v3666 = vadd.f32 0.0, %v3665
      %3667 = vmatmul.f32.gmra.mxu0 %v3628
      %v3668 = vpop.f32.mrf.mxu0
      %v3669 = vadd.f32 0.0, %v3668
      %3670 = vmatmul.f32.gmra.mxu0 %v3631
      %v3671 = vpop.f32.mrf.mxu0
      %v3672 = vadd.f32 0.0, %v3671
      %3673 = vmatmul.f32.gmra.mxu0 %v3634
      %v3674 = vpop.f32.mrf.mxu0
      %v3675 = vadd.f32 0.0, %v3674
      %3676 = vmatmul.f32.gmra.mxu0 %v3637
      %v3677 = vpop.f32.mrf.mxu0
      %v3678 = vadd.f32 0.0, %v3677
      %3679 = vmatmul.f32.gmra.mxu0 %v3640
      %v3680 = vpop.f32.mrf.mxu0
      %v3681 = vadd.f32 0.0, %v3680
      %3682 = vmatmul.f32.gmra.mxu0 %v3643
      %v3683 = vpop.f32.mrf.mxu0
      %v3684 = vadd.f32 0.0, %v3683
      %3685 = vdwg.mxu0
      %v3687 = vsel %vm660, %v3663, 0
      %v3690 = vsel %vm660, %v3666, 0
      %v3693 = vsel %vm660, %v3669, 0
      %v3696 = vsel %vm660, %v3672, 0
      %v3699 = vsel %vm660, %v3675, 0
      %v3702 = vsel %vm660, %v3678, 0
      %v3705 = vsel %vm660, %v3681, 0
      %v3708 = vsel %vm660, %v3684, 0
      %3710 = vmatpush.msra.mxu0 0.0
      %3711 = vmatpush.msra.mxu0 0.0
      %3712 = vmatpush.msra.mxu0 0.0
      %3713 = vmatpush.msra.mxu0 0.0
      %3714 = vmatpush.msra.mxu0 0.0
      %3715 = vmatpush.msra.mxu0 0.0
      %3716 = vmatpush.msra.mxu0 0.0
      %3717 = vmatpush.msra.mxu0 0.0
      %3718 = vmatpush.msra.mxu0 0.0
      %3719 = vmatpush.msra.mxu0 0.0
      %3720 = vmatpush.msra.mxu0 0.0
      %3721 = vmatpush.msra.mxu0 0.0
      %3722 = vmatpush.msra.mxu0 0.0
      %3723 = vmatpush.msra.mxu0 0.0
      %3724 = vmatpush.msra.mxu0 0.0
      %3725 = vmatpush.msra.mxu0 %v2612
      %3726 = vmatmul.f32.gmra.mxu0 %v3687
      %v3727 = vpop.f32.mrf.mxu0
      %v3728 = vadd.f32 0.0, %v3727
      %3729 = vmatmul.f32.gmra.mxu0 %v3690
      %v3730 = vpop.f32.mrf.mxu0
      %v3731 = vadd.f32 0.0, %v3730
      %3732 = vmatmul.f32.gmra.mxu0 %v3693
      %v3733 = vpop.f32.mrf.mxu0
      %v3734 = vadd.f32 0.0, %v3733
      %3735 = vmatmul.f32.gmra.mxu0 %v3696
      %v3736 = vpop.f32.mrf.mxu0
      %v3737 = vadd.f32 0.0, %v3736
      %3738 = vmatmul.f32.gmra.mxu0 %v3699
      %v3739 = vpop.f32.mrf.mxu0
      %v3740 = vadd.f32 0.0, %v3739
      %3741 = vmatmul.f32.gmra.mxu0 %v3702
      %v3742 = vpop.f32.mrf.mxu0
      %v3743 = vadd.f32 0.0, %v3742
      %3744 = vmatmul.f32.gmra.mxu0 %v3705
      %v3745 = vpop.f32.mrf.mxu0
      %v3746 = vadd.f32 0.0, %v3745
      %3747 = vmatmul.f32.gmra.mxu0 %v3708
      %v3748 = vpop.f32.mrf.mxu0
      %v3749 = vadd.f32 0.0, %v3748
      %3750 = vdwg.mxu0
      %v3751 = vadd.f32 %v3381, %v3728
      %v3752 = vadd.f32 %v3384, %v3731
      %v3753 = vadd.f32 %v3387, %v3734
      %v3754 = vadd.f32 %v3390, %v3737
      %v3755 = vadd.f32 %v3393, %v3740
      %v3756 = vadd.f32 %v3396, %v3743
      %v3757 = vadd.f32 %v3399, %v3746
      %v3758 = vadd.f32 %v3402, %v3749
      %3759 = vrot.lane.b32.xlu0 %v2702, 104
      %v3760 = vpop.permute.xlu0 %3759
      %3761 = vrot.lane.b32.xlu0 %v2703, 104
      %v3762 = vpop.permute.xlu0 %3761
      %3763 = vrot.lane.b32.xlu0 %v2704, 104
      %v3764 = vpop.permute.xlu0 %3763
      %3765 = vrot.lane.b32.xlu0 %v2705, 104
      %v3766 = vpop.permute.xlu0 %3765
      %3767 = vrot.lane.b32.xlu0 %v2706, 104
      %v3768 = vpop.permute.xlu0 %3767
      %3769 = vrot.lane.b32.xlu0 %v2707, 104
      %v3770 = vpop.permute.xlu0 %3769
      %3771 = vrot.lane.b32.xlu0 %v2708, 104
      %v3772 = vpop.permute.xlu0 %3771
      %3773 = vrot.lane.b32.xlu0 %v2709, 104
      %v3774 = vpop.permute.xlu0 %3773
      %3775 = vrot.lane.b32.xlu0 %v2679, 72
      %v3776 = vpop.permute.xlu0 %3775
      %3777 = vrot.lane.b32.xlu0 %v2682, 72
      %v3778 = vpop.permute.xlu0 %3777
      %3779 = vrot.lane.b32.xlu0 %v2685, 72
      %v3780 = vpop.permute.xlu0 %3779
      %3781 = vrot.lane.b32.xlu0 %v2688, 72
      %v3782 = vpop.permute.xlu0 %3781
      %3783 = vrot.lane.b32.xlu0 %v2691, 72
      %v3784 = vpop.permute.xlu0 %3783
      %3785 = vrot.lane.b32.xlu0 %v2694, 72
      %v3786 = vpop.permute.xlu0 %3785
      %3787 = vrot.lane.b32.xlu0 %v2697, 72
      %v3788 = vpop.permute.xlu0 %3787
      %3789 = vrot.lane.b32.xlu0 %v2700, 72
      %v3790 = vpop.permute.xlu0 %3789
      %v3791 = vsel %vm660, %v3760, 0
      %v3793 = vsel %vm660, %v3762, 0
      %v3795 = vsel %vm660, %v3764, 0
      %v3797 = vsel %vm660, %v3766, 0
      %v3799 = vsel %vm660, %v3768, 0
      %v3801 = vsel %vm660, %v3770, 0
      %v3803 = vsel %vm660, %v3772, 0
      %v3805 = vsel %vm660, %v3774, 0
      %v3807 = vsel %vm660, %v3776, 0
      %v3809 = vsel %vm660, %v3778, 0
      %v3811 = vsel %vm660, %v3780, 0
      %v3813 = vsel %vm660, %v3782, 0
      %v3815 = vsel %vm660, %v3784, 0
      %v3817 = vsel %vm660, %v3786, 0
      %v3819 = vsel %vm660, %v3788, 0
      %v3821 = vsel %vm660, %v3790, 0
      %3823 = vmatpush.xpose.msra.mxu0 0.0
      %3824 = vmatpush.xpose.msra.mxu0 0.0
      %3825 = vmatpush.xpose.msra.mxu0 0.0
      %3826 = vmatpush.xpose.msra.mxu0 0.0
      %3827 = vmatpush.xpose.msra.mxu0 0.0
      %3828 = vmatpush.xpose.msra.mxu0 0.0
      %3829 = vmatpush.xpose.msra.mxu0 0.0
      %3830 = vmatpush.xpose.msra.mxu0 0.0
      %3831 = vmatpush.xpose.msra.mxu0 %v3821
      %3832 = vmatpush.xpose.msra.mxu0 %v3819
      %3833 = vmatpush.xpose.msra.mxu0 %v3817
      %3834 = vmatpush.xpose.msra.mxu0 %v3815
      %3835 = vmatpush.xpose.msra.mxu0 %v3813
      %3836 = vmatpush.xpose.msra.mxu0 %v3811
      %3837 = vmatpush.xpose.msra.mxu0 %v3809
      %3838 = vmatpush.xpose.msra.mxu0 %v3807
      %3839 = vmatmul.f32.gmra.mxu0 %v3791
      %v3840 = vpop.f32.mrf.mxu0
      %v3841 = vadd.f32 %v529, %v3840
      %3842 = vmatmul.f32.gmra.mxu0 %v3793
      %v3843 = vpop.f32.mrf.mxu0
      %v3844 = vadd.f32 %v530, %v3843
      %3845 = vmatmul.f32.gmra.mxu0 %v3795
      %v3846 = vpop.f32.mrf.mxu0
      %v3847 = vadd.f32 %v531, %v3846
      %3848 = vmatmul.f32.gmra.mxu0 %v3797
      %v3849 = vpop.f32.mrf.mxu0
      %v3850 = vadd.f32 %v532, %v3849
      %3851 = vmatmul.f32.gmra.mxu0 %v3799
      %v3852 = vpop.f32.mrf.mxu0
      %v3853 = vadd.f32 %v533, %v3852
      %3854 = vmatmul.f32.gmra.mxu0 %v3801
      %v3855 = vpop.f32.mrf.mxu0
      %v3856 = vadd.f32 %v534, %v3855
      %3857 = vmatmul.f32.gmra.mxu0 %v3803
      %v3858 = vpop.f32.mrf.mxu0
      %v3859 = vadd.f32 %v535, %v3858
      %3860 = vmatmul.f32.gmra.mxu0 %v3805
      %v3861 = vpop.f32.mrf.mxu0
      %v3862 = vadd.f32 %v536, %v3861
      %3863 = vdwg.mxu0
      %v3864 = vsel %vm742, %v3841, -inf
      %3865 = vmax.xlane.f32.xlu0 %v3864
      %v3866 = vpop.xlane.xlu0 %3865
      %v3867 = vsel %vm742, %v3844, -inf
      %3868 = vmax.xlane.f32.xlu0 %v3867
      %v3869 = vpop.xlane.xlu0 %3868
      %v3870 = vsel %vm742, %v3847, -inf
      %3871 = vmax.xlane.f32.xlu0 %v3870
      %v3872 = vpop.xlane.xlu0 %3871
      %v3873 = vsel %vm742, %v3850, -inf
      %3874 = vmax.xlane.f32.xlu0 %v3873
      %v3875 = vpop.xlane.xlu0 %3874
      %v3876 = vsel %vm742, %v3853, -inf
      %3877 = vmax.xlane.f32.xlu0 %v3876
      %v3878 = vpop.xlane.xlu0 %3877
      %v3879 = vsel %vm742, %v3856, -inf
      %3880 = vmax.xlane.f32.xlu0 %v3879
      %v3881 = vpop.xlane.xlu0 %3880
      %v3882 = vsel %vm742, %v3859, -inf
      %3883 = vmax.xlane.f32.xlu0 %v3882
      %v3884 = vpop.xlane.xlu0 %3883
      %v3885 = vsel %vm742, %v3862, -inf
      %3886 = vmax.xlane.f32.xlu0 %v3885
      %v3887 = vpop.xlane.xlu0 %3886
      %v3888 = vsub.f32 %v3841, %v3866
      %v3889 = vsub.f32 %v3844, %v3869
      %v3890 = vsub.f32 %v3847, %v3872
      %v3891 = vsub.f32 %v3850, %v3875
      %v3892 = vsub.f32 %v3853, %v3878
      %v3893 = vsub.f32 %v3856, %v3881
      %v3894 = vsub.f32 %v3859, %v3884
      %v3895 = vsub.f32 %v3862, %v3887
      %v3896 = vmul.f32 %v3888, 1.442695
      %v3897 = vpow.pop %v3896
      %v3898 = vmul.f32 %v3889, 1.442695
      %v3899 = vpow.pop %v3898
      %v3900 = vmul.f32 %v3890, 1.442695
      %v3901 = vpow.pop %v3900
      %v3902 = vmul.f32 %v3891, 1.442695
      %v3903 = vpow.pop %v3902
      %v3904 = vmul.f32 %v3892, 1.442695
      %v3905 = vpow.pop %v3904
      %v3906 = vmul.f32 %v3893, 1.442695
      %v3907 = vpow.pop %v3906
      %v3908 = vmul.f32 %v3894, 1.442695
      %v3909 = vpow.pop %v3908
      %v3910 = vmul.f32 %v3895, 1.442695
      %v3911 = vpow.pop %v3910
      %v3912 = vsel %vm742, %v3897, 0.0
      %3913 = vadd.xlane.f32.xlu0 %v3912
      %v3914 = vpop.xlane.xlu0 %3913
      %v3915 = vsel %vm742, %v3899, 0.0
      %3916 = vadd.xlane.f32.xlu0 %v3915
      %v3917 = vpop.xlane.xlu0 %3916
      %v3918 = vsel %vm742, %v3901, 0.0
      %3919 = vadd.xlane.f32.xlu0 %v3918
      %v3920 = vpop.xlane.xlu0 %3919
      %v3921 = vsel %vm742, %v3903, 0.0
      %3922 = vadd.xlane.f32.xlu0 %v3921
      %v3923 = vpop.xlane.xlu0 %3922
      %v3924 = vsel %vm742, %v3905, 0.0
      %3925 = vadd.xlane.f32.xlu0 %v3924
      %v3926 = vpop.xlane.xlu0 %3925
      %v3927 = vsel %vm742, %v3907, 0.0
      %3928 = vadd.xlane.f32.xlu0 %v3927
      %v3929 = vpop.xlane.xlu0 %3928
      %v3930 = vsel %vm742, %v3909, 0.0
      %3931 = vadd.xlane.f32.xlu0 %v3930
      %v3932 = vpop.xlane.xlu0 %3931
      %v3933 = vsel %vm742, %v3911, 0.0
      %3934 = vadd.xlane.f32.xlu0 %v3933
      %v3935 = vpop.xlane.xlu0 %3934
      %v3936 = vrcp.pop %v3914
      %v3937 = vrcp.pop %v3917
      %v3938 = vrcp.pop %v3920
      %v3939 = vrcp.pop %v3923
      %v3940 = vrcp.pop %v3926
      %v3941 = vrcp.pop %v3929
      %v3942 = vrcp.pop %v3932
      %v3943 = vrcp.pop %v3935
      %v3944 = vmul.f32 %v3897, %v3936
      %v3945 = vmul.f32 %v3899, %v3937
      %v3946 = vmul.f32 %v3901, %v3938
      %v3947 = vmul.f32 %v3903, %v3939
      %v3948 = vmul.f32 %v3905, %v3940
      %v3949 = vmul.f32 %v3907, %v3941
      %v3950 = vmul.f32 %v3909, %v3942
      %v3951 = vmul.f32 %v3911, %v3943
      %3952 = vrot.lane.b32.xlu0 %v2679, 40
      %v3953 = vpop.permute.xlu0 %3952
      %3954 = vrot.lane.b32.xlu0 %v2682, 40
      %v3955 = vpop.permute.xlu0 %3954
      %3956 = vrot.lane.b32.xlu0 %v2685, 40
      %v3957 = vpop.permute.xlu0 %3956
      %3958 = vrot.lane.b32.xlu0 %v2688, 40
      %v3959 = vpop.permute.xlu0 %3958
      %3960 = vrot.lane.b32.xlu0 %v2691, 40
      %v3961 = vpop.permute.xlu0 %3960
      %3962 = vrot.lane.b32.xlu0 %v2694, 40
      %v3963 = vpop.permute.xlu0 %3962
      %3964 = vrot.lane.b32.xlu0 %v2697, 40
      %v3965 = vpop.permute.xlu0 %3964
      %3966 = vrot.lane.b32.xlu0 %v2700, 40
      %v3967 = vpop.permute.xlu0 %3966
      %v3977 = vsel %vm742, %v3944, 0
      %v3980 = vsel %vm742, %v3945, 0
      %v3983 = vsel %vm742, %v3946, 0
      %v3986 = vsel %vm742, %v3947, 0
      %v3989 = vsel %vm742, %v3948, 0
      %v3992 = vsel %vm742, %v3949, 0
      %v3995 = vsel %vm742, %v3950, 0
      %v3998 = vsel %vm742, %v3951, 0
      %4000 = vmatpush.msra.mxu0 0.0
      %4001 = vmatpush.msra.mxu0 0.0
      %4002 = vmatpush.msra.mxu0 0.0
      %4003 = vmatpush.msra.mxu0 0.0
      %4004 = vmatpush.msra.mxu0 0.0
      %4005 = vmatpush.msra.mxu0 0.0
      %4006 = vmatpush.msra.mxu0 0.0
      %4007 = vmatpush.msra.mxu0 0.0
      %4008 = vmatpush.msra.mxu0 %v3967
      %4009 = vmatpush.msra.mxu0 %v3965
      %4010 = vmatpush.msra.mxu0 %v3963
      %4011 = vmatpush.msra.mxu0 %v3961
      %4012 = vmatpush.msra.mxu0 %v3959
      %4013 = vmatpush.msra.mxu0 %v3957
      %4014 = vmatpush.msra.mxu0 %v3955
      %4015 = vmatpush.msra.mxu0 %v3953
      %4016 = vmatmul.f32.gmra.mxu0 %v3977
      %v4017 = vpop.f32.mrf.mxu0
      %v4018 = vadd.f32 0.0, %v4017
      %4019 = vmatmul.f32.gmra.mxu0 %v3980
      %v4020 = vpop.f32.mrf.mxu0
      %v4021 = vadd.f32 0.0, %v4020
      %4022 = vmatmul.f32.gmra.mxu0 %v3983
      %v4023 = vpop.f32.mrf.mxu0
      %v4024 = vadd.f32 0.0, %v4023
      %4025 = vmatmul.f32.gmra.mxu0 %v3986
      %v4026 = vpop.f32.mrf.mxu0
      %v4027 = vadd.f32 0.0, %v4026
      %4028 = vmatmul.f32.gmra.mxu0 %v3989
      %v4029 = vpop.f32.mrf.mxu0
      %v4030 = vadd.f32 0.0, %v4029
      %4031 = vmatmul.f32.gmra.mxu0 %v3992
      %v4032 = vpop.f32.mrf.mxu0
      %v4033 = vadd.f32 0.0, %v4032
      %4034 = vmatmul.f32.gmra.mxu0 %v3995
      %v4035 = vpop.f32.mrf.mxu0
      %v4036 = vadd.f32 0.0, %v4035
      %4037 = vmatmul.f32.gmra.mxu0 %v3998
      %v4038 = vpop.f32.mrf.mxu0
      %v4039 = vadd.f32 0.0, %v4038
      %4040 = vdwg.mxu0
      %v4042 = vsel %vm660, %v4018, 0
      %v4045 = vsel %vm660, %v4021, 0
      %v4048 = vsel %vm660, %v4024, 0
      %v4051 = vsel %vm660, %v4027, 0
      %v4054 = vsel %vm660, %v4030, 0
      %v4057 = vsel %vm660, %v4033, 0
      %v4060 = vsel %vm660, %v4036, 0
      %v4063 = vsel %vm660, %v4039, 0
      %4065 = vmatpush.msra.mxu0 0.0
      %4066 = vmatpush.msra.mxu0 0.0
      %4067 = vmatpush.msra.mxu0 0.0
      %4068 = vmatpush.msra.mxu0 0.0
      %4069 = vmatpush.msra.mxu0 0.0
      %4070 = vmatpush.msra.mxu0 0.0
      %4071 = vmatpush.msra.mxu0 0.0
      %4072 = vmatpush.msra.mxu0 0.0
      %4073 = vmatpush.msra.mxu0 0.0
      %4074 = vmatpush.msra.mxu0 0.0
      %4075 = vmatpush.msra.mxu0 0.0
      %4076 = vmatpush.msra.mxu0 0.0
      %4077 = vmatpush.msra.mxu0 0.0
      %4078 = vmatpush.msra.mxu0 0.0
      %4079 = vmatpush.msra.mxu0 0.0
      %4080 = vmatpush.msra.mxu0 %v2613
      %4081 = vmatmul.f32.gmra.mxu0 %v4042
      %v4082 = vpop.f32.mrf.mxu0
      %v4083 = vadd.f32 0.0, %v4082
      %4084 = vmatmul.f32.gmra.mxu0 %v4045
      %v4085 = vpop.f32.mrf.mxu0
      %v4086 = vadd.f32 0.0, %v4085
      %4087 = vmatmul.f32.gmra.mxu0 %v4048
      %v4088 = vpop.f32.mrf.mxu0
      %v4089 = vadd.f32 0.0, %v4088
      %4090 = vmatmul.f32.gmra.mxu0 %v4051
      %v4091 = vpop.f32.mrf.mxu0
      %v4092 = vadd.f32 0.0, %v4091
      %4093 = vmatmul.f32.gmra.mxu0 %v4054
      %v4094 = vpop.f32.mrf.mxu0
      %v4095 = vadd.f32 0.0, %v4094
      %4096 = vmatmul.f32.gmra.mxu0 %v4057
      %v4097 = vpop.f32.mrf.mxu0
      %v4098 = vadd.f32 0.0, %v4097
      %4099 = vmatmul.f32.gmra.mxu0 %v4060
      %v4100 = vpop.f32.mrf.mxu0
      %v4101 = vadd.f32 0.0, %v4100
      %4102 = vmatmul.f32.gmra.mxu0 %v4063
      %v4103 = vpop.f32.mrf.mxu0
      %v4104 = vadd.f32 0.0, %v4103
      %4105 = vdwg.mxu0
      %v4106 = vadd.f32 %v3751, %v4083
      %v4107 = vadd.f32 %v3752, %v4086
      %v4108 = vadd.f32 %v3753, %v4089
      %v4109 = vadd.f32 %v3754, %v4092
      %v4110 = vadd.f32 %v3755, %v4095
      %v4111 = vadd.f32 %v3756, %v4098
      %v4112 = vadd.f32 %v3757, %v4101
      %v4113 = vadd.f32 %v3758, %v4104
      %v4114 = vperm.slane %v2633, 0
      %v4115 = vadd.f32 %v4106, %v4114
      %v4116 = vadd.f32 %v4107, %v4114
      %v4117 = vadd.f32 %v4108, %v4114
      %v4118 = vadd.f32 %v4109, %v4114
      %v4119 = vadd.f32 %v4110, %v4114
      %v4120 = vadd.f32 %v4111, %v4114
      %v4121 = vadd.f32 %v4112, %v4114
      %v4122 = vadd.f32 %v4113, %v4114
      %v4123 = vadd.f32 %v2596, %v4115
      %v4124 = vadd.f32 %v2597, %v4116
      %v4125 = vadd.f32 %v2598, %v4117
      %v4126 = vadd.f32 %v2599, %v4118
      %v4127 = vadd.f32 %v2600, %v4119
      %v4128 = vadd.f32 %v2601, %v4120
      %v4129 = vadd.f32 %v2602, %v4121
      %v4130 = vadd.f32 %v2603, %v4122
      %v4131 = vsel %vm464, %v4123, 0.0
      %4132 = vadd.xlane.f32.xlu0 %v4131
      %v4133 = vpop.xlane.xlu0 %4132
      %v4134 = vsel %vm464, %v4124, 0.0
      %4135 = vadd.xlane.f32.xlu0 %v4134
      %v4136 = vpop.xlane.xlu0 %4135
      %v4137 = vsel %vm464, %v4125, 0.0
      %4138 = vadd.xlane.f32.xlu0 %v4137
      %v4139 = vpop.xlane.xlu0 %4138
      %v4140 = vsel %vm464, %v4126, 0.0
      %4141 = vadd.xlane.f32.xlu0 %v4140
      %v4142 = vpop.xlane.xlu0 %4141
      %v4143 = vsel %vm464, %v4127, 0.0
      %4144 = vadd.xlane.f32.xlu0 %v4143
      %v4145 = vpop.xlane.xlu0 %4144
      %v4146 = vsel %vm464, %v4128, 0.0
      %4147 = vadd.xlane.f32.xlu0 %v4146
      %v4148 = vpop.xlane.xlu0 %4147
      %v4149 = vsel %vm464, %v4129, 0.0
      %4150 = vadd.xlane.f32.xlu0 %v4149
      %v4151 = vpop.xlane.xlu0 %4150
      %v4152 = vsel %vm464, %v4130, 0.0
      %4153 = vadd.xlane.f32.xlu0 %v4152
      %v4154 = vpop.xlane.xlu0 %4153
      %v4155 = vmul.f32 %v4133, %v2089
      %v4156 = vmul.f32 %v4136, %v2089
      %v4157 = vmul.f32 %v4139, %v2089
      %v4158 = vmul.f32 %v4142, %v2089
      %v4159 = vmul.f32 %v4145, %v2089
      %v4160 = vmul.f32 %v4148, %v2089
      %v4161 = vmul.f32 %v4151, %v2089
      %v4162 = vmul.f32 %v4154, %v2089
      %v4163 = vsub.f32 %v4123, %v4155
      %v4164 = vsub.f32 %v4124, %v4156
      %v4165 = vsub.f32 %v4125, %v4157
      %v4166 = vsub.f32 %v4126, %v4158
      %v4167 = vsub.f32 %v4127, %v4159
      %v4168 = vsub.f32 %v4128, %v4160
      %v4169 = vsub.f32 %v4129, %v4161
      %v4170 = vsub.f32 %v4130, %v4162
      %v4171 = vmul.f32 %v4163, %v4163
      %v4172 = vmul.f32 %v4164, %v4164
      %v4173 = vmul.f32 %v4165, %v4165
      %v4174 = vmul.f32 %v4166, %v4166
      %v4175 = vmul.f32 %v4167, %v4167
      %v4176 = vmul.f32 %v4168, %v4168
      %v4177 = vmul.f32 %v4169, %v4169
      %v4178 = vmul.f32 %v4170, %v4170
      %v4179 = vsel %vm464, %v4171, 0.0
      %4180 = vadd.xlane.f32.xlu0 %v4179
      %v4181 = vpop.xlane.xlu0 %4180
      %v4182 = vsel %vm464, %v4172, 0.0
      %4183 = vadd.xlane.f32.xlu0 %v4182
      %v4184 = vpop.xlane.xlu0 %4183
      %v4185 = vsel %vm464, %v4173, 0.0
      %4186 = vadd.xlane.f32.xlu0 %v4185
      %v4187 = vpop.xlane.xlu0 %4186
      %v4188 = vsel %vm464, %v4174, 0.0
      %4189 = vadd.xlane.f32.xlu0 %v4188
      %v4190 = vpop.xlane.xlu0 %4189
      %v4191 = vsel %vm464, %v4175, 0.0
      %4192 = vadd.xlane.f32.xlu0 %v4191
      %v4193 = vpop.xlane.xlu0 %4192
      %v4194 = vsel %vm464, %v4176, 0.0
      %4195 = vadd.xlane.f32.xlu0 %v4194
      %v4196 = vpop.xlane.xlu0 %4195
      %v4197 = vsel %vm464, %v4177, 0.0
      %4198 = vadd.xlane.f32.xlu0 %v4197
      %v4199 = vpop.xlane.xlu0 %4198
      %v4200 = vsel %vm464, %v4178, 0.0
      %4201 = vadd.xlane.f32.xlu0 %v4200
      %v4202 = vpop.xlane.xlu0 %4201
      %v4203 = vmul.f32 %v4181, %v2089
      %v4204 = vmul.f32 %v4184, %v2089
      %v4205 = vmul.f32 %v4187, %v2089
      %v4206 = vmul.f32 %v4190, %v2089
      %v4207 = vmul.f32 %v4193, %v2089
      %v4208 = vmul.f32 %v4196, %v2089
      %v4209 = vmul.f32 %v4199, %v2089
      %v4210 = vmul.f32 %v4202, %v2089
      %v4211 = vadd.f32 %v4203, 1e-05
      %v4212 = vadd.f32 %v4204, 1e-05
      %v4213 = vadd.f32 %v4205, 1e-05
      %v4214 = vadd.f32 %v4206, 1e-05
      %v4215 = vadd.f32 %v4207, 1e-05
      %v4216 = vadd.f32 %v4208, 1e-05
      %v4217 = vadd.f32 %v4209, 1e-05
      %v4218 = vadd.f32 %v4210, 1e-05
      %v4219 = vrsqrt.pop %v4211
      %v4220 = vmul.f32 %v4219, %v4211
      %v4221 = vmul.f32 %v4220, %v4219
      %v4222 = vmul.f32 0.5, %v4221
      %v4223 = vsub.f32 1.5, %v4222
      %v4224 = vmul.f32 %v4219, %v4223
      %vm4225 = vweird.f32 %v4211
      %vm4226 = vweird.f32 %v4219
      %vm4227 = vmor %vm4225, %vm4226
      %v4228 = vsel %vm4227, %v4219, %v4224
      %v4229 = vrsqrt.pop %v4212
      %v4230 = vmul.f32 %v4229, %v4212
      %v4231 = vmul.f32 %v4230, %v4229
      %v4232 = vmul.f32 0.5, %v4231
      %v4233 = vsub.f32 1.5, %v4232
      %v4234 = vmul.f32 %v4229, %v4233
      %vm4235 = vweird.f32 %v4212
      %vm4236 = vweird.f32 %v4229
      %vm4237 = vmor %vm4235, %vm4236
      %v4238 = vsel %vm4237, %v4229, %v4234
      %v4239 = vrsqrt.pop %v4213
      %v4240 = vmul.f32 %v4239, %v4213
      %v4241 = vmul.f32 %v4240, %v4239
      %v4242 = vmul.f32 0.5, %v4241
      %v4243 = vsub.f32 1.5, %v4242
      %v4244 = vmul.f32 %v4239, %v4243
      %vm4245 = vweird.f32 %v4213
      %vm4246 = vweird.f32 %v4239
      %vm4247 = vmor %vm4245, %vm4246
      %v4248 = vsel %vm4247, %v4239, %v4244
      %v4249 = vrsqrt.pop %v4214
      %v4250 = vmul.f32 %v4249, %v4214
      %v4251 = vmul.f32 %v4250, %v4249
      %v4252 = vmul.f32 0.5, %v4251
      %v4253 = vsub.f32 1.5, %v4252
      %v4254 = vmul.f32 %v4249, %v4253
      %vm4255 = vweird.f32 %v4214
      %vm4256 = vweird.f32 %v4249
      %vm4257 = vmor %vm4255, %vm4256
      %v4258 = vsel %vm4257, %v4249, %v4254
      %v4259 = vrsqrt.pop %v4215
      %v4260 = vmul.f32 %v4259, %v4215
      %v4261 = vmul.f32 %v4260, %v4259
      %v4262 = vmul.f32 0.5, %v4261
      %v4263 = vsub.f32 1.5, %v4262
      %v4264 = vmul.f32 %v4259, %v4263
      %vm4265 = vweird.f32 %v4215
      %vm4266 = vweird.f32 %v4259
      %vm4267 = vmor %vm4265, %vm4266
      %v4268 = vsel %vm4267, %v4259, %v4264
      %v4269 = vrsqrt.pop %v4216
      %v4270 = vmul.f32 %v4269, %v4216
      %v4271 = vmul.f32 %v4270, %v4269
      %v4272 = vmul.f32 0.5, %v4271
      %v4273 = vsub.f32 1.5, %v4272
      %v4274 = vmul.f32 %v4269, %v4273
      %vm4275 = vweird.f32 %v4216
      %vm4276 = vweird.f32 %v4269
      %vm4277 = vmor %vm4275, %vm4276
      %v4278 = vsel %vm4277, %v4269, %v4274
      %v4279 = vrsqrt.pop %v4217
      %v4280 = vmul.f32 %v4279, %v4217
      %v4281 = vmul.f32 %v4280, %v4279
      %v4282 = vmul.f32 0.5, %v4281
      %v4283 = vsub.f32 1.5, %v4282
      %v4284 = vmul.f32 %v4279, %v4283
      %vm4285 = vweird.f32 %v4217
      %vm4286 = vweird.f32 %v4279
      %vm4287 = vmor %vm4285, %vm4286
      %v4288 = vsel %vm4287, %v4279, %v4284
      %v4289 = vrsqrt.pop %v4218
      %v4290 = vmul.f32 %v4289, %v4218
      %v4291 = vmul.f32 %v4290, %v4289
      %v4292 = vmul.f32 0.5, %v4291
      %v4293 = vsub.f32 1.5, %v4292
      %v4294 = vmul.f32 %v4289, %v4293
      %vm4295 = vweird.f32 %v4218
      %vm4296 = vweird.f32 %v4289
      %vm4297 = vmor %vm4295, %vm4296
      %v4298 = vsel %vm4297, %v4289, %v4294
      %v4299 = vmul.f32 %v4163, %v4228
      %v4300 = vmul.f32 %v4164, %v4238
      %v4301 = vmul.f32 %v4165, %v4248
      %v4302 = vmul.f32 %v4166, %v4258
      %v4303 = vmul.f32 %v4167, %v4268
      %v4304 = vmul.f32 %v4168, %v4278
      %v4305 = vmul.f32 %v4169, %v4288
      %v4306 = vmul.f32 %v4170, %v4298
      %v4307 = vperm.slane %v2633, 1
      %v4308 = vmul.f32 %v4299, %v4307
      %v4309 = vmul.f32 %v4300, %v4307
      %v4310 = vmul.f32 %v4301, %v4307
      %v4311 = vmul.f32 %v4302, %v4307
      %v4312 = vmul.f32 %v4303, %v4307
      %v4313 = vmul.f32 %v4304, %v4307
      %v4314 = vmul.f32 %v4305, %v4307
      %v4315 = vmul.f32 %v4306, %v4307
      %v4316 = vperm.slane %v2633, 2
      %v4317 = vadd.f32 %v4308, %v4316
      %v4318 = vadd.f32 %v4309, %v4316
      %v4319 = vadd.f32 %v4310, %v4316
      %v4320 = vadd.f32 %v4311, %v4316
      %v4321 = vadd.f32 %v4312, %v4316
      %v4322 = vadd.f32 %v4313, %v4316
      %v4323 = vadd.f32 %v4314, %v4316
      %v4324 = vadd.f32 %v4315, %v4316
      %v4326 = vperm.slane %v2631, 0
      %v4329 = vsel %vm464, %v4317, 0
      %v4332 = vsel %vm464, %v4318, 0
      %v4335 = vsel %vm464, %v4319, 0
      %v4338 = vsel %vm464, %v4320, 0
      %v4341 = vsel %vm464, %v4321, 0
      %v4344 = vsel %vm464, %v4322, 0
      %v4347 = vsel %vm464, %v4323, 0
      %v4350 = vsel %vm464, %v4324, 0
      %4352 = vmatpush.msra.mxu0 0.0
      %4353 = vmatpush.msra.mxu0 0.0
      %4354 = vmatpush.msra.mxu0 0.0
      %4355 = vmatpush.msra.mxu0 0.0
      %4356 = vmatpush.msra.mxu0 0.0
      %4357 = vmatpush.msra.mxu0 0.0
      %4358 = vmatpush.msra.mxu0 0.0
      %4359 = vmatpush.msra.mxu0 0.0
      %4360 = vmatpush.msra.mxu0 0.0
      %4361 = vmatpush.msra.mxu0 0.0
      %4362 = vmatpush.msra.mxu0 0.0
      %4363 = vmatpush.msra.mxu0 0.0
      %4364 = vmatpush.msra.mxu0 %v2618
      %4365 = vmatpush.msra.mxu0 %v2617
      %4366 = vmatpush.msra.mxu0 %v2616
      %4367 = vmatpush.msra.mxu0 %v2615
      %4368 = vmatmul.f32.gmra.mxu0 %v4329
      %v4369 = vpop.f32.mrf.mxu0
      %v4370 = vadd.f32 %v4326, %v4369
      %4371 = vmatmul.f32.gmra.mxu0 %v4332
      %v4372 = vpop.f32.mrf.mxu0
      %v4373 = vadd.f32 %v4326, %v4372
      %4374 = vmatmul.f32.gmra.mxu0 %v4335
      %v4375 = vpop.f32.mrf.mxu0
      %v4376 = vadd.f32 %v4326, %v4375
      %4377 = vmatmul.f32.gmra.mxu0 %v4338
      %v4378 = vpop.f32.mrf.mxu0
      %v4379 = vadd.f32 %v4326, %v4378
      %4380 = vmatmul.f32.gmra.mxu0 %v4341
      %v4381 = vpop.f32.mrf.mxu0
      %v4382 = vadd.f32 %v4326, %v4381
      %4383 = vmatmul.f32.gmra.mxu0 %v4344
      %v4384 = vpop.f32.mrf.mxu0
      %v4385 = vadd.f32 %v4326, %v4384
      %4386 = vmatmul.f32.gmra.mxu0 %v4347
      %v4387 = vpop.f32.mrf.mxu0
      %v4388 = vadd.f32 %v4326, %v4387
      %4389 = vmatmul.f32.gmra.mxu0 %v4350
      %v4390 = vpop.f32.mrf.mxu0
      %v4391 = vadd.f32 %v4326, %v4390
      %4392 = vdwg.mxu0
      %v4393 = vmax.f32 %v4370, 0.0
      %v4394 = vmax.f32 %v4373, 0.0
      %v4395 = vmax.f32 %v4376, 0.0
      %v4396 = vmax.f32 %v4379, 0.0
      %v4397 = vmax.f32 %v4382, 0.0
      %v4398 = vmax.f32 %v4385, 0.0
      %v4399 = vmax.f32 %v4388, 0.0
      %v4400 = vmax.f32 %v4391, 0.0
      %v4401 = vperm.slane %v2633, 3
      %v4403 = vsel %vm742, %v4393, 0
      %v4406 = vsel %vm742, %v4394, 0
      %v4409 = vsel %vm742, %v4395, 0
      %v4412 = vsel %vm742, %v4396, 0
      %v4415 = vsel %vm742, %v4397, 0
      %v4418 = vsel %vm742, %v4398, 0
      %v4421 = vsel %vm742, %v4399, 0
      %v4424 = vsel %vm742, %v4400, 0
      %4426 = vmatpush.msra.mxu0 0.0
      %4427 = vmatpush.msra.mxu0 0.0
      %4428 = vmatpush.msra.mxu0 0.0
      %4429 = vmatpush.msra.mxu0 0.0
      %4430 = vmatpush.msra.mxu0 0.0
      %4431 = vmatpush.msra.mxu0 0.0
      %4432 = vmatpush.msra.mxu0 0.0
      %4433 = vmatpush.msra.mxu0 0.0
      %4434 = vmatpush.msra.mxu0 %v2627
      %4435 = vmatpush.msra.mxu0 %v2626
      %4436 = vmatpush.msra.mxu0 %v2625
      %4437 = vmatpush.msra.mxu0 %v2624
      %4438 = vmatpush.msra.mxu0 %v2623
      %4439 = vmatpush.msra.mxu0 %v2622
      %4440 = vmatpush.msra.mxu0 %v2621
      %4441 = vmatpush.msra.mxu0 %v2620
      %4442 = vmatmul.f32.gmra.mxu0 %v4403
      %v4443 = vpop.f32.mrf.mxu0
      %v4444 = vadd.f32 %v4401, %v4443
      %4445 = vmatmul.f32.gmra.mxu0 %v4406
      %v4446 = vpop.f32.mrf.mxu0
      %v4447 = vadd.f32 %v4401, %v4446
      %4448 = vmatmul.f32.gmra.mxu0 %v4409
      %v4449 = vpop.f32.mrf.mxu0
      %v4450 = vadd.f32 %v4401, %v4449
      %4451 = vmatmul.f32.gmra.mxu0 %v4412
      %v4452 = vpop.f32.mrf.mxu0
      %v4453 = vadd.f32 %v4401, %v4452
      %4454 = vmatmul.f32.gmra.mxu0 %v4415
      %v4455 = vpop.f32.mrf.mxu0
      %v4456 = vadd.f32 %v4401, %v4455
      %4457 = vmatmul.f32.gmra.mxu0 %v4418
      %v4458 = vpop.f32.mrf.mxu0
      %v4459 = vadd.f32 %v4401, %v4458
      %4460 = vmatmul.f32.gmra.mxu0 %v4421
      %v4461 = vpop.f32.mrf.mxu0
      %v4462 = vadd.f32 %v4401, %v4461
      %4463 = vmatmul.f32.gmra.mxu0 %v4424
      %v4464 = vpop.f32.mrf.mxu0
      %v4465 = vadd.f32 %v4401, %v4464
      %4466 = vdwg.mxu0
      %v4467 = vadd.f32 %v4317, %v4444
      %v4468 = vadd.f32 %v4318, %v4447
      %v4469 = vadd.f32 %v4319, %v4450
      %v4470 = vadd.f32 %v4320, %v4453
      %v4471 = vadd.f32 %v4321, %v4456
      %v4472 = vadd.f32 %v4322, %v4459
      %v4473 = vadd.f32 %v4323, %v4462
      %v4474 = vadd.f32 %v4324, %v4465
      %v4475 = vsel %vm464, %v4467, 0.0
      %4476 = vadd.xlane.f32.xlu0 %v4475
      %v4477 = vpop.xlane.xlu0 %4476
      %v4478 = vsel %vm464, %v4468, 0.0
      %4479 = vadd.xlane.f32.xlu0 %v4478
      %v4480 = vpop.xlane.xlu0 %4479
      %v4481 = vsel %vm464, %v4469, 0.0
      %4482 = vadd.xlane.f32.xlu0 %v4481
      %v4483 = vpop.xlane.xlu0 %4482
      %v4484 = vsel %vm464, %v4470, 0.0
      %4485 = vadd.xlane.f32.xlu0 %v4484
      %v4486 = vpop.xlane.xlu0 %4485
      %v4487 = vsel %vm464, %v4471, 0.0
      %4488 = vadd.xlane.f32.xlu0 %v4487
      %v4489 = vpop.xlane.xlu0 %4488
      %v4490 = vsel %vm464, %v4472, 0.0
      %4491 = vadd.xlane.f32.xlu0 %v4490
      %v4492 = vpop.xlane.xlu0 %4491
      %v4493 = vsel %vm464, %v4473, 0.0
      %4494 = vadd.xlane.f32.xlu0 %v4493
      %v4495 = vpop.xlane.xlu0 %4494
      %v4496 = vsel %vm464, %v4474, 0.0
      %4497 = vadd.xlane.f32.xlu0 %v4496
      %v4498 = vpop.xlane.xlu0 %4497
      %v4499 = vmul.f32 %v4477, %v2089
      %v4500 = vmul.f32 %v4480, %v2089
      %v4501 = vmul.f32 %v4483, %v2089
      %v4502 = vmul.f32 %v4486, %v2089
      %v4503 = vmul.f32 %v4489, %v2089
      %v4504 = vmul.f32 %v4492, %v2089
      %v4505 = vmul.f32 %v4495, %v2089
      %v4506 = vmul.f32 %v4498, %v2089
      %v4507 = vsub.f32 %v4467, %v4499
      %v4508 = vsub.f32 %v4468, %v4500
      %v4509 = vsub.f32 %v4469, %v4501
      %v4510 = vsub.f32 %v4470, %v4502
      %v4511 = vsub.f32 %v4471, %v4503
      %v4512 = vsub.f32 %v4472, %v4504
      %v4513 = vsub.f32 %v4473, %v4505
      %v4514 = vsub.f32 %v4474, %v4506
      %v4515 = vmul.f32 %v4507, %v4507
      %v4516 = vmul.f32 %v4508, %v4508
      %v4517 = vmul.f32 %v4509, %v4509
      %v4518 = vmul.f32 %v4510, %v4510
      %v4519 = vmul.f32 %v4511, %v4511
      %v4520 = vmul.f32 %v4512, %v4512
      %v4521 = vmul.f32 %v4513, %v4513
      %v4522 = vmul.f32 %v4514, %v4514
      %v4523 = vsel %vm464, %v4515, 0.0
      %4524 = vadd.xlane.f32.xlu0 %v4523
      %v4525 = vpop.xlane.xlu0 %4524
      %v4526 = vsel %vm464, %v4516, 0.0
      %4527 = vadd.xlane.f32.xlu0 %v4526
      %v4528 = vpop.xlane.xlu0 %4527
      %v4529 = vsel %vm464, %v4517, 0.0
      %4530 = vadd.xlane.f32.xlu0 %v4529
      %v4531 = vpop.xlane.xlu0 %4530
      %v4532 = vsel %vm464, %v4518, 0.0
      %4533 = vadd.xlane.f32.xlu0 %v4532
      %v4534 = vpop.xlane.xlu0 %4533
      %v4535 = vsel %vm464, %v4519, 0.0
      %4536 = vadd.xlane.f32.xlu0 %v4535
      %v4537 = vpop.xlane.xlu0 %4536
      %v4538 = vsel %vm464, %v4520, 0.0
      %4539 = vadd.xlane.f32.xlu0 %v4538
      %v4540 = vpop.xlane.xlu0 %4539
      %v4541 = vsel %vm464, %v4521, 0.0
      %4542 = vadd.xlane.f32.xlu0 %v4541
      %v4543 = vpop.xlane.xlu0 %4542
      %v4544 = vsel %vm464, %v4522, 0.0
      %4545 = vadd.xlane.f32.xlu0 %v4544
      %v4546 = vpop.xlane.xlu0 %4545
      %v4547 = vmul.f32 %v4525, %v2089
      %v4548 = vmul.f32 %v4528, %v2089
      %v4549 = vmul.f32 %v4531, %v2089
      %v4550 = vmul.f32 %v4534, %v2089
      %v4551 = vmul.f32 %v4537, %v2089
      %v4552 = vmul.f32 %v4540, %v2089
      %v4553 = vmul.f32 %v4543, %v2089
      %v4554 = vmul.f32 %v4546, %v2089
      %v4555 = vadd.f32 %v4547, 1e-05
      %v4556 = vadd.f32 %v4548, 1e-05
      %v4557 = vadd.f32 %v4549, 1e-05
      %v4558 = vadd.f32 %v4550, 1e-05
      %v4559 = vadd.f32 %v4551, 1e-05
      %v4560 = vadd.f32 %v4552, 1e-05
      %v4561 = vadd.f32 %v4553, 1e-05
      %v4562 = vadd.f32 %v4554, 1e-05
      %v4563 = vrsqrt.pop %v4555
      %v4564 = vmul.f32 %v4563, %v4555
      %v4565 = vmul.f32 %v4564, %v4563
      %v4566 = vmul.f32 0.5, %v4565
      %v4567 = vsub.f32 1.5, %v4566
      %v4568 = vmul.f32 %v4563, %v4567
      %vm4569 = vweird.f32 %v4555
      %vm4570 = vweird.f32 %v4563
      %vm4571 = vmor %vm4569, %vm4570
      %v4572 = vsel %vm4571, %v4563, %v4568
      %v4573 = vrsqrt.pop %v4556
      %v4574 = vmul.f32 %v4573, %v4556
      %v4575 = vmul.f32 %v4574, %v4573
      %v4576 = vmul.f32 0.5, %v4575
      %v4577 = vsub.f32 1.5, %v4576
      %v4578 = vmul.f32 %v4573, %v4577
      %vm4579 = vweird.f32 %v4556
      %vm4580 = vweird.f32 %v4573
      %vm4581 = vmor %vm4579, %vm4580
      %v4582 = vsel %vm4581, %v4573, %v4578
      %v4583 = vrsqrt.pop %v4557
      %v4584 = vmul.f32 %v4583, %v4557
      %v4585 = vmul.f32 %v4584, %v4583
      %v4586 = vmul.f32 0.5, %v4585
      %v4587 = vsub.f32 1.5, %v4586
      %v4588 = vmul.f32 %v4583, %v4587
      %vm4589 = vweird.f32 %v4557
      %vm4590 = vweird.f32 %v4583
      %vm4591 = vmor %vm4589, %vm4590
      %v4592 = vsel %vm4591, %v4583, %v4588
      %v4593 = vrsqrt.pop %v4558
      %v4594 = vmul.f32 %v4593, %v4558
      %v4595 = vmul.f32 %v4594, %v4593
      %v4596 = vmul.f32 0.5, %v4595
      %v4597 = vsub.f32 1.5, %v4596
      %v4598 = vmul.f32 %v4593, %v4597
      %vm4599 = vweird.f32 %v4558
      %vm4600 = vweird.f32 %v4593
      %vm4601 = vmor %vm4599, %vm4600
      %v4602 = vsel %vm4601, %v4593, %v4598
      %v4603 = vrsqrt.pop %v4559
      %v4604 = vmul.f32 %v4603, %v4559
      %v4605 = vmul.f32 %v4604, %v4603
      %v4606 = vmul.f32 0.5, %v4605
      %v4607 = vsub.f32 1.5, %v4606
      %v4608 = vmul.f32 %v4603, %v4607
      %vm4609 = vweird.f32 %v4559
      %vm4610 = vweird.f32 %v4603
      %vm4611 = vmor %vm4609, %vm4610
      %v4612 = vsel %vm4611, %v4603, %v4608
      %v4613 = vrsqrt.pop %v4560
      %v4614 = vmul.f32 %v4613, %v4560
      %v4615 = vmul.f32 %v4614, %v4613
      %v4616 = vmul.f32 0.5, %v4615
      %v4617 = vsub.f32 1.5, %v4616
      %v4618 = vmul.f32 %v4613, %v4617
      %vm4619 = vweird.f32 %v4560
      %vm4620 = vweird.f32 %v4613
      %vm4621 = vmor %vm4619, %vm4620
      %v4622 = vsel %vm4621, %v4613, %v4618
      %v4623 = vrsqrt.pop %v4561
      %v4624 = vmul.f32 %v4623, %v4561
      %v4625 = vmul.f32 %v4624, %v4623
      %v4626 = vmul.f32 0.5, %v4625
      %v4627 = vsub.f32 1.5, %v4626
      %v4628 = vmul.f32 %v4623, %v4627
      %vm4629 = vweird.f32 %v4561
      %vm4630 = vweird.f32 %v4623
      %vm4631 = vmor %vm4629, %vm4630
      %v4632 = vsel %vm4631, %v4623, %v4628
      %v4633 = vrsqrt.pop %v4562
      %v4634 = vmul.f32 %v4633, %v4562
      %v4635 = vmul.f32 %v4634, %v4633
      %v4636 = vmul.f32 0.5, %v4635
      %v4637 = vsub.f32 1.5, %v4636
      %v4638 = vmul.f32 %v4633, %v4637
      %vm4639 = vweird.f32 %v4562
      %vm4640 = vweird.f32 %v4633
      %vm4641 = vmor %vm4639, %vm4640
      %v4642 = vsel %vm4641, %v4633, %v4638
      %v4643 = vmul.f32 %v4507, %v4572
      %v4644 = vmul.f32 %v4508, %v4582
      %v4645 = vmul.f32 %v4509, %v4592
      %v4646 = vmul.f32 %v4510, %v4602
      %v4647 = vmul.f32 %v4511, %v4612
      %v4648 = vmul.f32 %v4512, %v4622
      %v4649 = vmul.f32 %v4513, %v4632
      %v4650 = vmul.f32 %v4514, %v4642
      %v4651 = vperm.slane %v2633, 4
      %v4652 = vmul.f32 %v4643, %v4651
      %v4653 = vmul.f32 %v4644, %v4651
      %v4654 = vmul.f32 %v4645, %v4651
      %v4655 = vmul.f32 %v4646, %v4651
      %v4656 = vmul.f32 %v4647, %v4651
      %v4657 = vmul.f32 %v4648, %v4651
      %v4658 = vmul.f32 %v4649, %v4651
      %v4659 = vmul.f32 %v4650, %v4651
      %v4660 = vperm.slane %v2633, 5
      %v4661 = vadd.f32 %v4652, %v4660
      %v4662 = vadd.f32 %v4653, %v4660
      %v4663 = vadd.f32 %v4654, %v4660
      %v4664 = vadd.f32 %v4655, %v4660
      %v4665 = vadd.f32 %v4656, %v4660
      %v4666 = vadd.f32 %v4657, %v4660
      %v4667 = vadd.f32 %v4658, %v4660
      %v4668 = vadd.f32 %v4659, %v4660
      %4669 = vst.msk [vmem:[%s438] sm:$0xff] %vm464, %v4661
      %4670 = vst.msk [vmem:[%s438 + $0x8] sm:$0xff] %vm464, %v4662
      %4671 = vst.msk [vmem:[%s438 + $0x10] sm:$0xff] %vm464, %v4663
      %4672 = vst.msk [vmem:[%s438 + $0x18] sm:$0xff] %vm464, %v4664
      %4673 = vst.msk [vmem:[%s438 + $0x20] sm:$0xff] %vm464, %v4665
      %4674 = vst.msk [vmem:[%s438 + $0x28] sm:$0xff] %vm464, %v4666
      %4675 = vst.msk [vmem:[%s438 + $0x30] sm:$0xff] %vm464, %v4667
      %4676 = vst.msk [vmem:[%s438 + $0x38] sm:$0xff] %vm464, %v4668
      %s4677 = smul.u32 8, %s23
      %p4678 = scmp.lt.s32.totalorder %s4677, 15
      %s4679 = scalar_select %p4678, %s4677, 15
      %s4680 = smul.addr %s4679, 8
      %s4681 = scalar_lea.vmem %s10, %s4680
      %s4682 = smul.u32 8, %s23
      %p4683 = scmp.lt.s32.totalorder %s4682, 15
      %s4684 = scalar_select %p4683, %s4682, 15
      %s4685 = smul.addr %s4684, 8
      %s4686 = scalar_lea.vmem %s11, %s4685
      // Predicated region
      $region61: #{tpu_custom_call.1} parent=59 // pred_check
        %p4687 = pneg %p266
      $region62: #{tpu_custom_call.1} parent=59 // pred_check_branch
        %4689 = sbr.rel (%p4687) target = $region64
      $region63: #{tpu_custom_call.1} parent=59 // pred_region
        %s4690 = smul.u32 8, %s23
      $region64: #{tpu_custom_call.1} parent=59 // pred_fallthru
        _
      // Predicated region
      $region65: #{tpu_custom_call.1} parent=59 // pred_check
        %p4691 = pneg %p292
      $region66: #{tpu_custom_call.1} parent=59 // pred_check_branch
        %4693 = sbr.rel (%p4691) target = $region68
      $region67: #{tpu_custom_call.1} parent=59 // pred_region
        %s4694 = smul.u32 8, %s23
      $region68: #{tpu_custom_call.1} parent=59 // pred_fallthru
        _
    $region60: #{tpu_custom_call.1} parent=5 // pred_fallthru
      _
    %p4695 = scmp.le.s32.totalorder 2, %s18
    // Predicated region
    $region69: #{tpu_custom_call.1} parent=5 // pred_check
      %p4696 = pneg %p4695
    $region70: #{tpu_custom_call.1} parent=5 // pred_check_branch
      %4698 = sbr.rel (%p4696) target = $region72
    $region71: #{tpu_custom_call.1} parent=5 // pred_region
      %s4699 = ssub.s32 %s18, 2
      // Predicated region
      $region73: #{tpu_custom_call.1} parent=71 // pred_check
        %p4700 = pneg %p272
      $region74: #{tpu_custom_call.1} parent=71 // pred_check_branch
        %4702 = sbr.rel (%p4700) target = $region76
      $region75: #{tpu_custom_call.1} parent=71 // pred_region
        %s4703 = smul.u32 8, %s24
        %p4704 = scmp.lt.s32.totalorder %s4703, 15
        %s4705 = scalar_select %p4704, %s4703, 15
        %s4706 = smul.addr %s4705, 8
        %s4707 = scalar_lea.vmem %s10, %s4706
      $region76: #{tpu_custom_call.1} parent=71 // pred_fallthru
        _
      // Predicated region
      $region77: #{tpu_custom_call.1} parent=71 // pred_check
        %p4708 = pneg %p298
      $region78: #{tpu_custom_call.1} parent=71 // pred_check_branch
        %4710 = sbr.rel (%p4708) target = $region80
      $region79: #{tpu_custom_call.1} parent=71 // pred_region
        %s4711 = smul.u32 8, %s24
        %p4712 = scmp.lt.s32.totalorder %s4711, 15
        %s4713 = scalar_select %p4712, %s4711, 15
        %s4714 = smul.addr %s4713, 8
        %s4715 = scalar_lea.vmem %s11, %s4714
      $region80: #{tpu_custom_call.1} parent=71 // pred_fallthru
        _
    $region72: #{tpu_custom_call.1} parent=5 // pred_fallthru
      _
  $region6: #{tpu_custom_call.1} parent=0 // loop_footer
    %s22 = sadd.s32 1, %s18
  $region7: #{tpu_custom_call.1} parent=0 // loop_footer_branch
    %17 = sbr.rel target = $region3
  $region8: #{tpu_custom_call.1} parent=0 // loop_exit
    _

</llo_original>
